<compile_context>
chip_gen: v7x
topology: tpu7x:2x2x1
jax: 0.10.0
libtpu: 0.0.40
codegen_flags: <defaults>
</compile_context>

<pallas_src>
import functools
import numpy as np
import jax
import jax.numpy as jnp
from jax.experimental import pallas as pl
from jax.experimental.pallas import tpu as pltpu


def _vmp_kernel(step_tile_ref, step_block_ref, feat_ref, flat_ref, out_ref,
                acc_ref, *, tile_v, sub_n):
    # step_tile_ref/step_block_ref: (BS, S_MAX) int32 in SMEM (scalar prefetch)
    # feat_ref: (1, C, TILE_N) f32   flat_ref: (1, 1, TILE_N) int32
    # out_ref : (1, C, TILE_V)       acc_ref : (C, TILE_V, SUB_N) f32 scratch
    b = pl.program_id(0)
    s = pl.program_id(1)
    n_steps = pl.num_programs(1)

    tile = step_tile_ref[b, s]
    prev_tile = step_tile_ref[b, jnp.maximum(s - 1, 0)]
    next_tile = step_tile_ref[b, jnp.minimum(s + 1, n_steps - 1)]
    first = jnp.logical_or(s == 0, tile != prev_tile)
    last = jnp.logical_or(s == n_steps - 1, tile != next_tile)

    @pl.when(first)
    def _():
        acc_ref[...] = jnp.zeros_like(acc_ref)

    feat = feat_ref[0]          # (C, TILE_N)  points on lanes
    flat = flat_ref[0]          # (1, TILE_N)  sorted flat voxel id (-1 = invalid)

    # voxel ids handled by this output tile, along sublanes
    vox = tile * tile_v + jax.lax.broadcasted_iota(
        jnp.int32, (tile_v, 1), 0)

    tile_n = feat.shape[-1]
    for i in range(tile_n // sub_n):            # static, unrolled sub-chunks
        sl = slice(i * sub_n, (i + 1) * sub_n)
        mask = flat[:, sl] == vox               # (TILE_V, SUB_N)
        # 0 for non-members is exact: the scatter target is zero-initialised,
        # so the result is clamped at 0 anyway (no -inf sentinel needed).
        contrib = jnp.where(mask[None, :, :], feat[:, sl][:, None, :], 0.0)
        acc_ref[...] = jnp.maximum(acc_ref[...], contrib)   # pure VALU

    @pl.when(last)
    def _():
        # single cross-lane reduce per output tile
        out_ref[0] = jnp.max(acc_ref[...], axis=-1).astype(out_ref.dtype)


def voxel_max_pool(pcds_feat, pcds_ind, output_size, scale_rate=None,
                   tile_v=512, tile_n=256, sub_n=128):
    """Pallas TPU implementation of pytorch_lib.VoxelMaxPool."""
    BS, C, N, _ = pcds_feat.shape
    D = pcds_ind.shape[2]
    assert D == len(output_size)
    if scale_rate is None:
        scale_rate = [1.0 for _ in output_size]

    out_dtype = pcds_feat.dtype
    feat = pcds_feat[..., 0].astype(jnp.float32)           # (BS, C, N)
    ind = pcds_ind[..., 0].astype(jnp.float32)              # (BS, N, D)

    V = int(np.prod(output_size))
    tile_v = min(tile_v, pl.cdiv(V, 128) * 128)              # lane-dense output tile
    tile_n = min(tile_n, pl.cdiv(N, 128) * 128)              # point block per grid step
    sub_n = min(sub_n, tile_n)                               # inner chunk width

    NT = pl.cdiv(V, tile_v)                                  # voxel tiles
    V_pad = NT * tile_v
    N_pad = pl.cdiv(N, tile_n) * tile_n
    NB = N_pad // tile_n                                     # point blocks
    S_MAX = NT + NB                                          # static step bound / batch

    # ---- voxelize + flatten (XLA) ----
    scale = jnp.asarray(scale_rate, jnp.float32)
    sizes = jnp.asarray(output_size, jnp.int32)
    idx = jnp.floor(ind * scale).astype(jnp.int32)           # (BS, N, D)
    valid = jnp.all((idx >= 0) & (idx < sizes), axis=-1)     # (BS, N)
    strides = np.asarray(
        [int(np.prod(output_size[d + 1:])) for d in range(D)], np.int32)
    flat = jnp.sum(idx * jnp.asarray(strides, jnp.int32), axis=-1)
    flat = jnp.where(valid, flat, -1).astype(jnp.int32)      # (BS, N), -1 = dropped

    # ---- pad + bucket-sort points by voxel tile ----
    flat_p = jnp.pad(flat, ((0, 0), (0, N_pad - N)), constant_values=-1)
    feat_p = jnp.pad(feat, ((0, 0), (0, 0), (0, N_pad - N)))
    tile_of_pt = jnp.where(flat_p >= 0, flat_p // tile_v, NT).astype(jnp.int32)

    order = jnp.argsort(tile_of_pt, axis=-1)
    sorted_tile = jnp.take_along_axis(tile_of_pt, order, axis=-1)
    sorted_flat = jnp.take_along_axis(flat_p, order, axis=-1)
    order_b = jnp.broadcast_to(order[:, None, :], (BS, C, N_pad))
    sorted_feat = jnp.take_along_axis(feat_p, order_b, axis=-1)

    # ---- per-tile point ranges -> flattened (tile, block) work list ----
    tiles = jnp.arange(NT, dtype=jnp.int32)
    start = jax.vmap(lambda a: jnp.searchsorted(a, tiles, side='left'))(sorted_tile)
    end = jax.vmap(lambda a: jnp.searchsorted(a, tiles, side='right'))(sorted_tile)
    cnt = end - start
    first_blk = jnp.minimum(start // tile_n, NB - 1).astype(jnp.int32)
    last_blk = jnp.where(cnt > 0, (end - 1) // tile_n, first_blk).astype(jnp.int32)
    nb = (last_blk - first_blk + 1).astype(jnp.int32)        # >= 1 (empty tile => 1 step)
    cum = jnp.cumsum(nb, axis=-1)
    steps_before = cum - nb

    s_idx = jnp.arange(S_MAX, dtype=jnp.int32)
    step_tile = jax.vmap(lambda c: jnp.searchsorted(c, s_idx, side='right'))(cum)
    step_tile = jnp.minimum(step_tile, NT - 1).astype(jnp.int32)
    step_block = (jnp.take_along_axis(first_blk, step_tile, axis=-1)
                  + (s_idx[None, :]
                     - jnp.take_along_axis(steps_before, step_tile, axis=-1)))
    step_block = jnp.clip(step_block, 0, NB - 1).astype(jnp.int32)

    flat_k = sorted_flat[:, None, :]                          # (BS, 1, N_pad)

    # ---- VMEM budget (resident blocks + accumulator + temps, with headroom) ----
    acc_bytes = C * tile_v * sub_n * 4
    est = (4 * C * tile_n * 4          # double-buffered feat blocks
           + 4 * tile_n * 4 * 8        # flat blocks (sublane padded)
           + 4 * C * tile_v * 4        # double-buffered out blocks
           + 3 * acc_bytes             # accumulator + select/mask temporaries
           + (2 << 20))
    vmem_limit = int(min(max(est, 16 << 20), 64 << 20))

    kernel = functools.partial(_vmp_kernel, tile_v=tile_v, sub_n=sub_n)

    out = pl.pallas_call(
        kernel,
        out_shape=jax.ShapeDtypeStruct((BS, C, V_pad), jnp.float32),
        grid_spec=pltpu.PrefetchScalarGridSpec(
            num_scalar_prefetch=2,
            grid=(BS, S_MAX),
            in_specs=[
                pl.BlockSpec((1, C, tile_n),
                             lambda b, s, st, sb: (b, 0, sb[b, s])),
                pl.BlockSpec((1, 1, tile_n),
                             lambda b, s, st, sb: (b, 0, sb[b, s])),
            ],
            out_specs=pl.BlockSpec((1, C, tile_v),
                                   lambda b, s, st, sb: (b, 0, st[b, s])),
            scratch_shapes=[pltpu.VMEM((C, tile_v, sub_n), jnp.float32)],
        ),
        compiler_params=pltpu.CompilerParams(
            dimension_semantics=("parallel", "arbitrary"),
            vmem_limit_bytes=vmem_limit),
    )(step_tile, step_block, sorted_feat, flat_k)

    out = out[:, :, :V].reshape((BS, C) + tuple(output_size))
    return out.astype(out_dtype)


class VMPModule:
    """JAX/Pallas port of the PyTorch VMPModule (no learned parameters)."""

    def __init__(self, output_size, scale_rate=None):
        self.output_size = tuple(output_size)
        self.scale_rate = scale_rate
        if self.scale_rate is None:
            self.scale_rate = [1 for _ in range(len(self.output_size))]

    def __call__(self, pcds_feat, pcds_ind):
        return voxel_max_pool(pcds_feat, pcds_ind,
                              self.output_size, self.scale_rate)


def _reference(pcds_feat, pcds_ind, output_size, scale_rate):
    """Pure-JAX scatter-max reference (zero-initialised, matches CUDA op)."""
    BS, C, N, _ = pcds_feat.shape
    D = len(output_size)
    feat = pcds_feat[..., 0].astype(jnp.float32)
    ind = pcds_ind[..., 0].astype(jnp.float32)
    idx = jnp.floor(ind * jnp.asarray(scale_rate, jnp.float32)).astype(jnp.int32)
    sizes = jnp.asarray(output_size, jnp.int32)
    valid = jnp.all((idx >= 0) & (idx < sizes), axis=-1)
    strides = np.asarray(
        [int(np.prod(output_size[d + 1:])) for d in range(D)], np.int32)
    V = int(np.prod(output_size))
    flat = jnp.sum(idx * jnp.asarray(strides, jnp.int32), axis=-1)
    flat = jnp.where(valid, flat, V)                          # dump invalid in slot V

    def per_batch(f, s):
        grid = jnp.zeros((C, V + 1), jnp.float32)
        return grid.at[:, s].max(f)[:, :V]

    out = jax.vmap(per_batch)(feat, flat)
    return out.reshape((BS, C) + tuple(output_size))


if __name__ == "__main__":
    key = jax.random.PRNGKey(0)
    k1, k2 = jax.random.split(key)

    BS, C, N = 2, 4, 128
    output_size = (16, 16)
    scale_rate = [0.5, 0.5]

    # point features (some negative, to exercise the 0-baseline max)
    pcds_feat = jax.random.normal(k1, (BS, C, N, 1), dtype=jnp.float32)
    # point coordinates in [0, 34): a few land out of range after scaling
    pcds_ind = jax.random.uniform(
        k2, (BS, N, 2, 1), dtype=jnp.float32, minval=0.0, maxval=34.0)

    module = VMPModule(output_size, scale_rate)
    voxel_feat = module(pcds_feat, pcds_ind)
    voxel_feat = jax.block_until_ready(voxel_feat)

    ref = _reference(pcds_feat, pcds_ind, output_size, scale_rate)
    np.testing.assert_allclose(np.asarray(voxel_feat), np.asarray(ref),
                               rtol=1e-6, atol=1e-6)

    assert voxel_feat.shape == (BS, C) + output_size
    print("KERNEL_OK")
</pallas_src>

<mosaic_0001>
module attributes {stable_mosaic.version = 11 : i64} {
  func.func @_vmp_kernel(%arg0: i32, %arg1: i32, %arg2: memref<2x2xi32, #tpu.memory_space<smem>>, %arg3: memref<2x2xi32, #tpu.memory_space<smem>>, %arg4: memref<1x4x128xf32, #tpu.memory_space<vmem>>, %arg5: memref<1x1x128xi32, #tpu.memory_space<vmem>>, %arg6: memref<1x4x256xf32, #tpu.memory_space<vmem>>, %arg7: memref<4x256x128xf32, #tpu.memory_space<vmem>>) attributes {dimension_semantics = [#tpu.dimension_semantics<parallel>, #tpu.dimension_semantics<arbitrary>], iteration_bounds = array<i64: 2, 2>, scalar_prefetch = 2 : i64, scratch_operands = 1 : i64, tpu.core_type = #tpu.core_type<tc>, window_params = [{transform_indices = @transform_0, window_bounds = array<i64: 1, 4, 128>}, {transform_indices = @transform_1, window_bounds = array<i64: 1, 1, 128>}, {transform_indices = @transform_2, window_bounds = array<i64: 1, 4, 256>}]} {
    %0 = arith.index_cast %arg0 : i32 to index
    %1 = arith.index_cast %arg1 : i32 to index
    %2 = memref.load %arg2[%0, %1] : memref<2x2xi32, #tpu.memory_space<smem>>
    %c1_i32 = arith.constant 1 : i32
    %3 = arith.subi %arg1, %c1_i32 : i32
    %c0_i32 = arith.constant 0 : i32
    %4 = arith.maxsi %3, %c0_i32 : i32
    %5 = arith.index_cast %arg0 : i32 to index
    %6 = arith.index_cast %4 : i32 to index
    %7 = memref.load %arg2[%5, %6] : memref<2x2xi32, #tpu.memory_space<smem>>
    %c1_i32_0 = arith.constant 1 : i32
    %8 = arith.addi %arg1, %c1_i32_0 : i32
    %c1_i32_1 = arith.constant 1 : i32
    %9 = arith.minsi %8, %c1_i32_1 : i32
    %10 = arith.index_cast %arg0 : i32 to index
    %11 = arith.index_cast %9 : i32 to index
    %12 = memref.load %arg2[%10, %11] : memref<2x2xi32, #tpu.memory_space<smem>>
    %c0_i32_2 = arith.constant 0 : i32
    %13 = arith.cmpi eq, %arg1, %c0_i32_2 : i32
    %14 = arith.cmpi ne, %2, %7 : i32
    %15 = arith.ori %13, %14 : i1
    %c1_i32_3 = arith.constant 1 : i32
    %16 = arith.cmpi eq, %arg1, %c1_i32_3 : i32
    %17 = arith.cmpi ne, %2, %12 : i32
    %18 = arith.ori %16, %17 : i1
    %19 = arith.extui %15 : i1 to i32
    %c0_i32_4 = arith.constant 0 : i32
    %20 = arith.cmpi ne, %19, %c0_i32_4 : i32
    scf.if %20 {
      %cst_17 = arith.constant 0.000000e+00 : f32
      %45 = vector.broadcast %cst_17 : f32 to vector<4x256x128xf32>
      %c0_18 = arith.constant 0 : index
      %c0_19 = arith.constant 0 : index
      %c0_20 = arith.constant 0 : index
      %46 = vector.load %arg7[%c0_18, %c0_19, %c0_20] : memref<4x256x128xf32, #tpu.memory_space<vmem>>, vector<4x256x128xf32>
      tpu.vector_store %arg7[%c0_18, %c0_19, %c0_20], %45 {strides = array<i32>} : memref<4x256x128xf32, #tpu.memory_space<vmem>>, vector<4x256x128xf32>,
    } else {
    }
    %c0 = arith.constant 0 : index
    %c0_5 = arith.constant 0 : index
    %c0_6 = arith.constant 0 : index
    %21 = vector.load %arg4[%c0, %c0_5, %c0_6] : memref<1x4x128xf32, #tpu.memory_space<vmem>>, vector<1x4x128xf32>
    %22 = vector.shape_cast %21 : vector<1x4x128xf32> to vector<4x128xf32>
    %c0_7 = arith.constant 0 : index
    %c0_8 = arith.constant 0 : index
    %c0_9 = arith.constant 0 : index
    %23 = vector.load %arg5[%c0_7, %c0_8, %c0_9] : memref<1x1x128xi32, #tpu.memory_space<vmem>>, vector<1x1x128xi32>
    %24 = vector.shape_cast %23 : vector<1x1x128xi32> to vector<1x128xi32>
    %c256_i32 = arith.constant 256 : i32
    %25 = arith.muli %2, %c256_i32 : i32
    %26 = tpu.iota {dimensions = array<i32: 0>} : vector<256x1xi32>
    %27 = vector.broadcast %25 : i32 to vector<256x1xi32>
    %28 = arith.addi %27, %26 : vector<256x1xi32>
    %29 = vector.broadcast %24 : vector<1x128xi32> to vector<256x128xi32>
    %30 = vector.broadcast %28 : vector<256x1xi32> to vector<256x128xi32>
    %31 = arith.cmpi eq, %29, %30 : vector<256x128xi32>
    %32 = vector.shape_cast %31 : vector<256x128xi1> to vector<1x256x128xi1>
    %33 = vector.shape_cast %22 : vector<4x128xf32> to vector<4x1x128xf32>
    %cst = arith.constant 0.000000e+00 : f32
    %34 = vector.shape_cast %32 : vector<1x256x128xi1> to vector<1x256x128xi1>
    %35 = vector.broadcast %34 : vector<1x256x128xi1> to vector<4x256x128xi1>
    %36 = vector.shape_cast %33 : vector<4x1x128xf32> to vector<4x1x128xf32>
    %37 = vector.broadcast %36 : vector<4x1x128xf32> to vector<4x256x128xf32>
    %38 = vector.broadcast %cst : f32 to vector<4x256x128xf32>
    %39 = arith.select %35, %37, %38 : vector<4x256x128xi1>, vector<4x256x128xf32>
    %c0_10 = arith.constant 0 : index
    %c0_11 = arith.constant 0 : index
    %c0_12 = arith.constant 0 : index
    %40 = vector.load %arg7[%c0_10, %c0_11, %c0_12] : memref<4x256x128xf32, #tpu.memory_space<vmem>>, vector<4x256x128xf32>
    %41 = arith.maximumf %40, %39 : vector<4x256x128xf32>
    %c0_13 = arith.constant 0 : index
    %c0_14 = arith.constant 0 : index
    %c0_15 = arith.constant 0 : index
    %42 = vector.load %arg7[%c0_13, %c0_14, %c0_15] : memref<4x256x128xf32, #tpu.memory_space<vmem>>, vector<4x256x128xf32>
    tpu.vector_store %arg7[%c0_13, %c0_14, %c0_15], %41 {strides = array<i32>} : memref<4x256x128xf32, #tpu.memory_space<vmem>>, vector<4x256x128xf32>,
    %43 = arith.extui %18 : i1 to i32
    %c0_i32_16 = arith.constant 0 : i32
    %44 = arith.cmpi ne, %43, %c0_i32_16 : i32
    scf.if %44 {
      %c0_17 = arith.constant 0 : index
      %c0_18 = arith.constant 0 : index
      %c0_19 = arith.constant 0 : index
      %45 = vector.load %arg7[%c0_17, %c0_18, %c0_19] : memref<4x256x128xf32, #tpu.memory_space<vmem>>, vector<4x256x128xf32>
      %cst_20 = arith.constant dense<0xFF800000> : vector<4x256xf32>
      %46 = vector.multi_reduction <maximumf>, %45, %cst_20 [2] : vector<4x256x128xf32> to vector<4x256xf32>
      %c0_21 = arith.constant 0 : index
      %c0_22 = arith.constant 0 : index
      %c0_23 = arith.constant 0 : index
      %47 = vector.load %arg6[%c0_21, %c0_22, %c0_23] : memref<1x4x256xf32, #tpu.memory_space<vmem>>, vector<1x4x256xf32>
      %48 = vector.shape_cast %47 : vector<1x4x256xf32> to vector<4x256xf32>
      %49 = vector.shape_cast %46 : vector<4x256xf32> to vector<1x4x256xf32>
      tpu.vector_store %arg6[%c0_21, %c0_22, %c0_23], %49 {strides = array<i32>} : memref<1x4x256xf32, #tpu.memory_space<vmem>>, vector<1x4x256xf32>,
    } else {
    }
    return
  }
  func.func @transform_0(%arg0: i32, %arg1: i32, %arg2: memref<2x2xi32, #tpu.memory_space<smem>>, %arg3: memref<2x2xi32, #tpu.memory_space<smem>>) -> (i32, i32, i32) {
    %0 = arith.index_cast %arg0 : i32 to index
    %1 = arith.index_cast %arg1 : i32 to index
    %2 = memref.load %arg3[%0, %1] : memref<2x2xi32, #tpu.memory_space<smem>>
    %c0_i32 = arith.constant 0 : i32
    %c0_i32_0 = arith.constant 0 : i32
    return %arg0, %c0_i32, %2 : i32, i32, i32
  }
  func.func @transform_1(%arg0: i32, %arg1: i32, %arg2: memref<2x2xi32, #tpu.memory_space<smem>>, %arg3: memref<2x2xi32, #tpu.memory_space<smem>>) -> (i32, i32, i32) {
    %0 = arith.index_cast %arg0 : i32 to index
    %1 = arith.index_cast %arg1 : i32 to index
    %2 = memref.load %arg3[%0, %1] : memref<2x2xi32, #tpu.memory_space<smem>>
    %c0_i32 = arith.constant 0 : i32
    %c0_i32_0 = arith.constant 0 : i32
    return %arg0, %c0_i32, %2 : i32, i32, i32
  }
  func.func @transform_2(%arg0: i32, %arg1: i32, %arg2: memref<2x2xi32, #tpu.memory_space<smem>>, %arg3: memref<2x2xi32, #tpu.memory_space<smem>>) -> (i32, i32, i32) {
    %0 = arith.index_cast %arg0 : i32 to index
    %1 = arith.index_cast %arg1 : i32 to index
    %2 = memref.load %arg2[%0, %1] : memref<2x2xi32, #tpu.memory_space<smem>>
    %c0_i32 = arith.constant 0 : i32
    %c0_i32_0 = arith.constant 0 : i32
    return %arg0, %c0_i32, %2 : i32, i32, i32
  }
}

</mosaic_0001>

<llo_original>
// kernel: tpu_custom_call.1
$region0: #{tpu_custom_call.1}
  #allocation0 [shape = 'u32[]', space=smem, size = 0x4, offset = 0x4, fixed_abs, tag = 'smem constant byte address 0x4 - core index']
  #allocation1 [shape = 'u32[144,128]{1,0:T(1,128)}', space=vmem, size = 0x12000, scoped, tag = 'internal scratch']
  #allocation2 [shape = 'f32[4,256,128]{2,1,0:T(8,128)}', space=vmem, size = 0x80000, scoped, tag = 'scratch operand']
  #allocation3 [shape = 's32[1]{0}', space=sflag, size = 0x4, scoped, tag = 'scoped memory for tpu_custom_call.1']
  #allocation4 [shape = 'u8[1024]{0}', space=smem, size = 0x400, scoped, tag = 'prefetched SMEM operand 0']
  #allocation5 [shape = 'u8[1024]{0}', space=smem, size = 0x400, scoped, tag = 'prefetched SMEM operand 1']
  %s0 = inlined_call_operand.hbm [shape: s32[2,2], index: 0, kind: input, shape index: {}]
  %s1 = inlined_call_operand.vmem [shape: s32[2,2], index: 1, kind: input, shape index: {}]
  %s2 = inlined_call_operand.hbm [shape: f32[2,4,128], index: 2, kind: input, shape index: {}]
  %s3 = inlined_call_operand.vmem [shape: s32[2,1,128], index: 3, kind: input, shape index: {}]
  %s4 = inlined_call_operand.hbm [shape: f32[2,4,256], index: 4, kind: output, shape index: {}]
  %s5 = sld [smem:[#allocation0]]
  $region53: #{tpu_custom_call.1} parent=0
    _
  %s7 = ssub.s32 1, %s5
  %s8 = scalar_select 0, %s7, %s5
  %10 = dma.hbm_to_smem %s0, 32, [#allocation4], [#allocation3]
  %s11 = sshll.u32 %s1, 4
  %s12 = int_to_ptr.vmem [resolvable:$true] %s11
  %14 = dma.vmem_to_smem %s12, 32, [#allocation5], [#allocation3]
  %15 = dma.done [#allocation3], 64
  %16 = sfence
  $region1: #{tpu_custom_call.1} parent=0
    #allocation6 [shape = 'u8[4096]{0}', space=vmem, size = 0x1000, scoped, tag = 'input window, operand 2']
    #allocation7 [shape = 's32[2]{0}', space=sflag, size = 0x8, scoped, tag = 'scoped memory for tpu_custom_call.1']
    #allocation8 [shape = 's32[2]{0}', space=sflag, size = 0x8, scoped, tag = 'scoped memory for tpu_custom_call.1']
    #allocation9 [shape = 'u8[8192]{0}', space=vmem, size = 0x2000, scoped, tag = 'output window, operand 0']
    %17 = vsyncpa [#allocation7], 0
    %s18 = scalar_lea.sflag [#allocation7], 1
    %19 = vsyncpa %s18, 0
    %20 = vsyncpa [#allocation8], 0
    %s21 = scalar_lea.sflag [#allocation8], 1
    %22 = vsyncpa %s21, 0
    loop: start=0, step=1, limit=6
    $region2: #{tpu_custom_call.1} parent=1 // loop_pre_header
      _
    $region3: #{tpu_custom_call.1} parent=1 // loop_header
      %s24 = sphi 0, %s28
      %p25 = scmp.ge.s32.totalorder %s24, 6
      %s31 = sphi 0, %s43
      %s32 = sphi 0, %s39
      %s33 = sphi 0, %s31
      %s34 = sphi 0, %s32
      %s35 = sphi 0, %s33
      %s36 = sphi 0, %s34
      %s64 = sphi 0, %s66
      %s67 = sphi 0, %s64
      %s68 = sphi 0, %s67
      %s84 = sphi 0, %s68
      %s108 = sphi 0, %s110
      %s111 = sphi 0, %s108
      %s112 = sphi 0, %s111
      %s128 = sphi 0, %s112
      %s152 = sphi 0, %s154
      %s155 = sphi 0, %s152
      %s156 = sphi 0, %s155
      %s172 = sphi 0, %s156
    $region4: #{tpu_custom_call.1} parent=1 // loop_header_branch
      %27 = sbr.rel (%p25) target = $region8
    $region5: #{tpu_custom_call.1} parent=1 // loop_body
      %s29 = ssub.s32 %s24, 1
      %s30 = ssub.s32 %s24, 2
      %s37 = sadd.s32 1, %s32
      %p38 = scmp.ge.s32.totalorder %s37, 2
      %s39 = scalar_select %p38, 0, %s37
      %s40 = sadd.s32 1, %s31
      %s41 = scalar_select %p38, %s40, %s31
      %p42 = scmp.ge.s32.totalorder %s41, 2
      %s43 = scalar_select %p42, 0, %s41
      %s44 = sshra.s32 %s32, 7
      %s45 = sand.u32 %s32, 127
      %s46 = sadd.s32 %s44, %s31
      %s47 = smul.u32 %s46, 128
      %s48 = sshra.s32 %s32, 7
      %s49 = sand.u32 %s32, 127
      %s50 = sadd.s32 %s47, %s49
      %s51 = sld [smem:[#allocation5 + %s50]]
      %s52 = sshra.s32 %s39, 7
      %s53 = sand.u32 %s39, 127
      %s54 = sadd.s32 %s52, %s43
      %s55 = smul.u32 %s54, 128
      %s56 = sshra.s32 %s39, 7
      %s57 = sand.u32 %s39, 127
      %s58 = sadd.s32 %s55, %s57
      %s59 = sld [smem:[#allocation5 + %s58]]
      %s60 = ssub.s32 %s31, %s43
      %s61 = ssub.s32 %s51, %s59
      %s62 = sor.u32 %s60, %s61
      %p63 = scmp.eq.s32.totalorder %s62, 0
      %s65 = sadd.s32 %s64, 1
      %s66 = scalar_select %p63, %s64, %s65
      %p69 = pneg %p63
      %p70 = scmp.eq.s32.totalorder %s24, 3
      %p71 = por %p69, %p70
      %p72 = scmp.ne.s32.totalorder %s64, %s67
      %p73 = scmp.eq.s32.totalorder %s24, 0
      %p74 = por %p72, %p73
      %p75 = scmp.ne.s32.totalorder %s64, %s67
      %p76 = scmp.eq.s32.totalorder %s29, 3
      %p77 = por %p75, %p76
      %p78 = scmp.ne.s32.totalorder %s67, %s68
      %p79 = scmp.eq.s32.totalorder %s29, 0
      %p80 = por %p78, %p79
      %p81 = scmp.ne.s32.totalorder %s67, %s68
      %p82 = scmp.eq.s32.totalorder %s30, 3
      %p83 = por %p81, %p82
      %p85 = scmp.ne.s32.totalorder %s68, %s84
      %p86 = scmp.eq.s32.totalorder %s30, 0
      %p87 = por %p85, %p86
      %s88 = sshra.s32 %s32, 7
      %s89 = sand.u32 %s32, 127
      %s90 = sadd.s32 %s88, %s31
      %s91 = smul.u32 %s90, 128
      %s92 = sshra.s32 %s32, 7
      %s93 = sand.u32 %s32, 127
      %s94 = sadd.s32 %s91, %s93
      %s95 = sld [smem:[#allocation5 + %s94]]
      %s96 = sshra.s32 %s39, 7
      %s97 = sand.u32 %s39, 127
      %s98 = sadd.s32 %s96, %s43
      %s99 = smul.u32 %s98, 128
      %s100 = sshra.s32 %s39, 7
      %s101 = sand.u32 %s39, 127
      %s102 = sadd.s32 %s99, %s101
      %s103 = sld [smem:[#allocation5 + %s102]]
      %s104 = ssub.s32 %s31, %s43
      %s105 = ssub.s32 %s95, %s103
      %s106 = sor.u32 %s104, %s105
      %p107 = scmp.eq.s32.totalorder %s106, 0
      %s109 = sadd.s32 %s108, 1
      %s110 = scalar_select %p107, %s108, %s109
      %p113 = pneg %p107
      %p114 = scmp.eq.s32.totalorder %s24, 3
      %p115 = por %p113, %p114
      %p116 = scmp.ne.s32.totalorder %s108, %s111
      %p117 = scmp.eq.s32.totalorder %s24, 0
      %p118 = por %p116, %p117
      %p119 = scmp.ne.s32.totalorder %s108, %s111
      %p120 = scmp.eq.s32.totalorder %s29, 3
      %p121 = por %p119, %p120
      %p122 = scmp.ne.s32.totalorder %s111, %s112
      %p123 = scmp.eq.s32.totalorder %s29, 0
      %p124 = por %p122, %p123
      %p125 = scmp.ne.s32.totalorder %s111, %s112
      %p126 = scmp.eq.s32.totalorder %s30, 3
      %p127 = por %p125, %p126
      %p129 = scmp.ne.s32.totalorder %s112, %s128
      %p130 = scmp.eq.s32.totalorder %s30, 0
      %p131 = por %p129, %p130
      %s132 = sshra.s32 %s32, 7
      %s133 = sand.u32 %s32, 127
      %s134 = sadd.s32 %s132, %s31
      %s135 = smul.u32 %s134, 128
      %s136 = sshra.s32 %s32, 7
      %s137 = sand.u32 %s32, 127
      %s138 = sadd.s32 %s135, %s137
      %s139 = sld [smem:[#allocation4 + %s138]]
      %s140 = sshra.s32 %s39, 7
      %s141 = sand.u32 %s39, 127
      %s142 = sadd.s32 %s140, %s43
      %s143 = smul.u32 %s142, 128
      %s144 = sshra.s32 %s39, 7
      %s145 = sand.u32 %s39, 127
      %s146 = sadd.s32 %s143, %s145
      %s147 = sld [smem:[#allocation4 + %s146]]
      %s148 = ssub.s32 %s31, %s43
      %s149 = ssub.s32 %s139, %s147
      %s150 = sor.u32 %s148, %s149
      %p151 = scmp.eq.s32.totalorder %s150, 0
      %s153 = sadd.s32 %s152, 1
      %s154 = scalar_select %p151, %s152, %s153
      %p157 = pneg %p151
      %p158 = scmp.eq.s32.totalorder %s24, 3
      %p159 = por %p157, %p158
      %p160 = scmp.ne.s32.totalorder %s152, %s155
      %p161 = scmp.eq.s32.totalorder %s24, 0
      %p162 = por %p160, %p161
      %p163 = scmp.ne.s32.totalorder %s152, %s155
      %p164 = scmp.eq.s32.totalorder %s29, 3
      %p165 = por %p163, %p164
      %p166 = scmp.ne.s32.totalorder %s155, %s156
      %p167 = scmp.eq.s32.totalorder %s29, 0
      %p168 = por %p166, %p167
      %p169 = scmp.ne.s32.totalorder %s155, %s156
      %p170 = scmp.eq.s32.totalorder %s30, 3
      %p171 = por %p169, %p170
      %p173 = scmp.ne.s32.totalorder %s156, %s172
      %p174 = scmp.eq.s32.totalorder %s30, 0
      %p175 = por %p173, %p174
      %p176 = scmp.le.s32.totalorder 1, %s24
      %p177 = scmp.lt.s32.totalorder %s24, 5
      %p178 = pnand %p176, %p177
      %p179 = pneg %p178
      // Predicated region
      $region9: #{tpu_custom_call.1} parent=5 // pred_check
        _
      $region10: #{tpu_custom_call.1} parent=5 // pred_check_branch
        %181 = sbr.rel (%p178) target = $region12
      $region11: #{tpu_custom_call.1} parent=5 // pred_region
        %s182 = ssub.s32 %s24, 1
      $region12: #{tpu_custom_call.1} parent=5 // pred_fallthru
        _
      %p183 = scmp.lt.s32.totalorder %s24, 4
      // Predicated region
      $region13: #{tpu_custom_call.1} parent=5 // pred_check
        %p184 = pneg %p183
      $region14: #{tpu_custom_call.1} parent=5 // pred_check_branch
        %186 = sbr.rel (%p184) target = $region16
      $region15: #{tpu_custom_call.1} parent=5 // pred_region
        // Predicated region
        $region17: #{tpu_custom_call.1} parent=15 // pred_check
          %p187 = pneg %p74
        $region18: #{tpu_custom_call.1} parent=15 // pred_check_branch
          %189 = sbr.rel (%p187) target = $region20
        $region19: #{tpu_custom_call.1} parent=15 // pred_region
          %s190 = sand.u32 %s64, 1
          %s191 = scalar_lea.sflag [#allocation7], %s190
          %s192 = sand.u32 %s64, 1
          %s193 = smul.addr %s192, 4
          %s194 = scalar_lea.vmem [#allocation6], %s193
          %s195 = sshra.s32 %s32, 7
          %s196 = sand.u32 %s32, 127
          %s197 = sadd.s32 %s195, %s31
          %s198 = smul.u32 %s197, 128
          %s199 = sshra.s32 %s32, 7
          %s200 = sand.u32 %s32, 127
          %s201 = sadd.s32 %s198, %s200
          %s202 = sld [smem:[#allocation5 + %s201]]
          %s204 = ssub.s32 64, 64
          %205 = vsyncadd %s191, %s204
          %s206 = sadd.s32 %s202, %s31
          %s207 = smul.addr %s206, 64
          %s208 = scalar_lea.hbm %s2, %s207
          %s210 = sshll.u32 %s194, 4
          %s211 = int_to_ptr.vmem [resolvable:$true] %s210
          %213 = dma.hbm_to_vmem [thread:$0]  %s208, 64, %s211, %s191
        $region20: #{tpu_custom_call.1} parent=15 // pred_fallthru
          _
        // Predicated region
        $region21: #{tpu_custom_call.1} parent=15 // pred_check
          %p214 = pneg %p118
        $region22: #{tpu_custom_call.1} parent=15 // pred_check_branch
          %216 = sbr.rel (%p214) target = $region24
        $region23: #{tpu_custom_call.1} parent=15 // pred_region
          %s217 = sshra.s32 %s32, 7
          %s218 = sand.u32 %s32, 127
          %s219 = sadd.s32 %s217, %s31
          %s220 = smul.u32 %s219, 128
          %s221 = sshra.s32 %s32, 7
          %s222 = sand.u32 %s32, 127
          %s223 = sadd.s32 %s220, %s222
          %s224 = sld [smem:[#allocation5 + %s223]]
          %p225 = scmp.lt.s32.totalorder %s31, 1
          %s226 = scalar_select %p225, %s31, 1
          %p227 = scmp.lt.s32.totalorder %s224, 0
          %s228 = scalar_select %p227, %s224, 0
          %s229 = sadd.s32 %s228, %s226
          %s230 = scalar_lea.vmem %s3, %s229
          %s231 = sshra.s32 %s32, 7
          %s232 = sand.u32 %s32, 127
          %s233 = sadd.s32 %s231, %s31
          %s234 = smul.u32 %s233, 128
          %s235 = sshra.s32 %s32, 7
          %s236 = sand.u32 %s32, 127
          %s237 = sadd.s32 %s234, %s236
          %s238 = sld [smem:[#allocation5 + %s237]]
        $region24: #{tpu_custom_call.1} parent=15 // pred_fallthru
          _
      $region16: #{tpu_custom_call.1} parent=5 // pred_fallthru
        _
      %p239 = scmp.le.s32.totalorder 1, %s24
      %p240 = scmp.lt.s32.totalorder %s24, 5
      %p241 = pnand %p239, %p240
      %p242 = pneg %p241
      // Predicated region
      $region25: #{tpu_custom_call.1} parent=5 // pred_check
        _
      $region26: #{tpu_custom_call.1} parent=5 // pred_check_branch
        %244 = sbr.rel (%p241) target = $region28
      $region27: #{tpu_custom_call.1} parent=5 // pred_region
        %s245 = ssub.s32 %s24, 1
        %s246 = sand.u32 %s67, 1
        %s247 = scalar_lea.sflag [#allocation7], %s246
        %s248 = sand.u32 %s67, 1
        %s249 = smul.addr %s248, 4
        %s250 = scalar_lea.vmem [#allocation6], %s249
        // Predicated region
        $region29: #{tpu_custom_call.1} parent=27 // pred_check
          %p251 = pneg %p80
        $region30: #{tpu_custom_call.1} parent=27 // pred_check_branch
          %253 = sbr.rel (%p251) target = $region32
        $region31: #{tpu_custom_call.1} parent=27 // pred_region
          %254 = dma.done %s247, 64
        $region32: #{tpu_custom_call.1} parent=27 // pred_fallthru
          _
        %s255 = sand.u32 %s67, 1
        %s256 = scalar_lea.sflag [#allocation7], %s255
        %s257 = sand.u32 %s67, 1
        %s258 = smul.addr %s257, 4
        %s259 = scalar_lea.vmem [#allocation6], %s258
        %p260 = pneg %p80
        %p261 = pneg %p77
        %s262 = sshra.s32 %s34, 7
        %s263 = sand.u32 %s34, 127
        %s264 = sadd.s32 %s262, %s33
        %s265 = smul.u32 %s264, 128
        %s266 = sshra.s32 %s34, 7
        %s267 = sand.u32 %s34, 127
        %s268 = sadd.s32 %s265, %s267
        %s269 = sld [smem:[#allocation5 + %s268]]
        %p270 = scmp.lt.s32.totalorder %s33, 1
        %s271 = scalar_select %p270, %s33, 1
        %p272 = scmp.lt.s32.totalorder %s269, 0
        %s273 = scalar_select %p272, %s269, 0
        %s274 = sadd.s32 %s273, %s271
        %s275 = scalar_lea.vmem %s3, %s274
        %p276 = pneg %p124
        %p277 = pneg %p121
        %p278 = pneg %p168
        %p279 = pneg %p165
        %s280 = sand.u32 %s155, 1
        %s281 = scalar_lea.sflag [#allocation8], %s280
        %s282 = sand.u32 %s155, 1
        %s283 = smul.addr %s282, 8
        %s284 = scalar_lea.vmem [#allocation9], %s283
        %s285 = sshra.s32 %s34, 7
        %s286 = sand.u32 %s34, 127
        %s287 = sadd.s32 %s285, %s33
        %s288 = smul.u32 %s287, 128
        %s289 = sshra.s32 %s34, 7
        %s290 = sand.u32 %s34, 127
        %s291 = sadd.s32 %s288, %s290
        %s292 = sld [smem:[#allocation5 + %s291]]
        %s293 = sshra.s32 %s34, 7
        %s294 = sand.u32 %s34, 127
        %s295 = sadd.s32 %s293, %s33
        %s296 = smul.u32 %s295, 128
        %s297 = sshra.s32 %s34, 7
        %s298 = sand.u32 %s34, 127
        %s299 = sadd.s32 %s296, %s298
        %s300 = sld [smem:[#allocation5 + %s299]]
        %p301 = scmp.lt.s32.totalorder %s33, 1
        %s302 = scalar_select %p301, %s33, 1
        %p303 = scmp.lt.s32.totalorder %s300, 0
        %s304 = scalar_select %p303, %s300, 0
        %s305 = sadd.s32 %s304, %s302
        %s306 = scalar_lea.vmem %s3, %s305
        %s307 = sshra.s32 %s34, 7
        %s308 = sand.u32 %s34, 127
        %s309 = sadd.s32 %s307, %s33
        %s310 = smul.u32 %s309, 128
        %s311 = sshra.s32 %s34, 7
        %s312 = sand.u32 %s34, 127
        %s313 = sadd.s32 %s310, %s312
        %s314 = sld [smem:[#allocation5 + %s313]]
        %s315 = sshra.s32 %s34, 7
        %s316 = sand.u32 %s34, 127
        %s317 = sadd.s32 %s315, %s33
        %s318 = smul.u32 %s317, 128
        %s319 = sshra.s32 %s34, 7
        %s320 = sand.u32 %s34, 127
        %s321 = sadd.s32 %s318, %s320
        %s322 = sld [smem:[#allocation4 + %s321]]
        %s323 = smul.u32 2, %s322
        %s324 = sshra.s32 %s34, 7
        %s325 = sand.u32 %s34, 127
        %s326 = sadd.s32 %s324, %s33
        %s327 = smul.u32 %s326, 128
        %s328 = sshra.s32 %s34, 7
        %s329 = sand.u32 %s34, 127
        %s330 = sadd.s32 %s327, %s329
        %s331 = sld [smem:[#allocation4 + %s330]]
        %s332 = ssub.s32 %s34, 1
        %p333 = scmp.gt.s32.totalorder %s332, 0
        %s334 = scalar_select %p333, %s332, 0
        %s335 = sshra.s32 %s334, 7
        %s336 = sand.u32 %s334, 127
        %s337 = sadd.s32 %s335, %s33
        %s338 = smul.u32 %s337, 128
        %s339 = sshra.s32 %s334, 7
        %s340 = sand.u32 %s334, 127
        %s341 = sadd.s32 %s338, %s340
        %s342 = sld [smem:[#allocation4 + %s341]]
        %s343 = sadd.s32 %s34, 1
        %p344 = scmp.lt.s32.totalorder %s343, 1
        %s345 = scalar_select %p344, %s343, 1
        %s346 = sshra.s32 %s345, 7
        %s347 = sand.u32 %s345, 127
        %s348 = sadd.s32 %s346, %s33
        %s349 = smul.u32 %s348, 128
        %s350 = sshra.s32 %s345, 7
        %s351 = sand.u32 %s345, 127
        %s352 = sadd.s32 %s349, %s351
        %s353 = sld [smem:[#allocation4 + %s352]]
        %p354 = scmp.eq.s32.totalorder %s34, 0
        %p355 = scmp.ne.s32.totalorder %s331, %s342
        %p356 = por %p354, %p355
        %p357 = scmp.eq.s32.totalorder %s34, 1
        %p358 = scmp.ne.s32.totalorder %s331, %s353
        %p359 = por %p357, %p358
        // Predicated region
        $region33: #{tpu_custom_call.1} parent=27 // pred_check
          %p360 = pneg %p356
        $region34: #{tpu_custom_call.1} parent=27 // pred_check_branch
          %362 = sbr.rel (%p360) target = $region36
        $region35: #{tpu_custom_call.1} parent=27 // pred_region
          %363 = vst [vmem:[#allocation2] sm:$0xff] 0.0
          %364 = vst [vmem:[#allocation2 + $0x8] sm:$0xff] 0.0
          %365 = vst [vmem:[#allocation2 + $0x10] sm:$0xff] 0.0
          %366 = vst [vmem:[#allocation2 + $0x18] sm:$0xff] 0.0
          %367 = vst [vmem:[#allocation2 + $0x20] sm:$0xff] 0.0
          %368 = vst [vmem:[#allocation2 + $0x28] sm:$0xff] 0.0
          %369 = vst [vmem:[#allocation2 + $0x30] sm:$0xff] 0.0
          %370 = vst [vmem:[#allocation2 + $0x38] sm:$0xff] 0.0
          %371 = vst [vmem:[#allocation2 + $0x40] sm:$0xff] 0.0
          %372 = vst [vmem:[#allocation2 + $0x48] sm:$0xff] 0.0
          %373 = vst [vmem:[#allocation2 + $0x50] sm:$0xff] 0.0
          %374 = vst [vmem:[#allocation2 + $0x58] sm:$0xff] 0.0
          %375 = vst [vmem:[#allocation2 + $0x60] sm:$0xff] 0.0
          %376 = vst [vmem:[#allocation2 + $0x68] sm:$0xff] 0.0
          %377 = vst [vmem:[#allocation2 + $0x70] sm:$0xff] 0.0
          %378 = vst [vmem:[#allocation2 + $0x78] sm:$0xff] 0.0
          %379 = vst [vmem:[#allocation2 + $0x80] sm:$0xff] 0.0
          %380 = vst [vmem:[#allocation2 + $0x88] sm:$0xff] 0.0
          %381 = vst [vmem:[#allocation2 + $0x90] sm:$0xff] 0.0
          %382 = vst [vmem:[#allocation2 + $0x98] sm:$0xff] 0.0
          %383 = vst [vmem:[#allocation2 + $0xa0] sm:$0xff] 0.0
          %384 = vst [vmem:[#allocation2 + $0xa8] sm:$0xff] 0.0
          %385 = vst [vmem:[#allocation2 + $0xb0] sm:$0xff] 0.0
          %386 = vst [vmem:[#allocation2 + $0xb8] sm:$0xff] 0.0
          %387 = vst [vmem:[#allocation2 + $0xc0] sm:$0xff] 0.0
          %388 = vst [vmem:[#allocation2 + $0xc8] sm:$0xff] 0.0
          %389 = vst [vmem:[#allocation2 + $0xd0] sm:$0xff] 0.0
          %390 = vst [vmem:[#allocation2 + $0xd8] sm:$0xff] 0.0
          %391 = vst [vmem:[#allocation2 + $0xe0] sm:$0xff] 0.0
          %392 = vst [vmem:[#allocation2 + $0xe8] sm:$0xff] 0.0
          %393 = vst [vmem:[#allocation2 + $0xf0] sm:$0xff] 0.0
          %394 = vst [vmem:[#allocation2 + $0xf8] sm:$0xff] 0.0
          %395 = vst [vmem:[#allocation2 + $0x100] sm:$0xff] 0.0
          %396 = vst [vmem:[#allocation2 + $0x108] sm:$0xff] 0.0
          %397 = vst [vmem:[#allocation2 + $0x110] sm:$0xff] 0.0
          %398 = vst [vmem:[#allocation2 + $0x118] sm:$0xff] 0.0
          %399 = vst [vmem:[#allocation2 + $0x120] sm:$0xff] 0.0
          %400 = vst [vmem:[#allocation2 + $0x128] sm:$0xff] 0.0
          %401 = vst [vmem:[#allocation2 + $0x130] sm:$0xff] 0.0
          %402 = vst [vmem:[#allocation2 + $0x138] sm:$0xff] 0.0
          %403 = vst [vmem:[#allocation2 + $0x140] sm:$0xff] 0.0
          %404 = vst [vmem:[#allocation2 + $0x148] sm:$0xff] 0.0
          %405 = vst [vmem:[#allocation2 + $0x150] sm:$0xff] 0.0
          %406 = vst [vmem:[#allocation2 + $0x158] sm:$0xff] 0.0
          %407 = vst [vmem:[#allocation2 + $0x160] sm:$0xff] 0.0
          %408 = vst [vmem:[#allocation2 + $0x168] sm:$0xff] 0.0
          %409 = vst [vmem:[#allocation2 + $0x170] sm:$0xff] 0.0
          %410 = vst [vmem:[#allocation2 + $0x178] sm:$0xff] 0.0
          %411 = vst [vmem:[#allocation2 + $0x180] sm:$0xff] 0.0
          %412 = vst [vmem:[#allocation2 + $0x188] sm:$0xff] 0.0
          %413 = vst [vmem:[#allocation2 + $0x190] sm:$0xff] 0.0
          %414 = vst [vmem:[#allocation2 + $0x198] sm:$0xff] 0.0
          %415 = vst [vmem:[#allocation2 + $0x1a0] sm:$0xff] 0.0
          %416 = vst [vmem:[#allocation2 + $0x1a8] sm:$0xff] 0.0
          %417 = vst [vmem:[#allocation2 + $0x1b0] sm:$0xff] 0.0
          %418 = vst [vmem:[#allocation2 + $0x1b8] sm:$0xff] 0.0
          %419 = vst [vmem:[#allocation2 + $0x1c0] sm:$0xff] 0.0
          %420 = vst [vmem:[#allocation2 + $0x1c8] sm:$0xff] 0.0
          %421 = vst [vmem:[#allocation2 + $0x1d0] sm:$0xff] 0.0
          %422 = vst [vmem:[#allocation2 + $0x1d8] sm:$0xff] 0.0
          %423 = vst [vmem:[#allocation2 + $0x1e0] sm:$0xff] 0.0
          %424 = vst [vmem:[#allocation2 + $0x1e8] sm:$0xff] 0.0
          %425 = vst [vmem:[#allocation2 + $0x1f0] sm:$0xff] 0.0
          %426 = vst [vmem:[#allocation2 + $0x1f8] sm:$0xff] 0.0
          %427 = vst [vmem:[#allocation2 + $0x200] sm:$0xff] 0.0
          %428 = vst [vmem:[#allocation2 + $0x208] sm:$0xff] 0.0
          %429 = vst [vmem:[#allocation2 + $0x210] sm:$0xff] 0.0
          %430 = vst [vmem:[#allocation2 + $0x218] sm:$0xff] 0.0
          %431 = vst [vmem:[#allocation2 + $0x220] sm:$0xff] 0.0
          %432 = vst [vmem:[#allocation2 + $0x228] sm:$0xff] 0.0
          %433 = vst [vmem:[#allocation2 + $0x230] sm:$0xff] 0.0
          %434 = vst [vmem:[#allocation2 + $0x238] sm:$0xff] 0.0
          %435 = vst [vmem:[#allocation2 + $0x240] sm:$0xff] 0.0
          %436 = vst [vmem:[#allocation2 + $0x248] sm:$0xff] 0.0
          %437 = vst [vmem:[#allocation2 + $0x250] sm:$0xff] 0.0
          %438 = vst [vmem:[#allocation2 + $0x258] sm:$0xff] 0.0
          %439 = vst [vmem:[#allocation2 + $0x260] sm:$0xff] 0.0
          %440 = vst [vmem:[#allocation2 + $0x268] sm:$0xff] 0.0
          %441 = vst [vmem:[#allocation2 + $0x270] sm:$0xff] 0.0
          %442 = vst [vmem:[#allocation2 + $0x278] sm:$0xff] 0.0
          %443 = vst [vmem:[#allocation2 + $0x280] sm:$0xff] 0.0
          %444 = vst [vmem:[#allocation2 + $0x288] sm:$0xff] 0.0
          %445 = vst [vmem:[#allocation2 + $0x290] sm:$0xff] 0.0
          %446 = vst [vmem:[#allocation2 + $0x298] sm:$0xff] 0.0
          %447 = vst [vmem:[#allocation2 + $0x2a0] sm:$0xff] 0.0
          %448 = vst [vmem:[#allocation2 + $0x2a8] sm:$0xff] 0.0
          %449 = vst [vmem:[#allocation2 + $0x2b0] sm:$0xff] 0.0
          %450 = vst [vmem:[#allocation2 + $0x2b8] sm:$0xff] 0.0
          %451 = vst [vmem:[#allocation2 + $0x2c0] sm:$0xff] 0.0
          %452 = vst [vmem:[#allocation2 + $0x2c8] sm:$0xff] 0.0
          %453 = vst [vmem:[#allocation2 + $0x2d0] sm:$0xff] 0.0
          %454 = vst [vmem:[#allocation2 + $0x2d8] sm:$0xff] 0.0
          %455 = vst [vmem:[#allocation2 + $0x2e0] sm:$0xff] 0.0
          %456 = vst [vmem:[#allocation2 + $0x2e8] sm:$0xff] 0.0
          %457 = vst [vmem:[#allocation2 + $0x2f0] sm:$0xff] 0.0
          %458 = vst [vmem:[#allocation2 + $0x2f8] sm:$0xff] 0.0
          %459 = vst [vmem:[#allocation2 + $0x300] sm:$0xff] 0.0
          %460 = vst [vmem:[#allocation2 + $0x308] sm:$0xff] 0.0
          %461 = vst [vmem:[#allocation2 + $0x310] sm:$0xff] 0.0
          %462 = vst [vmem:[#allocation2 + $0x318] sm:$0xff] 0.0
          %463 = vst [vmem:[#allocation2 + $0x320] sm:$0xff] 0.0
          %464 = vst [vmem:[#allocation2 + $0x328] sm:$0xff] 0.0
          %465 = vst [vmem:[#allocation2 + $0x330] sm:$0xff] 0.0
          %466 = vst [vmem:[#allocation2 + $0x338] sm:$0xff] 0.0
          %467 = vst [vmem:[#allocation2 + $0x340] sm:$0xff] 0.0
          %468 = vst [vmem:[#allocation2 + $0x348] sm:$0xff] 0.0
          %469 = vst [vmem:[#allocation2 + $0x350] sm:$0xff] 0.0
          %470 = vst [vmem:[#allocation2 + $0x358] sm:$0xff] 0.0
          %471 = vst [vmem:[#allocation2 + $0x360] sm:$0xff] 0.0
          %472 = vst [vmem:[#allocation2 + $0x368] sm:$0xff] 0.0
          %473 = vst [vmem:[#allocation2 + $0x370] sm:$0xff] 0.0
          %474 = vst [vmem:[#allocation2 + $0x378] sm:$0xff] 0.0
          %475 = vst [vmem:[#allocation2 + $0x380] sm:$0xff] 0.0
          %476 = vst [vmem:[#allocation2 + $0x388] sm:$0xff] 0.0
          %477 = vst [vmem:[#allocation2 + $0x390] sm:$0xff] 0.0
          %478 = vst [vmem:[#allocation2 + $0x398] sm:$0xff] 0.0
          %479 = vst [vmem:[#allocation2 + $0x3a0] sm:$0xff] 0.0
          %480 = vst [vmem:[#allocation2 + $0x3a8] sm:$0xff] 0.0
          %481 = vst [vmem:[#allocation2 + $0x3b0] sm:$0xff] 0.0
          %482 = vst [vmem:[#allocation2 + $0x3b8] sm:$0xff] 0.0
          %483 = vst [vmem:[#allocation2 + $0x3c0] sm:$0xff] 0.0
          %484 = vst [vmem:[#allocation2 + $0x3c8] sm:$0xff] 0.0
          %485 = vst [vmem:[#allocation2 + $0x3d0] sm:$0xff] 0.0
          %486 = vst [vmem:[#allocation2 + $0x3d8] sm:$0xff] 0.0
          %487 = vst [vmem:[#allocation2 + $0x3e0] sm:$0xff] 0.0
          %488 = vst [vmem:[#allocation2 + $0x3e8] sm:$0xff] 0.0
          %489 = vst [vmem:[#allocation2 + $0x3f0] sm:$0xff] 0.0
          %490 = vst [vmem:[#allocation2 + $0x3f8] sm:$0xff] 0.0
        $region36: #{tpu_custom_call.1} parent=27 // pred_fallthru
          _
        %v491 = vld [vmem:[%s250] sm:$0xf]
        %v492 = vld [vmem:[%s306] sm:$0x1]
        %s493 = smul.u32 %s331, 256
        %v494 = vlaneseq
        %v495 = vshrl.u32 %v494, 7
        %v496 = vadd.s32 %v495, 8
        %v497 = vadd.s32 %v495, 16
        %v498 = vadd.s32 %v495, 24
        %v499 = vadd.s32 %v495, 32
        %v500 = vadd.s32 %v495, 40
        %v501 = vadd.s32 %v495, 48
        %v502 = vadd.s32 %v495, 56
        %v503 = vadd.s32 %v495, 64
        %v504 = vadd.s32 %v495, 72
        %v505 = vadd.s32 %v495, 80
        %v506 = vadd.s32 %v495, 88
        %v507 = vadd.s32 %v495, 96
        %v508 = vadd.s32 %v495, 104
        %v509 = vadd.s32 %v495, 112
        %v510 = vadd.s32 %v495, 120
        %v511 = vadd.s32 %v495, 128
        %v512 = vadd.s32 %v495, 136
        %v513 = vadd.s32 %v495, 144
        %v514 = vadd.s32 %v495, 152
        %v515 = vadd.s32 %v495, 160
        %v516 = vadd.s32 %v495, 168
        %v517 = vadd.s32 %v495, 176
        %v518 = vadd.s32 %v495, 184
        %v519 = vadd.s32 %v495, 192
        %v520 = vadd.s32 %v495, 200
        %v521 = vadd.s32 %v495, 208
        %v522 = vadd.s32 %v495, 216
        %v523 = vadd.s32 %v495, 224
        %v524 = vadd.s32 %v495, 232
        %v525 = vadd.s32 %v495, 240
        %v526 = vadd.s32 %v495, 248
        %v527 = vstv %s493
        %v528 = vadd.s32 %v527, %v495
        %v529 = vadd.s32 %v527, %v496
        %v530 = vadd.s32 %v527, %v497
        %v531 = vadd.s32 %v527, %v498
        %v532 = vadd.s32 %v527, %v499
        %v533 = vadd.s32 %v527, %v500
        %v534 = vadd.s32 %v527, %v501
        %v535 = vadd.s32 %v527, %v502
        %v536 = vadd.s32 %v527, %v503
        %v537 = vadd.s32 %v527, %v504
        %v538 = vadd.s32 %v527, %v505
        %v539 = vadd.s32 %v527, %v506
        %v540 = vadd.s32 %v527, %v507
        %v541 = vadd.s32 %v527, %v508
        %v542 = vadd.s32 %v527, %v509
        %v543 = vadd.s32 %v527, %v510
        %v544 = vadd.s32 %v527, %v511
        %v545 = vadd.s32 %v527, %v512
        %v546 = vadd.s32 %v527, %v513
        %v547 = vadd.s32 %v527, %v514
        %v548 = vadd.s32 %v527, %v515
        %v549 = vadd.s32 %v527, %v516
        %v550 = vadd.s32 %v527, %v517
        %v551 = vadd.s32 %v527, %v518
        %v552 = vadd.s32 %v527, %v519
        %v553 = vadd.s32 %v527, %v520
        %v554 = vadd.s32 %v527, %v521
        %v555 = vadd.s32 %v527, %v522
        %v556 = vadd.s32 %v527, %v523
        %v557 = vadd.s32 %v527, %v524
        %v558 = vadd.s32 %v527, %v525
        %v559 = vadd.s32 %v527, %v526
        %v560 = vlaneseq
        %v561 = vshrl.u32 %v560, 7
        %v562 = vsub.s32 0, %v561
        %v563 = vrot.slane %v492, %v562
        %vm564 = vcmp.eq.s32.totalorder %v563, %v528
        %vm565 = vcmp.eq.s32.totalorder %v563, %v529
        %vm566 = vcmp.eq.s32.totalorder %v563, %v530
        %vm567 = vcmp.eq.s32.totalorder %v563, %v531
        %vm568 = vcmp.eq.s32.totalorder %v563, %v532
        %vm569 = vcmp.eq.s32.totalorder %v563, %v533
        %vm570 = vcmp.eq.s32.totalorder %v563, %v534
        %vm571 = vcmp.eq.s32.totalorder %v563, %v535
        %vm572 = vcmp.eq.s32.totalorder %v563, %v536
        %vm573 = vcmp.eq.s32.totalorder %v563, %v537
        %vm574 = vcmp.eq.s32.totalorder %v563, %v538
        %vm575 = vcmp.eq.s32.totalorder %v563, %v539
        %vm576 = vcmp.eq.s32.totalorder %v563, %v540
        %vm577 = vcmp.eq.s32.totalorder %v563, %v541
        %vm578 = vcmp.eq.s32.totalorder %v563, %v542
        %vm579 = vcmp.eq.s32.totalorder %v563, %v543
        %vm580 = vcmp.eq.s32.totalorder %v563, %v544
        %vm581 = vcmp.eq.s32.totalorder %v563, %v545
        %vm582 = vcmp.eq.s32.totalorder %v563, %v546
        %vm583 = vcmp.eq.s32.totalorder %v563, %v547
        %vm584 = vcmp.eq.s32.totalorder %v563, %v548
        %vm585 = vcmp.eq.s32.totalorder %v563, %v549
        %vm586 = vcmp.eq.s32.totalorder %v563, %v550
        %vm587 = vcmp.eq.s32.totalorder %v563, %v551
        %vm588 = vcmp.eq.s32.totalorder %v563, %v552
        %vm589 = vcmp.eq.s32.totalorder %v563, %v553
        %vm590 = vcmp.eq.s32.totalorder %v563, %v554
        %vm591 = vcmp.eq.s32.totalorder %v563, %v555
        %vm592 = vcmp.eq.s32.totalorder %v563, %v556
        %vm593 = vcmp.eq.s32.totalorder %v563, %v557
        %vm594 = vcmp.eq.s32.totalorder %v563, %v558
        %vm595 = vcmp.eq.s32.totalorder %v563, %v559
        %v598 = vunpack.c.l.s4 1966171168
        %v599 = vunpack.c.0.s8 %v598
        %v600 = vlaneseq
        %v601 = vshrl.u32 %v600, 7
        %v602 = vsub.s32 %v599, %v601
        %v603 = vrot.slane %v491, %v602
        %v604 = vcombine.high %v603, %v603
        %v606 = vunpack.c.l.s4 1966171168
        %v607 = vunpack.c.0.s8 %v606
        %v608 = vlaneseq
        %v609 = vshrl.u32 %v608, 7
        %v610 = vsub.s32 %v607, %v609
        %v611 = vrot.slane %v603, %v610
        %v613 = vunpack.c.l.s4 1966171168
        %v614 = vunpack.c.0.s8 %v613
        %v615 = vlaneseq
        %v616 = vshrl.u32 %v615, 7
        %v617 = vsub.s32 %v614, %v616
        %v618 = vrot.slane %v604, %v617
        %v619 = vcombine.high %v611, %v611
        %v620 = vcombine.high %v618, %v618
        %v621 = vsel %vm564, 1, 0
        %v622 = vsel %vm565, 1, 0
        %v623 = vsel %vm566, 1, 0
        %v624 = vsel %vm567, 1, 0
        %v625 = vsel %vm568, 1, 0
        %v626 = vsel %vm569, 1, 0
        %v627 = vsel %vm570, 1, 0
        %v628 = vsel %vm571, 1, 0
        %v629 = vsel %vm572, 1, 0
        %v630 = vsel %vm573, 1, 0
        %v631 = vsel %vm574, 1, 0
        %v632 = vsel %vm575, 1, 0
        %v633 = vsel %vm576, 1, 0
        %v634 = vsel %vm577, 1, 0
        %v635 = vsel %vm578, 1, 0
        %v636 = vsel %vm579, 1, 0
        %v637 = vsel %vm580, 1, 0
        %v638 = vsel %vm581, 1, 0
        %v639 = vsel %vm582, 1, 0
        %v640 = vsel %vm583, 1, 0
        %v641 = vsel %vm584, 1, 0
        %v642 = vsel %vm585, 1, 0
        %v643 = vsel %vm586, 1, 0
        %v644 = vsel %vm587, 1, 0
        %v645 = vsel %vm588, 1, 0
        %v646 = vsel %vm589, 1, 0
        %v647 = vsel %vm590, 1, 0
        %v648 = vsel %vm591, 1, 0
        %v649 = vsel %vm592, 1, 0
        %v650 = vsel %vm593, 1, 0
        %v651 = vsel %vm594, 1, 0
        %v652 = vsel %vm595, 1, 0
        %vm653 = vcmp.eq.s32.totalorder %v621, 1
        %vm654 = vcmp.eq.s32.totalorder %v622, 1
        %vm655 = vcmp.eq.s32.totalorder %v623, 1
        %vm656 = vcmp.eq.s32.totalorder %v624, 1
        %vm657 = vcmp.eq.s32.totalorder %v625, 1
        %vm658 = vcmp.eq.s32.totalorder %v626, 1
        %vm659 = vcmp.eq.s32.totalorder %v627, 1
        %vm660 = vcmp.eq.s32.totalorder %v628, 1
        %vm661 = vcmp.eq.s32.totalorder %v629, 1
        %vm662 = vcmp.eq.s32.totalorder %v630, 1
        %vm663 = vcmp.eq.s32.totalorder %v631, 1
        %vm664 = vcmp.eq.s32.totalorder %v632, 1
        %vm665 = vcmp.eq.s32.totalorder %v633, 1
        %vm666 = vcmp.eq.s32.totalorder %v634, 1
        %vm667 = vcmp.eq.s32.totalorder %v635, 1
        %vm668 = vcmp.eq.s32.totalorder %v636, 1
        %vm669 = vcmp.eq.s32.totalorder %v637, 1
        %vm670 = vcmp.eq.s32.totalorder %v638, 1
        %vm671 = vcmp.eq.s32.totalorder %v639, 1
        %vm672 = vcmp.eq.s32.totalorder %v640, 1
        %vm673 = vcmp.eq.s32.totalorder %v641, 1
        %vm674 = vcmp.eq.s32.totalorder %v642, 1
        %vm675 = vcmp.eq.s32.totalorder %v643, 1
        %vm676 = vcmp.eq.s32.totalorder %v644, 1
        %vm677 = vcmp.eq.s32.totalorder %v645, 1
        %vm678 = vcmp.eq.s32.totalorder %v646, 1
        %vm679 = vcmp.eq.s32.totalorder %v647, 1
        %vm680 = vcmp.eq.s32.totalorder %v648, 1
        %vm681 = vcmp.eq.s32.totalorder %v649, 1
        %vm682 = vcmp.eq.s32.totalorder %v650, 1
        %vm683 = vcmp.eq.s32.totalorder %v651, 1
        %vm684 = vcmp.eq.s32.totalorder %v652, 1
        %v685 = vlaneseq
        %v686 = vshrl.u32 %v685, 7
        %v687 = vsub.s32 0, %v686
        %v688 = vrot.slane %v611, %v687
        %v689 = vlaneseq
        %v690 = vshrl.u32 %v689, 7
        %v691 = vsub.s32 0, %v690
        %v692 = vrot.slane %v618, %v691
        %v693 = vlaneseq
        %v694 = vshrl.u32 %v693, 7
        %v695 = vsub.s32 0, %v694
        %v696 = vrot.slane %v619, %v695
        %v697 = vlaneseq
        %v698 = vshrl.u32 %v697, 7
        %v699 = vsub.s32 0, %v698
        %v700 = vrot.slane %v620, %v699
        %v705 = vsel %vm653, %v688, 0.0
        %v706 = vsel %vm654, %v688, 0.0
        %v707 = vsel %vm655, %v688, 0.0
        %v708 = vsel %vm656, %v688, 0.0
        %v709 = vsel %vm657, %v688, 0.0
        %v710 = vsel %vm658, %v688, 0.0
        %v711 = vsel %vm659, %v688, 0.0
        %v712 = vsel %vm660, %v688, 0.0
        %v713 = vsel %vm661, %v688, 0.0
        %v714 = vsel %vm662, %v688, 0.0
        %v715 = vsel %vm663, %v688, 0.0
        %v716 = vsel %vm664, %v688, 0.0
        %v717 = vsel %vm665, %v688, 0.0
        %v718 = vsel %vm666, %v688, 0.0
        %v719 = vsel %vm667, %v688, 0.0
        %v720 = vsel %vm668, %v688, 0.0
        %v721 = vsel %vm669, %v688, 0.0
        %v722 = vsel %vm670, %v688, 0.0
        %v723 = vsel %vm671, %v688, 0.0
        %v724 = vsel %vm672, %v688, 0.0
        %v725 = vsel %vm673, %v688, 0.0
        %v726 = vsel %vm674, %v688, 0.0
        %v727 = vsel %vm675, %v688, 0.0
        %v728 = vsel %vm676, %v688, 0.0
        %v729 = vsel %vm677, %v688, 0.0
        %v730 = vsel %vm678, %v688, 0.0
        %v731 = vsel %vm679, %v688, 0.0
        %v732 = vsel %vm680, %v688, 0.0
        %v733 = vsel %vm681, %v688, 0.0
        %v734 = vsel %vm682, %v688, 0.0
        %v735 = vsel %vm683, %v688, 0.0
        %v736 = vsel %vm684, %v688, 0.0
        %v737 = vsel %vm653, %v692, 0.0
        %v738 = vsel %vm654, %v692, 0.0
        %v739 = vsel %vm655, %v692, 0.0
        %v740 = vsel %vm656, %v692, 0.0
        %v741 = vsel %vm657, %v692, 0.0
        %v742 = vsel %vm658, %v692, 0.0
        %v743 = vsel %vm659, %v692, 0.0
        %v744 = vsel %vm660, %v692, 0.0
        %v745 = vsel %vm661, %v692, 0.0
        %v746 = vsel %vm662, %v692, 0.0
        %v747 = vsel %vm663, %v692, 0.0
        %v748 = vsel %vm664, %v692, 0.0
        %v749 = vsel %vm665, %v692, 0.0
        %v750 = vsel %vm666, %v692, 0.0
        %v751 = vsel %vm667, %v692, 0.0
        %v752 = vsel %vm668, %v692, 0.0
        %v753 = vsel %vm669, %v692, 0.0
        %v754 = vsel %vm670, %v692, 0.0
        %v755 = vsel %vm671, %v692, 0.0
        %v756 = vsel %vm672, %v692, 0.0
        %v757 = vsel %vm673, %v692, 0.0
        %v758 = vsel %vm674, %v692, 0.0
        %v759 = vsel %vm675, %v692, 0.0
        %v760 = vsel %vm676, %v692, 0.0
        %v761 = vsel %vm677, %v692, 0.0
        %v762 = vsel %vm678, %v692, 0.0
        %v763 = vsel %vm679, %v692, 0.0
        %v764 = vsel %vm680, %v692, 0.0
        %v765 = vsel %vm681, %v692, 0.0
        %v766 = vsel %vm682, %v692, 0.0
        %v767 = vsel %vm683, %v692, 0.0
        %v768 = vsel %vm684, %v692, 0.0
        %v769 = vsel %vm653, %v696, 0.0
        %v770 = vsel %vm654, %v696, 0.0
        %v771 = vsel %vm655, %v696, 0.0
        %v772 = vsel %vm656, %v696, 0.0
        %v773 = vsel %vm657, %v696, 0.0
        %v774 = vsel %vm658, %v696, 0.0
        %v775 = vsel %vm659, %v696, 0.0
        %v776 = vsel %vm660, %v696, 0.0
        %v777 = vsel %vm661, %v696, 0.0
        %v778 = vsel %vm662, %v696, 0.0
        %v779 = vsel %vm663, %v696, 0.0
        %v780 = vsel %vm664, %v696, 0.0
        %v781 = vsel %vm665, %v696, 0.0
        %v782 = vsel %vm666, %v696, 0.0
        %v783 = vsel %vm667, %v696, 0.0
        %v784 = vsel %vm668, %v696, 0.0
        %v785 = vsel %vm669, %v696, 0.0
        %v786 = vsel %vm670, %v696, 0.0
        %v787 = vsel %vm671, %v696, 0.0
        %v788 = vsel %vm672, %v696, 0.0
        %v789 = vsel %vm673, %v696, 0.0
        %v790 = vsel %vm674, %v696, 0.0
        %v791 = vsel %vm675, %v696, 0.0
        %v792 = vsel %vm676, %v696, 0.0
        %v793 = vsel %vm677, %v696, 0.0
        %v794 = vsel %vm678, %v696, 0.0
        %v795 = vsel %vm679, %v696, 0.0
        %v796 = vsel %vm680, %v696, 0.0
        %v797 = vsel %vm681, %v696, 0.0
        %v798 = vsel %vm682, %v696, 0.0
        %v799 = vsel %vm683, %v696, 0.0
        %v800 = vsel %vm684, %v696, 0.0
        %v801 = vsel %vm653, %v700, 0.0
        %v802 = vsel %vm654, %v700, 0.0
        %v803 = vsel %vm655, %v700, 0.0
        %v804 = vsel %vm656, %v700, 0.0
        %v805 = vsel %vm657, %v700, 0.0
        %v806 = vsel %vm658, %v700, 0.0
        %v807 = vsel %vm659, %v700, 0.0
        %v808 = vsel %vm660, %v700, 0.0
        %v809 = vsel %vm661, %v700, 0.0
        %v810 = vsel %vm662, %v700, 0.0
        %v811 = vsel %vm663, %v700, 0.0
        %v812 = vsel %vm664, %v700, 0.0
        %v813 = vsel %vm665, %v700, 0.0
        %v814 = vsel %vm666, %v700, 0.0
        %v815 = vsel %vm667, %v700, 0.0
        %v816 = vsel %vm668, %v700, 0.0
        %v817 = vsel %vm669, %v700, 0.0
        %v818 = vsel %vm670, %v700, 0.0
        %v819 = vsel %vm671, %v700, 0.0
        %v820 = vsel %vm672, %v700, 0.0
        %v821 = vsel %vm673, %v700, 0.0
        %v822 = vsel %vm674, %v700, 0.0
        %v823 = vsel %vm675, %v700, 0.0
        %v824 = vsel %vm676, %v700, 0.0
        %v825 = vsel %vm677, %v700, 0.0
        %v826 = vsel %vm678, %v700, 0.0
        %v827 = vsel %vm679, %v700, 0.0
        %v828 = vsel %vm680, %v700, 0.0
        %v829 = vsel %vm681, %v700, 0.0
        %v830 = vsel %vm682, %v700, 0.0
        %v831 = vsel %vm683, %v700, 0.0
        %v832 = vsel %vm684, %v700, 0.0
        %v833 = vld [vmem:[#allocation2] sm:$0xff]
        %v834 = vld [vmem:[#allocation2 + $0x8] sm:$0xff]
        %v835 = vld [vmem:[#allocation2 + $0x10] sm:$0xff]
        %v836 = vld [vmem:[#allocation2 + $0x18] sm:$0xff]
        %v837 = vld [vmem:[#allocation2 + $0x20] sm:$0xff]
        %v838 = vld [vmem:[#allocation2 + $0x28] sm:$0xff]
        %v839 = vld [vmem:[#allocation2 + $0x30] sm:$0xff]
        %v840 = vld [vmem:[#allocation2 + $0x38] sm:$0xff]
        %v841 = vld [vmem:[#allocation2 + $0x40] sm:$0xff]
        %v842 = vld [vmem:[#allocation2 + $0x48] sm:$0xff]
        %v843 = vld [vmem:[#allocation2 + $0x50] sm:$0xff]
        %v844 = vld [vmem:[#allocation2 + $0x58] sm:$0xff]
        %v845 = vld [vmem:[#allocation2 + $0x60] sm:$0xff]
        %v846 = vld [vmem:[#allocation2 + $0x68] sm:$0xff]
        %v847 = vld [vmem:[#allocation2 + $0x70] sm:$0xff]
        %v848 = vld [vmem:[#allocation2 + $0x78] sm:$0xff]
        %v849 = vld [vmem:[#allocation2 + $0x80] sm:$0xff]
        %v850 = vld [vmem:[#allocation2 + $0x88] sm:$0xff]
        %v851 = vld [vmem:[#allocation2 + $0x90] sm:$0xff]
        %v852 = vld [vmem:[#allocation2 + $0x98] sm:$0xff]
        %v853 = vld [vmem:[#allocation2 + $0xa0] sm:$0xff]
        %v854 = vld [vmem:[#allocation2 + $0xa8] sm:$0xff]
        %v855 = vld [vmem:[#allocation2 + $0xb0] sm:$0xff]
        %v856 = vld [vmem:[#allocation2 + $0xb8] sm:$0xff]
        %v857 = vld [vmem:[#allocation2 + $0xc0] sm:$0xff]
        %v858 = vld [vmem:[#allocation2 + $0xc8] sm:$0xff]
        %v859 = vld [vmem:[#allocation2 + $0xd0] sm:$0xff]
        %v860 = vld [vmem:[#allocation2 + $0xd8] sm:$0xff]
        %v861 = vld [vmem:[#allocation2 + $0xe0] sm:$0xff]
        %v862 = vld [vmem:[#allocation2 + $0xe8] sm:$0xff]
        %v863 = vld [vmem:[#allocation2 + $0xf0] sm:$0xff]
        %v864 = vld [vmem:[#allocation2 + $0xf8] sm:$0xff]
        %v865 = vld [vmem:[#allocation2 + $0x100] sm:$0xff]
        %v866 = vld [vmem:[#allocation2 + $0x108] sm:$0xff]
        %v867 = vld [vmem:[#allocation2 + $0x110] sm:$0xff]
        %v868 = vld [vmem:[#allocation2 + $0x118] sm:$0xff]
        %v869 = vld [vmem:[#allocation2 + $0x120] sm:$0xff]
        %v870 = vld [vmem:[#allocation2 + $0x128] sm:$0xff]
        %v871 = vld [vmem:[#allocation2 + $0x130] sm:$0xff]
        %v872 = vld [vmem:[#allocation2 + $0x138] sm:$0xff]
        %v873 = vld [vmem:[#allocation2 + $0x140] sm:$0xff]
        %v874 = vld [vmem:[#allocation2 + $0x148] sm:$0xff]
        %v875 = vld [vmem:[#allocation2 + $0x150] sm:$0xff]
        %v876 = vld [vmem:[#allocation2 + $0x158] sm:$0xff]
        %v877 = vld [vmem:[#allocation2 + $0x160] sm:$0xff]
        %v878 = vld [vmem:[#allocation2 + $0x168] sm:$0xff]
        %v879 = vld [vmem:[#allocation2 + $0x170] sm:$0xff]
        %v880 = vld [vmem:[#allocation2 + $0x178] sm:$0xff]
        %v881 = vld [vmem:[#allocation2 + $0x180] sm:$0xff]
        %v882 = vld [vmem:[#allocation2 + $0x188] sm:$0xff]
        %v883 = vld [vmem:[#allocation2 + $0x190] sm:$0xff]
        %v884 = vld [vmem:[#allocation2 + $0x198] sm:$0xff]
        %v885 = vld [vmem:[#allocation2 + $0x1a0] sm:$0xff]
        %v886 = vld [vmem:[#allocation2 + $0x1a8] sm:$0xff]
        %v887 = vld [vmem:[#allocation2 + $0x1b0] sm:$0xff]
        %v888 = vld [vmem:[#allocation2 + $0x1b8] sm:$0xff]
        %v889 = vld [vmem:[#allocation2 + $0x1c0] sm:$0xff]
        %v890 = vld [vmem:[#allocation2 + $0x1c8] sm:$0xff]
        %v891 = vld [vmem:[#allocation2 + $0x1d0] sm:$0xff]
        %v892 = vld [vmem:[#allocation2 + $0x1d8] sm:$0xff]
        %v893 = vld [vmem:[#allocation2 + $0x1e0] sm:$0xff]
        %v894 = vld [vmem:[#allocation2 + $0x1e8] sm:$0xff]
        %v895 = vld [vmem:[#allocation2 + $0x1f0] sm:$0xff]
        %v896 = vld [vmem:[#allocation2 + $0x1f8] sm:$0xff]
        %v897 = vld [vmem:[#allocation2 + $0x200] sm:$0xff]
        %v898 = vld [vmem:[#allocation2 + $0x208] sm:$0xff]
        %v899 = vld [vmem:[#allocation2 + $0x210] sm:$0xff]
        %v900 = vld [vmem:[#allocation2 + $0x218] sm:$0xff]
        %v901 = vld [vmem:[#allocation2 + $0x220] sm:$0xff]
        %v902 = vld [vmem:[#allocation2 + $0x228] sm:$0xff]
        %v903 = vld [vmem:[#allocation2 + $0x230] sm:$0xff]
        %v904 = vld [vmem:[#allocation2 + $0x238] sm:$0xff]
        %v905 = vld [vmem:[#allocation2 + $0x240] sm:$0xff]
        %v906 = vld [vmem:[#allocation2 + $0x248] sm:$0xff]
        %v907 = vld [vmem:[#allocation2 + $0x250] sm:$0xff]
        %v908 = vld [vmem:[#allocation2 + $0x258] sm:$0xff]
        %v909 = vld [vmem:[#allocation2 + $0x260] sm:$0xff]
        %v910 = vld [vmem:[#allocation2 + $0x268] sm:$0xff]
        %v911 = vld [vmem:[#allocation2 + $0x270] sm:$0xff]
        %v912 = vld [vmem:[#allocation2 + $0x278] sm:$0xff]
        %v913 = vld [vmem:[#allocation2 + $0x280] sm:$0xff]
        %v914 = vld [vmem:[#allocation2 + $0x288] sm:$0xff]
        %v915 = vld [vmem:[#allocation2 + $0x290] sm:$0xff]
        %v916 = vld [vmem:[#allocation2 + $0x298] sm:$0xff]
        %v917 = vld [vmem:[#allocation2 + $0x2a0] sm:$0xff]
        %v918 = vld [vmem:[#allocation2 + $0x2a8] sm:$0xff]
        %v919 = vld [vmem:[#allocation2 + $0x2b0] sm:$0xff]
        %v920 = vld [vmem:[#allocation2 + $0x2b8] sm:$0xff]
        %v921 = vld [vmem:[#allocation2 + $0x2c0] sm:$0xff]
        %v922 = vld [vmem:[#allocation2 + $0x2c8] sm:$0xff]
        %v923 = vld [vmem:[#allocation2 + $0x2d0] sm:$0xff]
        %v924 = vld [vmem:[#allocation2 + $0x2d8] sm:$0xff]
        %v925 = vld [vmem:[#allocation2 + $0x2e0] sm:$0xff]
        %v926 = vld [vmem:[#allocation2 + $0x2e8] sm:$0xff]
        %v927 = vld [vmem:[#allocation2 + $0x2f0] sm:$0xff]
        %v928 = vld [vmem:[#allocation2 + $0x2f8] sm:$0xff]
        %v929 = vld [vmem:[#allocation2 + $0x300] sm:$0xff]
        %v930 = vld [vmem:[#allocation2 + $0x308] sm:$0xff]
        %v931 = vld [vmem:[#allocation2 + $0x310] sm:$0xff]
        %v932 = vld [vmem:[#allocation2 + $0x318] sm:$0xff]
        %v933 = vld [vmem:[#allocation2 + $0x320] sm:$0xff]
        %v934 = vld [vmem:[#allocation2 + $0x328] sm:$0xff]
        %v935 = vld [vmem:[#allocation2 + $0x330] sm:$0xff]
        %v936 = vld [vmem:[#allocation2 + $0x338] sm:$0xff]
        %v937 = vld [vmem:[#allocation2 + $0x340] sm:$0xff]
        %v938 = vld [vmem:[#allocation2 + $0x348] sm:$0xff]
        %v939 = vld [vmem:[#allocation2 + $0x350] sm:$0xff]
        %v940 = vld [vmem:[#allocation2 + $0x358] sm:$0xff]
        %v941 = vld [vmem:[#allocation2 + $0x360] sm:$0xff]
        %v942 = vld [vmem:[#allocation2 + $0x368] sm:$0xff]
        %v943 = vld [vmem:[#allocation2 + $0x370] sm:$0xff]
        %v944 = vld [vmem:[#allocation2 + $0x378] sm:$0xff]
        %v945 = vld [vmem:[#allocation2 + $0x380] sm:$0xff]
        %v946 = vld [vmem:[#allocation2 + $0x388] sm:$0xff]
        %v947 = vld [vmem:[#allocation2 + $0x390] sm:$0xff]
        %v948 = vld [vmem:[#allocation2 + $0x398] sm:$0xff]
        %v949 = vld [vmem:[#allocation2 + $0x3a0] sm:$0xff]
        %v950 = vld [vmem:[#allocation2 + $0x3a8] sm:$0xff]
        %v951 = vld [vmem:[#allocation2 + $0x3b0] sm:$0xff]
        %v952 = vld [vmem:[#allocation2 + $0x3b8] sm:$0xff]
        %v953 = vld [vmem:[#allocation2 + $0x3c0] sm:$0xff]
        %v954 = vld [vmem:[#allocation2 + $0x3c8] sm:$0xff]
        %v955 = vld [vmem:[#allocation2 + $0x3d0] sm:$0xff]
        %v956 = vld [vmem:[#allocation2 + $0x3d8] sm:$0xff]
        %v957 = vld [vmem:[#allocation2 + $0x3e0] sm:$0xff]
        %v958 = vld [vmem:[#allocation2 + $0x3e8] sm:$0xff]
        %v959 = vld [vmem:[#allocation2 + $0x3f0] sm:$0xff]
        %v960 = vld [vmem:[#allocation2 + $0x3f8] sm:$0xff]
        %v961 = vmax.f32 %v833, %v705
        %v962 = vmax.f32 %v834, %v706
        %v963 = vmax.f32 %v835, %v707
        %v964 = vmax.f32 %v836, %v708
        %v965 = vmax.f32 %v837, %v709
        %v966 = vmax.f32 %v838, %v710
        %v967 = vmax.f32 %v839, %v711
        %v968 = vmax.f32 %v840, %v712
        %v969 = vmax.f32 %v841, %v713
        %v970 = vmax.f32 %v842, %v714
        %v971 = vmax.f32 %v843, %v715
        %v972 = vmax.f32 %v844, %v716
        %v973 = vmax.f32 %v845, %v717
        %v974 = vmax.f32 %v846, %v718
        %v975 = vmax.f32 %v847, %v719
        %v976 = vmax.f32 %v848, %v720
        %v977 = vmax.f32 %v849, %v721
        %v978 = vmax.f32 %v850, %v722
        %v979 = vmax.f32 %v851, %v723
        %v980 = vmax.f32 %v852, %v724
        %v981 = vmax.f32 %v853, %v725
        %v982 = vmax.f32 %v854, %v726
        %v983 = vmax.f32 %v855, %v727
        %v984 = vmax.f32 %v856, %v728
        %v985 = vmax.f32 %v857, %v729
        %v986 = vmax.f32 %v858, %v730
        %v987 = vmax.f32 %v859, %v731
        %v988 = vmax.f32 %v860, %v732
        %v989 = vmax.f32 %v861, %v733
        %v990 = vmax.f32 %v862, %v734
        %v991 = vmax.f32 %v863, %v735
        %v992 = vmax.f32 %v864, %v736
        %v993 = vmax.f32 %v865, %v737
        %v994 = vmax.f32 %v866, %v738
        %v995 = vmax.f32 %v867, %v739
        %v996 = vmax.f32 %v868, %v740
        %v997 = vmax.f32 %v869, %v741
        %v998 = vmax.f32 %v870, %v742
        %v999 = vmax.f32 %v871, %v743
        %v1000 = vmax.f32 %v872, %v744
        %v1001 = vmax.f32 %v873, %v745
        %v1002 = vmax.f32 %v874, %v746
        %v1003 = vmax.f32 %v875, %v747
        %v1004 = vmax.f32 %v876, %v748
        %v1005 = vmax.f32 %v877, %v749
        %v1006 = vmax.f32 %v878, %v750
        %v1007 = vmax.f32 %v879, %v751
        %v1008 = vmax.f32 %v880, %v752
        %v1009 = vmax.f32 %v881, %v753
        %v1010 = vmax.f32 %v882, %v754
        %v1011 = vmax.f32 %v883, %v755
        %v1012 = vmax.f32 %v884, %v756
        %v1013 = vmax.f32 %v885, %v757
        %v1014 = vmax.f32 %v886, %v758
        %v1015 = vmax.f32 %v887, %v759
        %v1016 = vmax.f32 %v888, %v760
        %v1017 = vmax.f32 %v889, %v761
        %v1018 = vmax.f32 %v890, %v762
        %v1019 = vmax.f32 %v891, %v763
        %v1020 = vmax.f32 %v892, %v764
        %v1021 = vmax.f32 %v893, %v765
        %v1022 = vmax.f32 %v894, %v766
        %v1023 = vmax.f32 %v895, %v767
        %v1024 = vmax.f32 %v896, %v768
        %v1025 = vmax.f32 %v897, %v769
        %v1026 = vmax.f32 %v898, %v770
        %v1027 = vmax.f32 %v899, %v771
        %v1028 = vmax.f32 %v900, %v772
        %v1029 = vmax.f32 %v901, %v773
        %v1030 = vmax.f32 %v902, %v774
        %v1031 = vmax.f32 %v903, %v775
        %v1032 = vmax.f32 %v904, %v776
        %v1033 = vmax.f32 %v905, %v777
        %v1034 = vmax.f32 %v906, %v778
        %v1035 = vmax.f32 %v907, %v779
        %v1036 = vmax.f32 %v908, %v780
        %v1037 = vmax.f32 %v909, %v781
        %v1038 = vmax.f32 %v910, %v782
        %v1039 = vmax.f32 %v911, %v783
        %v1040 = vmax.f32 %v912, %v784
        %v1041 = vmax.f32 %v913, %v785
        %v1042 = vmax.f32 %v914, %v786
        %v1043 = vmax.f32 %v915, %v787
        %v1044 = vmax.f32 %v916, %v788
        %v1045 = vmax.f32 %v917, %v789
        %v1046 = vmax.f32 %v918, %v790
        %v1047 = vmax.f32 %v919, %v791
        %v1048 = vmax.f32 %v920, %v792
        %v1049 = vmax.f32 %v921, %v793
        %v1050 = vmax.f32 %v922, %v794
        %v1051 = vmax.f32 %v923, %v795
        %v1052 = vmax.f32 %v924, %v796
        %v1053 = vmax.f32 %v925, %v797
        %v1054 = vmax.f32 %v926, %v798
        %v1055 = vmax.f32 %v927, %v799
        %v1056 = vmax.f32 %v928, %v800
        %v1057 = vmax.f32 %v929, %v801
        %v1058 = vmax.f32 %v930, %v802
        %v1059 = vmax.f32 %v931, %v803
        %v1060 = vmax.f32 %v932, %v804
        %v1061 = vmax.f32 %v933, %v805
        %v1062 = vmax.f32 %v934, %v806
        %v1063 = vmax.f32 %v935, %v807
        %v1064 = vmax.f32 %v936, %v808
        %v1065 = vmax.f32 %v937, %v809
        %v1066 = vmax.f32 %v938, %v810
        %v1067 = vmax.f32 %v939, %v811
        %v1068 = vmax.f32 %v940, %v812
        %v1069 = vmax.f32 %v941, %v813
        %v1070 = vmax.f32 %v942, %v814
        %v1071 = vmax.f32 %v943, %v815
        %v1072 = vmax.f32 %v944, %v816
        %v1073 = vmax.f32 %v945, %v817
        %v1074 = vmax.f32 %v946, %v818
        %v1075 = vmax.f32 %v947, %v819
        %v1076 = vmax.f32 %v948, %v820
        %v1077 = vmax.f32 %v949, %v821
        %v1078 = vmax.f32 %v950, %v822
        %v1079 = vmax.f32 %v951, %v823
        %v1080 = vmax.f32 %v952, %v824
        %v1081 = vmax.f32 %v953, %v825
        %v1082 = vmax.f32 %v954, %v826
        %v1083 = vmax.f32 %v955, %v827
        %v1084 = vmax.f32 %v956, %v828
        %v1085 = vmax.f32 %v957, %v829
        %v1086 = vmax.f32 %v958, %v830
        %v1087 = vmax.f32 %v959, %v831
        %v1088 = vmax.f32 %v960, %v832
        %1089 = vst [vmem:[#allocation2] sm:$0xff] %v961
        %1090 = vst [vmem:[#allocation2 + $0x8] sm:$0xff] %v962
        %1091 = vst [vmem:[#allocation2 + $0x10] sm:$0xff] %v963
        %1092 = vst [vmem:[#allocation2 + $0x18] sm:$0xff] %v964
        %1093 = vst [vmem:[#allocation2 + $0x20] sm:$0xff] %v965
        %1094 = vst [vmem:[#allocation2 + $0x28] sm:$0xff] %v966
        %1095 = vst [vmem:[#allocation2 + $0x30] sm:$0xff] %v967
        %1096 = vst [vmem:[#allocation2 + $0x38] sm:$0xff] %v968
        %1097 = vst [vmem:[#allocation2 + $0x40] sm:$0xff] %v969
        %1098 = vst [vmem:[#allocation2 + $0x48] sm:$0xff] %v970
        %1099 = vst [vmem:[#allocation2 + $0x50] sm:$0xff] %v971
        %1100 = vst [vmem:[#allocation2 + $0x58] sm:$0xff] %v972
        %1101 = vst [vmem:[#allocation2 + $0x60] sm:$0xff] %v973
        %1102 = vst [vmem:[#allocation2 + $0x68] sm:$0xff] %v974
        %1103 = vst [vmem:[#allocation2 + $0x70] sm:$0xff] %v975
        %1104 = vst [vmem:[#allocation2 + $0x78] sm:$0xff] %v976
        %1105 = vst [vmem:[#allocation2 + $0x80] sm:$0xff] %v977
        %1106 = vst [vmem:[#allocation2 + $0x88] sm:$0xff] %v978
        %1107 = vst [vmem:[#allocation2 + $0x90] sm:$0xff] %v979
        %1108 = vst [vmem:[#allocation2 + $0x98] sm:$0xff] %v980
        %1109 = vst [vmem:[#allocation2 + $0xa0] sm:$0xff] %v981
        %1110 = vst [vmem:[#allocation2 + $0xa8] sm:$0xff] %v982
        %1111 = vst [vmem:[#allocation2 + $0xb0] sm:$0xff] %v983
        %1112 = vst [vmem:[#allocation2 + $0xb8] sm:$0xff] %v984
        %1113 = vst [vmem:[#allocation2 + $0xc0] sm:$0xff] %v985
        %1114 = vst [vmem:[#allocation2 + $0xc8] sm:$0xff] %v986
        %1115 = vst [vmem:[#allocation2 + $0xd0] sm:$0xff] %v987
        %1116 = vst [vmem:[#allocation2 + $0xd8] sm:$0xff] %v988
        %1117 = vst [vmem:[#allocation2 + $0xe0] sm:$0xff] %v989
        %1118 = vst [vmem:[#allocation2 + $0xe8] sm:$0xff] %v990
        %1119 = vst [vmem:[#allocation2 + $0xf0] sm:$0xff] %v991
        %1120 = vst [vmem:[#allocation2 + $0xf8] sm:$0xff] %v992
        %1121 = vst [vmem:[#allocation2 + $0x100] sm:$0xff] %v993
        %1122 = vst [vmem:[#allocation2 + $0x108] sm:$0xff] %v994
        %1123 = vst [vmem:[#allocation2 + $0x110] sm:$0xff] %v995
        %1124 = vst [vmem:[#allocation2 + $0x118] sm:$0xff] %v996
        %1125 = vst [vmem:[#allocation2 + $0x120] sm:$0xff] %v997
        %1126 = vst [vmem:[#allocation2 + $0x128] sm:$0xff] %v998
        %1127 = vst [vmem:[#allocation2 + $0x130] sm:$0xff] %v999
        %1128 = vst [vmem:[#allocation2 + $0x138] sm:$0xff] %v1000
        %1129 = vst [vmem:[#allocation2 + $0x140] sm:$0xff] %v1001
        %1130 = vst [vmem:[#allocation2 + $0x148] sm:$0xff] %v1002
        %1131 = vst [vmem:[#allocation2 + $0x150] sm:$0xff] %v1003
        %1132 = vst [vmem:[#allocation2 + $0x158] sm:$0xff] %v1004
        %1133 = vst [vmem:[#allocation2 + $0x160] sm:$0xff] %v1005
        %1134 = vst [vmem:[#allocation2 + $0x168] sm:$0xff] %v1006
        %1135 = vst [vmem:[#allocation2 + $0x170] sm:$0xff] %v1007
        %1136 = vst [vmem:[#allocation2 + $0x178] sm:$0xff] %v1008
        %1137 = vst [vmem:[#allocation2 + $0x180] sm:$0xff] %v1009
        %1138 = vst [vmem:[#allocation2 + $0x188] sm:$0xff] %v1010
        %1139 = vst [vmem:[#allocation2 + $0x190] sm:$0xff] %v1011
        %1140 = vst [vmem:[#allocation2 + $0x198] sm:$0xff] %v1012
        %1141 = vst [vmem:[#allocation2 + $0x1a0] sm:$0xff] %v1013
        %1142 = vst [vmem:[#allocation2 + $0x1a8] sm:$0xff] %v1014
        %1143 = vst [vmem:[#allocation2 + $0x1b0] sm:$0xff] %v1015
        %1144 = vst [vmem:[#allocation2 + $0x1b8] sm:$0xff] %v1016
        %1145 = vst [vmem:[#allocation2 + $0x1c0] sm:$0xff] %v1017
        %1146 = vst [vmem:[#allocation2 + $0x1c8] sm:$0xff] %v1018
        %1147 = vst [vmem:[#allocation2 + $0x1d0] sm:$0xff] %v1019
        %1148 = vst [vmem:[#allocation2 + $0x1d8] sm:$0xff] %v1020
        %1149 = vst [vmem:[#allocation2 + $0x1e0] sm:$0xff] %v1021
        %1150 = vst [vmem:[#allocation2 + $0x1e8] sm:$0xff] %v1022
        %1151 = vst [vmem:[#allocation2 + $0x1f0] sm:$0xff] %v1023
        %1152 = vst [vmem:[#allocation2 + $0x1f8] sm:$0xff] %v1024
        %1153 = vst [vmem:[#allocation2 + $0x200] sm:$0xff] %v1025
        %1154 = vst [vmem:[#allocation2 + $0x208] sm:$0xff] %v1026
        %1155 = vst [vmem:[#allocation2 + $0x210] sm:$0xff] %v1027
        %1156 = vst [vmem:[#allocation2 + $0x218] sm:$0xff] %v1028
        %1157 = vst [vmem:[#allocation2 + $0x220] sm:$0xff] %v1029
        %1158 = vst [vmem:[#allocation2 + $0x228] sm:$0xff] %v1030
        %1159 = vst [vmem:[#allocation2 + $0x230] sm:$0xff] %v1031
        %1160 = vst [vmem:[#allocation2 + $0x238] sm:$0xff] %v1032
        %1161 = vst [vmem:[#allocation2 + $0x240] sm:$0xff] %v1033
        %1162 = vst [vmem:[#allocation2 + $0x248] sm:$0xff] %v1034
        %1163 = vst [vmem:[#allocation2 + $0x250] sm:$0xff] %v1035
        %1164 = vst [vmem:[#allocation2 + $0x258] sm:$0xff] %v1036
        %1165 = vst [vmem:[#allocation2 + $0x260] sm:$0xff] %v1037
        %1166 = vst [vmem:[#allocation2 + $0x268] sm:$0xff] %v1038
        %1167 = vst [vmem:[#allocation2 + $0x270] sm:$0xff] %v1039
        %1168 = vst [vmem:[#allocation2 + $0x278] sm:$0xff] %v1040
        %1169 = vst [vmem:[#allocation2 + $0x280] sm:$0xff] %v1041
        %1170 = vst [vmem:[#allocation2 + $0x288] sm:$0xff] %v1042
        %1171 = vst [vmem:[#allocation2 + $0x290] sm:$0xff] %v1043
        %1172 = vst [vmem:[#allocation2 + $0x298] sm:$0xff] %v1044
        %1173 = vst [vmem:[#allocation2 + $0x2a0] sm:$0xff] %v1045
        %1174 = vst [vmem:[#allocation2 + $0x2a8] sm:$0xff] %v1046
        %1175 = vst [vmem:[#allocation2 + $0x2b0] sm:$0xff] %v1047
        %1176 = vst [vmem:[#allocation2 + $0x2b8] sm:$0xff] %v1048
        %1177 = vst [vmem:[#allocation2 + $0x2c0] sm:$0xff] %v1049
        %1178 = vst [vmem:[#allocation2 + $0x2c8] sm:$0xff] %v1050
        %1179 = vst [vmem:[#allocation2 + $0x2d0] sm:$0xff] %v1051
        %1180 = vst [vmem:[#allocation2 + $0x2d8] sm:$0xff] %v1052
        %1181 = vst [vmem:[#allocation2 + $0x2e0] sm:$0xff] %v1053
        %1182 = vst [vmem:[#allocation2 + $0x2e8] sm:$0xff] %v1054
        %1183 = vst [vmem:[#allocation2 + $0x2f0] sm:$0xff] %v1055
        %1184 = vst [vmem:[#allocation2 + $0x2f8] sm:$0xff] %v1056
        %1185 = vst [vmem:[#allocation2 + $0x300] sm:$0xff] %v1057
        %1186 = vst [vmem:[#allocation2 + $0x308] sm:$0xff] %v1058
        %1187 = vst [vmem:[#allocation2 + $0x310] sm:$0xff] %v1059
        %1188 = vst [vmem:[#allocation2 + $0x318] sm:$0xff] %v1060
        %1189 = vst [vmem:[#allocation2 + $0x320] sm:$0xff] %v1061
        %1190 = vst [vmem:[#allocation2 + $0x328] sm:$0xff] %v1062
        %1191 = vst [vmem:[#allocation2 + $0x330] sm:$0xff] %v1063
        %1192 = vst [vmem:[#allocation2 + $0x338] sm:$0xff] %v1064
        %1193 = vst [vmem:[#allocation2 + $0x340] sm:$0xff] %v1065
        %1194 = vst [vmem:[#allocation2 + $0x348] sm:$0xff] %v1066
        %1195 = vst [vmem:[#allocation2 + $0x350] sm:$0xff] %v1067
        %1196 = vst [vmem:[#allocation2 + $0x358] sm:$0xff] %v1068
        %1197 = vst [vmem:[#allocation2 + $0x360] sm:$0xff] %v1069
        %1198 = vst [vmem:[#allocation2 + $0x368] sm:$0xff] %v1070
        %1199 = vst [vmem:[#allocation2 + $0x370] sm:$0xff] %v1071
        %1200 = vst [vmem:[#allocation2 + $0x378] sm:$0xff] %v1072
        %1201 = vst [vmem:[#allocation2 + $0x380] sm:$0xff] %v1073
        %1202 = vst [vmem:[#allocation2 + $0x388] sm:$0xff] %v1074
        %1203 = vst [vmem:[#allocation2 + $0x390] sm:$0xff] %v1075
        %1204 = vst [vmem:[#allocation2 + $0x398] sm:$0xff] %v1076
        %1205 = vst [vmem:[#allocation2 + $0x3a0] sm:$0xff] %v1077
        %1206 = vst [vmem:[#allocation2 + $0x3a8] sm:$0xff] %v1078
        %1207 = vst [vmem:[#allocation2 + $0x3b0] sm:$0xff] %v1079
        %1208 = vst [vmem:[#allocation2 + $0x3b8] sm:$0xff] %v1080
        %1209 = vst [vmem:[#allocation2 + $0x3c0] sm:$0xff] %v1081
        %1210 = vst [vmem:[#allocation2 + $0x3c8] sm:$0xff] %v1082
        %1211 = vst [vmem:[#allocation2 + $0x3d0] sm:$0xff] %v1083
        %1212 = vst [vmem:[#allocation2 + $0x3d8] sm:$0xff] %v1084
        %1213 = vst [vmem:[#allocation2 + $0x3e0] sm:$0xff] %v1085
        %1214 = vst [vmem:[#allocation2 + $0x3e8] sm:$0xff] %v1086
        %1215 = vst [vmem:[#allocation2 + $0x3f0] sm:$0xff] %v1087
        %1216 = vst [vmem:[#allocation2 + $0x3f8] sm:$0xff] %v1088
        // Predicated region
        $region37: #{tpu_custom_call.1} parent=27 // pred_check
          %p1217 = pneg %p359
        $region38: #{tpu_custom_call.1} parent=27 // pred_check_branch
          %1219 = sbr.rel (%p1217) target = $region40
        $region39: #{tpu_custom_call.1} parent=27 // pred_region
          %v1220 = vld [vmem:[#allocation2] sm:$0xff]
          %v1221 = vld [vmem:[#allocation2 + $0x8] sm:$0xff]
          %v1222 = vld [vmem:[#allocation2 + $0x10] sm:$0xff]
          %v1223 = vld [vmem:[#allocation2 + $0x18] sm:$0xff]
          %v1224 = vld [vmem:[#allocation2 + $0x20] sm:$0xff]
          %v1225 = vld [vmem:[#allocation2 + $0x28] sm:$0xff]
          %v1226 = vld [vmem:[#allocation2 + $0x30] sm:$0xff]
          %v1227 = vld [vmem:[#allocation2 + $0x38] sm:$0xff]
          %v1228 = vld [vmem:[#allocation2 + $0x40] sm:$0xff]
          %v1229 = vld [vmem:[#allocation2 + $0x48] sm:$0xff]
          %v1230 = vld [vmem:[#allocation2 + $0x50] sm:$0xff]
          %v1231 = vld [vmem:[#allocation2 + $0x58] sm:$0xff]
          %v1232 = vld [vmem:[#allocation2 + $0x60] sm:$0xff]
          %v1233 = vld [vmem:[#allocation2 + $0x68] sm:$0xff]
          %v1234 = vld [vmem:[#allocation2 + $0x70] sm:$0xff]
          %v1235 = vld [vmem:[#allocation2 + $0x78] sm:$0xff]
          %v1236 = vld [vmem:[#allocation2 + $0x80] sm:$0xff]
          %v1237 = vld [vmem:[#allocation2 + $0x88] sm:$0xff]
          %v1238 = vld [vmem:[#allocation2 + $0x90] sm:$0xff]
          %v1239 = vld [vmem:[#allocation2 + $0x98] sm:$0xff]
          %v1240 = vld [vmem:[#allocation2 + $0xa0] sm:$0xff]
          %v1241 = vld [vmem:[#allocation2 + $0xa8] sm:$0xff]
          %v1242 = vld [vmem:[#allocation2 + $0xb0] sm:$0xff]
          %v1243 = vld [vmem:[#allocation2 + $0xb8] sm:$0xff]
          %v1244 = vld [vmem:[#allocation2 + $0xc0] sm:$0xff]
          %v1245 = vld [vmem:[#allocation2 + $0xc8] sm:$0xff]
          %v1246 = vld [vmem:[#allocation2 + $0xd0] sm:$0xff]
          %v1247 = vld [vmem:[#allocation2 + $0xd8] sm:$0xff]
          %v1248 = vld [vmem:[#allocation2 + $0xe0] sm:$0xff]
          %v1249 = vld [vmem:[#allocation2 + $0xe8] sm:$0xff]
          %v1250 = vld [vmem:[#allocation2 + $0xf0] sm:$0xff]
          %v1251 = vld [vmem:[#allocation2 + $0xf8] sm:$0xff]
          %v1252 = vld [vmem:[#allocation2 + $0x100] sm:$0xff]
          %v1253 = vld [vmem:[#allocation2 + $0x108] sm:$0xff]
          %v1254 = vld [vmem:[#allocation2 + $0x110] sm:$0xff]
          %v1255 = vld [vmem:[#allocation2 + $0x118] sm:$0xff]
          %v1256 = vld [vmem:[#allocation2 + $0x120] sm:$0xff]
          %v1257 = vld [vmem:[#allocation2 + $0x128] sm:$0xff]
          %v1258 = vld [vmem:[#allocation2 + $0x130] sm:$0xff]
          %v1259 = vld [vmem:[#allocation2 + $0x138] sm:$0xff]
          %v1260 = vld [vmem:[#allocation2 + $0x140] sm:$0xff]
          %v1261 = vld [vmem:[#allocation2 + $0x148] sm:$0xff]
          %v1262 = vld [vmem:[#allocation2 + $0x150] sm:$0xff]
          %v1263 = vld [vmem:[#allocation2 + $0x158] sm:$0xff]
          %v1264 = vld [vmem:[#allocation2 + $0x160] sm:$0xff]
          %v1265 = vld [vmem:[#allocation2 + $0x168] sm:$0xff]
          %v1266 = vld [vmem:[#allocation2 + $0x170] sm:$0xff]
          %v1267 = vld [vmem:[#allocation2 + $0x178] sm:$0xff]
          %v1268 = vld [vmem:[#allocation2 + $0x180] sm:$0xff]
          %v1269 = vld [vmem:[#allocation2 + $0x188] sm:$0xff]
          %v1270 = vld [vmem:[#allocation2 + $0x190] sm:$0xff]
          %v1271 = vld [vmem:[#allocation2 + $0x198] sm:$0xff]
          %v1272 = vld [vmem:[#allocation2 + $0x1a0] sm:$0xff]
          %v1273 = vld [vmem:[#allocation2 + $0x1a8] sm:$0xff]
          %v1274 = vld [vmem:[#allocation2 + $0x1b0] sm:$0xff]
          %v1275 = vld [vmem:[#allocation2 + $0x1b8] sm:$0xff]
          %v1276 = vld [vmem:[#allocation2 + $0x1c0] sm:$0xff]
          %v1277 = vld [vmem:[#allocation2 + $0x1c8] sm:$0xff]
          %v1278 = vld [vmem:[#allocation2 + $0x1d0] sm:$0xff]
          %v1279 = vld [vmem:[#allocation2 + $0x1d8] sm:$0xff]
          %v1280 = vld [vmem:[#allocation2 + $0x1e0] sm:$0xff]
          %v1281 = vld [vmem:[#allocation2 + $0x1e8] sm:$0xff]
          %v1282 = vld [vmem:[#allocation2 + $0x1f0] sm:$0xff]
          %v1283 = vld [vmem:[#allocation2 + $0x1f8] sm:$0xff]
          %v1284 = vld [vmem:[#allocation2 + $0x200] sm:$0xff]
          %v1285 = vld [vmem:[#allocation2 + $0x208] sm:$0xff]
          %v1286 = vld [vmem:[#allocation2 + $0x210] sm:$0xff]
          %v1287 = vld [vmem:[#allocation2 + $0x218] sm:$0xff]
          %v1288 = vld [vmem:[#allocation2 + $0x220] sm:$0xff]
          %v1289 = vld [vmem:[#allocation2 + $0x228] sm:$0xff]
          %v1290 = vld [vmem:[#allocation2 + $0x230] sm:$0xff]
          %v1291 = vld [vmem:[#allocation2 + $0x238] sm:$0xff]
          %v1292 = vld [vmem:[#allocation2 + $0x240] sm:$0xff]
          %v1293 = vld [vmem:[#allocation2 + $0x248] sm:$0xff]
          %v1294 = vld [vmem:[#allocation2 + $0x250] sm:$0xff]
          %v1295 = vld [vmem:[#allocation2 + $0x258] sm:$0xff]
          %v1296 = vld [vmem:[#allocation2 + $0x260] sm:$0xff]
          %v1297 = vld [vmem:[#allocation2 + $0x268] sm:$0xff]
          %v1298 = vld [vmem:[#allocation2 + $0x270] sm:$0xff]
          %v1299 = vld [vmem:[#allocation2 + $0x278] sm:$0xff]
          %v1300 = vld [vmem:[#allocation2 + $0x280] sm:$0xff]
          %v1301 = vld [vmem:[#allocation2 + $0x288] sm:$0xff]
          %v1302 = vld [vmem:[#allocation2 + $0x290] sm:$0xff]
          %v1303 = vld [vmem:[#allocation2 + $0x298] sm:$0xff]
          %v1304 = vld [vmem:[#allocation2 + $0x2a0] sm:$0xff]
          %v1305 = vld [vmem:[#allocation2 + $0x2a8] sm:$0xff]
          %v1306 = vld [vmem:[#allocation2 + $0x2b0] sm:$0xff]
          %v1307 = vld [vmem:[#allocation2 + $0x2b8] sm:$0xff]
          %v1308 = vld [vmem:[#allocation2 + $0x2c0] sm:$0xff]
          %v1309 = vld [vmem:[#allocation2 + $0x2c8] sm:$0xff]
          %v1310 = vld [vmem:[#allocation2 + $0x2d0] sm:$0xff]
          %v1311 = vld [vmem:[#allocation2 + $0x2d8] sm:$0xff]
          %v1312 = vld [vmem:[#allocation2 + $0x2e0] sm:$0xff]
          %v1313 = vld [vmem:[#allocation2 + $0x2e8] sm:$0xff]
          %v1314 = vld [vmem:[#allocation2 + $0x2f0] sm:$0xff]
          %v1315 = vld [vmem:[#allocation2 + $0x2f8] sm:$0xff]
          %v1316 = vld [vmem:[#allocation2 + $0x300] sm:$0xff]
          %v1317 = vld [vmem:[#allocation2 + $0x308] sm:$0xff]
          %v1318 = vld [vmem:[#allocation2 + $0x310] sm:$0xff]
          %v1319 = vld [vmem:[#allocation2 + $0x318] sm:$0xff]
          %v1320 = vld [vmem:[#allocation2 + $0x320] sm:$0xff]
          %v1321 = vld [vmem:[#allocation2 + $0x328] sm:$0xff]
          %v1322 = vld [vmem:[#allocation2 + $0x330] sm:$0xff]
          %v1323 = vld [vmem:[#allocation2 + $0x338] sm:$0xff]
          %v1324 = vld [vmem:[#allocation2 + $0x340] sm:$0xff]
          %v1325 = vld [vmem:[#allocation2 + $0x348] sm:$0xff]
          %v1326 = vld [vmem:[#allocation2 + $0x350] sm:$0xff]
          %v1327 = vld [vmem:[#allocation2 + $0x358] sm:$0xff]
          %v1328 = vld [vmem:[#allocation2 + $0x360] sm:$0xff]
          %v1329 = vld [vmem:[#allocation2 + $0x368] sm:$0xff]
          %v1330 = vld [vmem:[#allocation2 + $0x370] sm:$0xff]
          %v1331 = vld [vmem:[#allocation2 + $0x378] sm:$0xff]
          %v1332 = vld [vmem:[#allocation2 + $0x380] sm:$0xff]
          %v1333 = vld [vmem:[#allocation2 + $0x388] sm:$0xff]
          %v1334 = vld [vmem:[#allocation2 + $0x390] sm:$0xff]
          %v1335 = vld [vmem:[#allocation2 + $0x398] sm:$0xff]
          %v1336 = vld [vmem:[#allocation2 + $0x3a0] sm:$0xff]
          %v1337 = vld [vmem:[#allocation2 + $0x3a8] sm:$0xff]
          %v1338 = vld [vmem:[#allocation2 + $0x3b0] sm:$0xff]
          %v1339 = vld [vmem:[#allocation2 + $0x3b8] sm:$0xff]
          %v1340 = vld [vmem:[#allocation2 + $0x3c0] sm:$0xff]
          %v1341 = vld [vmem:[#allocation2 + $0x3c8] sm:$0xff]
          %v1342 = vld [vmem:[#allocation2 + $0x3d0] sm:$0xff]
          %v1343 = vld [vmem:[#allocation2 + $0x3d8] sm:$0xff]
          %v1344 = vld [vmem:[#allocation2 + $0x3e0] sm:$0xff]
          %v1345 = vld [vmem:[#allocation2 + $0x3e8] sm:$0xff]
          %v1346 = vld [vmem:[#allocation2 + $0x3f0] sm:$0xff]
          %v1347 = vld [vmem:[#allocation2 + $0x3f8] sm:$0xff]
          %1348 = vmax.xlane.f32.xlu0 %v1220
          %v1349 = vpop.xlane.xlu0 %1348
          %1350 = vmax.xlane.f32.xlu0 %v1221
          %v1351 = vpop.xlane.xlu0 %1350
          %1352 = vmax.xlane.f32.xlu0 %v1222
          %v1353 = vpop.xlane.xlu0 %1352
          %1354 = vmax.xlane.f32.xlu0 %v1223
          %v1355 = vpop.xlane.xlu0 %1354
          %1356 = vmax.xlane.f32.xlu0 %v1224
          %v1357 = vpop.xlane.xlu0 %1356
          %1358 = vmax.xlane.f32.xlu0 %v1225
          %v1359 = vpop.xlane.xlu0 %1358
          %1360 = vmax.xlane.f32.xlu0 %v1226
          %v1361 = vpop.xlane.xlu0 %1360
          %1362 = vmax.xlane.f32.xlu0 %v1227
          %v1363 = vpop.xlane.xlu0 %1362
          %1364 = vmax.xlane.f32.xlu0 %v1228
          %v1365 = vpop.xlane.xlu0 %1364
          %1366 = vmax.xlane.f32.xlu0 %v1229
          %v1367 = vpop.xlane.xlu0 %1366
          %1368 = vmax.xlane.f32.xlu0 %v1230
          %v1369 = vpop.xlane.xlu0 %1368
          %1370 = vmax.xlane.f32.xlu0 %v1231
          %v1371 = vpop.xlane.xlu0 %1370
          %1372 = vmax.xlane.f32.xlu0 %v1232
          %v1373 = vpop.xlane.xlu0 %1372
          %1374 = vmax.xlane.f32.xlu0 %v1233
          %v1375 = vpop.xlane.xlu0 %1374
          %1376 = vmax.xlane.f32.xlu0 %v1234
          %v1377 = vpop.xlane.xlu0 %1376
          %1378 = vmax.xlane.f32.xlu0 %v1235
          %v1379 = vpop.xlane.xlu0 %1378
          %1380 = vmax.xlane.f32.xlu0 %v1236
          %v1381 = vpop.xlane.xlu0 %1380
          %1382 = vmax.xlane.f32.xlu0 %v1237
          %v1383 = vpop.xlane.xlu0 %1382
          %1384 = vmax.xlane.f32.xlu0 %v1238
          %v1385 = vpop.xlane.xlu0 %1384
          %1386 = vmax.xlane.f32.xlu0 %v1239
          %v1387 = vpop.xlane.xlu0 %1386
          %1388 = vmax.xlane.f32.xlu0 %v1240
          %v1389 = vpop.xlane.xlu0 %1388
          %1390 = vmax.xlane.f32.xlu0 %v1241
          %v1391 = vpop.xlane.xlu0 %1390
          %1392 = vmax.xlane.f32.xlu0 %v1242
          %v1393 = vpop.xlane.xlu0 %1392
          %1394 = vmax.xlane.f32.xlu0 %v1243
          %v1395 = vpop.xlane.xlu0 %1394
          %1396 = vmax.xlane.f32.xlu0 %v1244
          %v1397 = vpop.xlane.xlu0 %1396
          %1398 = vmax.xlane.f32.xlu0 %v1245
          %v1399 = vpop.xlane.xlu0 %1398
          %1400 = vmax.xlane.f32.xlu0 %v1246
          %v1401 = vpop.xlane.xlu0 %1400
          %1402 = vmax.xlane.f32.xlu0 %v1247
          %v1403 = vpop.xlane.xlu0 %1402
          %1404 = vmax.xlane.f32.xlu0 %v1248
          %v1405 = vpop.xlane.xlu0 %1404
          %1406 = vmax.xlane.f32.xlu0 %v1249
          %v1407 = vpop.xlane.xlu0 %1406
          %1408 = vmax.xlane.f32.xlu0 %v1250
          %v1409 = vpop.xlane.xlu0 %1408
          %1410 = vmax.xlane.f32.xlu0 %v1251
          %v1411 = vpop.xlane.xlu0 %1410
          %1412 = vmax.xlane.f32.xlu0 %v1252
          %v1413 = vpop.xlane.xlu0 %1412
          %1414 = vmax.xlane.f32.xlu0 %v1253
          %v1415 = vpop.xlane.xlu0 %1414
          %1416 = vmax.xlane.f32.xlu0 %v1254
          %v1417 = vpop.xlane.xlu0 %1416
          %1418 = vmax.xlane.f32.xlu0 %v1255
          %v1419 = vpop.xlane.xlu0 %1418
          %1420 = vmax.xlane.f32.xlu0 %v1256
          %v1421 = vpop.xlane.xlu0 %1420
          %1422 = vmax.xlane.f32.xlu0 %v1257
          %v1423 = vpop.xlane.xlu0 %1422
          %1424 = vmax.xlane.f32.xlu0 %v1258
          %v1425 = vpop.xlane.xlu0 %1424
          %1426 = vmax.xlane.f32.xlu0 %v1259
          %v1427 = vpop.xlane.xlu0 %1426
          %1428 = vmax.xlane.f32.xlu0 %v1260
          %v1429 = vpop.xlane.xlu0 %1428
          %1430 = vmax.xlane.f32.xlu0 %v1261
          %v1431 = vpop.xlane.xlu0 %1430
          %1432 = vmax.xlane.f32.xlu0 %v1262
          %v1433 = vpop.xlane.xlu0 %1432
          %1434 = vmax.xlane.f32.xlu0 %v1263
          %v1435 = vpop.xlane.xlu0 %1434
          %1436 = vmax.xlane.f32.xlu0 %v1264
          %v1437 = vpop.xlane.xlu0 %1436
          %1438 = vmax.xlane.f32.xlu0 %v1265
          %v1439 = vpop.xlane.xlu0 %1438
          %1440 = vmax.xlane.f32.xlu0 %v1266
          %v1441 = vpop.xlane.xlu0 %1440
          %1442 = vmax.xlane.f32.xlu0 %v1267
          %v1443 = vpop.xlane.xlu0 %1442
          %1444 = vmax.xlane.f32.xlu0 %v1268
          %v1445 = vpop.xlane.xlu0 %1444
          %1446 = vmax.xlane.f32.xlu0 %v1269
          %v1447 = vpop.xlane.xlu0 %1446
          %1448 = vmax.xlane.f32.xlu0 %v1270
          %v1449 = vpop.xlane.xlu0 %1448
          %1450 = vmax.xlane.f32.xlu0 %v1271
          %v1451 = vpop.xlane.xlu0 %1450
          %1452 = vmax.xlane.f32.xlu0 %v1272
          %v1453 = vpop.xlane.xlu0 %1452
          %1454 = vmax.xlane.f32.xlu0 %v1273
          %v1455 = vpop.xlane.xlu0 %1454
          %1456 = vmax.xlane.f32.xlu0 %v1274
          %v1457 = vpop.xlane.xlu0 %1456
          %1458 = vmax.xlane.f32.xlu0 %v1275
          %v1459 = vpop.xlane.xlu0 %1458
          %1460 = vmax.xlane.f32.xlu0 %v1276
          %v1461 = vpop.xlane.xlu0 %1460
          %1462 = vmax.xlane.f32.xlu0 %v1277
          %v1463 = vpop.xlane.xlu0 %1462
          %1464 = vmax.xlane.f32.xlu0 %v1278
          %v1465 = vpop.xlane.xlu0 %1464
          %1466 = vmax.xlane.f32.xlu0 %v1279
          %v1467 = vpop.xlane.xlu0 %1466
          %1468 = vmax.xlane.f32.xlu0 %v1280
          %v1469 = vpop.xlane.xlu0 %1468
          %1470 = vmax.xlane.f32.xlu0 %v1281
          %v1471 = vpop.xlane.xlu0 %1470
          %1472 = vmax.xlane.f32.xlu0 %v1282
          %v1473 = vpop.xlane.xlu0 %1472
          %1474 = vmax.xlane.f32.xlu0 %v1283
          %v1475 = vpop.xlane.xlu0 %1474
          %1476 = vmax.xlane.f32.xlu0 %v1284
          %v1477 = vpop.xlane.xlu0 %1476
          %1478 = vmax.xlane.f32.xlu0 %v1285
          %v1479 = vpop.xlane.xlu0 %1478
          %1480 = vmax.xlane.f32.xlu0 %v1286
          %v1481 = vpop.xlane.xlu0 %1480
          %1482 = vmax.xlane.f32.xlu0 %v1287
          %v1483 = vpop.xlane.xlu0 %1482
          %1484 = vmax.xlane.f32.xlu0 %v1288
          %v1485 = vpop.xlane.xlu0 %1484
          %1486 = vmax.xlane.f32.xlu0 %v1289
          %v1487 = vpop.xlane.xlu0 %1486
          %1488 = vmax.xlane.f32.xlu0 %v1290
          %v1489 = vpop.xlane.xlu0 %1488
          %1490 = vmax.xlane.f32.xlu0 %v1291
          %v1491 = vpop.xlane.xlu0 %1490
          %1492 = vmax.xlane.f32.xlu0 %v1292
          %v1493 = vpop.xlane.xlu0 %1492
          %1494 = vmax.xlane.f32.xlu0 %v1293
          %v1495 = vpop.xlane.xlu0 %1494
          %1496 = vmax.xlane.f32.xlu0 %v1294
          %v1497 = vpop.xlane.xlu0 %1496
          %1498 = vmax.xlane.f32.xlu0 %v1295
          %v1499 = vpop.xlane.xlu0 %1498
          %1500 = vmax.xlane.f32.xlu0 %v1296
          %v1501 = vpop.xlane.xlu0 %1500
          %1502 = vmax.xlane.f32.xlu0 %v1297
          %v1503 = vpop.xlane.xlu0 %1502
          %1504 = vmax.xlane.f32.xlu0 %v1298
          %v1505 = vpop.xlane.xlu0 %1504
          %1506 = vmax.xlane.f32.xlu0 %v1299
          %v1507 = vpop.xlane.xlu0 %1506
          %1508 = vmax.xlane.f32.xlu0 %v1300
          %v1509 = vpop.xlane.xlu0 %1508
          %1510 = vmax.xlane.f32.xlu0 %v1301
          %v1511 = vpop.xlane.xlu0 %1510
          %1512 = vmax.xlane.f32.xlu0 %v1302
          %v1513 = vpop.xlane.xlu0 %1512
          %1514 = vmax.xlane.f32.xlu0 %v1303
          %v1515 = vpop.xlane.xlu0 %1514
          %1516 = vmax.xlane.f32.xlu0 %v1304
          %v1517 = vpop.xlane.xlu0 %1516
          %1518 = vmax.xlane.f32.xlu0 %v1305
          %v1519 = vpop.xlane.xlu0 %1518
          %1520 = vmax.xlane.f32.xlu0 %v1306
          %v1521 = vpop.xlane.xlu0 %1520
          %1522 = vmax.xlane.f32.xlu0 %v1307
          %v1523 = vpop.xlane.xlu0 %1522
          %1524 = vmax.xlane.f32.xlu0 %v1308
          %v1525 = vpop.xlane.xlu0 %1524
          %1526 = vmax.xlane.f32.xlu0 %v1309
          %v1527 = vpop.xlane.xlu0 %1526
          %1528 = vmax.xlane.f32.xlu0 %v1310
          %v1529 = vpop.xlane.xlu0 %1528
          %1530 = vmax.xlane.f32.xlu0 %v1311
          %v1531 = vpop.xlane.xlu0 %1530
          %1532 = vmax.xlane.f32.xlu0 %v1312
          %v1533 = vpop.xlane.xlu0 %1532
          %1534 = vmax.xlane.f32.xlu0 %v1313
          %v1535 = vpop.xlane.xlu0 %1534
          %1536 = vmax.xlane.f32.xlu0 %v1314
          %v1537 = vpop.xlane.xlu0 %1536
          %1538 = vmax.xlane.f32.xlu0 %v1315
          %v1539 = vpop.xlane.xlu0 %1538
          %1540 = vmax.xlane.f32.xlu0 %v1316
          %v1541 = vpop.xlane.xlu0 %1540
          %1542 = vmax.xlane.f32.xlu0 %v1317
          %v1543 = vpop.xlane.xlu0 %1542
          %1544 = vmax.xlane.f32.xlu0 %v1318
          %v1545 = vpop.xlane.xlu0 %1544
          %1546 = vmax.xlane.f32.xlu0 %v1319
          %v1547 = vpop.xlane.xlu0 %1546
          %1548 = vmax.xlane.f32.xlu0 %v1320
          %v1549 = vpop.xlane.xlu0 %1548
          %1550 = vmax.xlane.f32.xlu0 %v1321
          %v1551 = vpop.xlane.xlu0 %1550
          %1552 = vmax.xlane.f32.xlu0 %v1322
          %v1553 = vpop.xlane.xlu0 %1552
          %1554 = vmax.xlane.f32.xlu0 %v1323
          %v1555 = vpop.xlane.xlu0 %1554
          %1556 = vmax.xlane.f32.xlu0 %v1324
          %v1557 = vpop.xlane.xlu0 %1556
          %1558 = vmax.xlane.f32.xlu0 %v1325
          %v1559 = vpop.xlane.xlu0 %1558
          %1560 = vmax.xlane.f32.xlu0 %v1326
          %v1561 = vpop.xlane.xlu0 %1560
          %1562 = vmax.xlane.f32.xlu0 %v1327
          %v1563 = vpop.xlane.xlu0 %1562
          %1564 = vmax.xlane.f32.xlu0 %v1328
          %v1565 = vpop.xlane.xlu0 %1564
          %1566 = vmax.xlane.f32.xlu0 %v1329
          %v1567 = vpop.xlane.xlu0 %1566
          %1568 = vmax.xlane.f32.xlu0 %v1330
          %v1569 = vpop.xlane.xlu0 %1568
          %1570 = vmax.xlane.f32.xlu0 %v1331
          %v1571 = vpop.xlane.xlu0 %1570
          %1572 = vmax.xlane.f32.xlu0 %v1332
          %v1573 = vpop.xlane.xlu0 %1572
          %1574 = vmax.xlane.f32.xlu0 %v1333
          %v1575 = vpop.xlane.xlu0 %1574
          %1576 = vmax.xlane.f32.xlu0 %v1334
          %v1577 = vpop.xlane.xlu0 %1576
          %1578 = vmax.xlane.f32.xlu0 %v1335
          %v1579 = vpop.xlane.xlu0 %1578
          %1580 = vmax.xlane.f32.xlu0 %v1336
          %v1581 = vpop.xlane.xlu0 %1580
          %1582 = vmax.xlane.f32.xlu0 %v1337
          %v1583 = vpop.xlane.xlu0 %1582
          %1584 = vmax.xlane.f32.xlu0 %v1338
          %v1585 = vpop.xlane.xlu0 %1584
          %1586 = vmax.xlane.f32.xlu0 %v1339
          %v1587 = vpop.xlane.xlu0 %1586
          %1588 = vmax.xlane.f32.xlu0 %v1340
          %v1589 = vpop.xlane.xlu0 %1588
          %1590 = vmax.xlane.f32.xlu0 %v1341
          %v1591 = vpop.xlane.xlu0 %1590
          %1592 = vmax.xlane.f32.xlu0 %v1342
          %v1593 = vpop.xlane.xlu0 %1592
          %1594 = vmax.xlane.f32.xlu0 %v1343
          %v1595 = vpop.xlane.xlu0 %1594
          %1596 = vmax.xlane.f32.xlu0 %v1344
          %v1597 = vpop.xlane.xlu0 %1596
          %1598 = vmax.xlane.f32.xlu0 %v1345
          %v1599 = vpop.xlane.xlu0 %1598
          %1600 = vmax.xlane.f32.xlu0 %v1346
          %v1601 = vpop.xlane.xlu0 %1600
          %1602 = vmax.xlane.f32.xlu0 %v1347
          %v1603 = vpop.xlane.xlu0 %1602
          %v1733 = vunpack.c.l.s4 839922192
          %v1734 = vunpack.c.0.s8 %v1733
          %v1735 = vlaneseq
          %v1736 = vshrl.u32 %v1735, 7
          %v1737 = vsub.s32 %v1734, %v1736
          %v1738 = vrot.slane %v1349, %v1737
          %v1740 = vunpack.c.l.s4 1985246804
          %v1741 = vunpack.c.0.s8 %v1740
          %v1742 = vlaneseq
          %v1743 = vshrl.u32 %v1742, 7
          %v1744 = vsub.s32 %v1741, %v1743
          %v1745 = vrot.slane %v1349, %v1744
          %v1747 = vunpack.c.l.s4 839922192
          %v1748 = vunpack.c.0.s8 %v1747
          %v1749 = vlaneseq
          %v1750 = vshrl.u32 %v1749, 7
          %v1751 = vsub.s32 %v1748, %v1750
          %v1752 = vrot.slane %v1351, %v1751
          %v1754 = vunpack.c.l.s4 1985246804
          %v1755 = vunpack.c.0.s8 %v1754
          %v1756 = vlaneseq
          %v1757 = vshrl.u32 %v1756, 7
          %v1758 = vsub.s32 %v1755, %v1757
          %v1759 = vrot.slane %v1351, %v1758
          %v1761 = vunpack.c.l.s4 839922192
          %v1762 = vunpack.c.0.s8 %v1761
          %v1763 = vlaneseq
          %v1764 = vshrl.u32 %v1763, 7
          %v1765 = vsub.s32 %v1762, %v1764
          %v1766 = vrot.slane %v1353, %v1765
          %v1768 = vunpack.c.l.s4 1985246804
          %v1769 = vunpack.c.0.s8 %v1768
          %v1770 = vlaneseq
          %v1771 = vshrl.u32 %v1770, 7
          %v1772 = vsub.s32 %v1769, %v1771
          %v1773 = vrot.slane %v1353, %v1772
          %v1775 = vunpack.c.l.s4 839922192
          %v1776 = vunpack.c.0.s8 %v1775
          %v1777 = vlaneseq
          %v1778 = vshrl.u32 %v1777, 7
          %v1779 = vsub.s32 %v1776, %v1778
          %v1780 = vrot.slane %v1355, %v1779
          %v1782 = vunpack.c.l.s4 1985246804
          %v1783 = vunpack.c.0.s8 %v1782
          %v1784 = vlaneseq
          %v1785 = vshrl.u32 %v1784, 7
          %v1786 = vsub.s32 %v1783, %v1785
          %v1787 = vrot.slane %v1355, %v1786
          %v1789 = vunpack.c.l.s4 839922192
          %v1790 = vunpack.c.0.s8 %v1789
          %v1791 = vlaneseq
          %v1792 = vshrl.u32 %v1791, 7
          %v1793 = vsub.s32 %v1790, %v1792
          %v1794 = vrot.slane %v1357, %v1793
          %v1796 = vunpack.c.l.s4 1985246804
          %v1797 = vunpack.c.0.s8 %v1796
          %v1798 = vlaneseq
          %v1799 = vshrl.u32 %v1798, 7
          %v1800 = vsub.s32 %v1797, %v1799
          %v1801 = vrot.slane %v1357, %v1800
          %v1803 = vunpack.c.l.s4 839922192
          %v1804 = vunpack.c.0.s8 %v1803
          %v1805 = vlaneseq
          %v1806 = vshrl.u32 %v1805, 7
          %v1807 = vsub.s32 %v1804, %v1806
          %v1808 = vrot.slane %v1359, %v1807
          %v1810 = vunpack.c.l.s4 1985246804
          %v1811 = vunpack.c.0.s8 %v1810
          %v1812 = vlaneseq
          %v1813 = vshrl.u32 %v1812, 7
          %v1814 = vsub.s32 %v1811, %v1813
          %v1815 = vrot.slane %v1359, %v1814
          %v1817 = vunpack.c.l.s4 839922192
          %v1818 = vunpack.c.0.s8 %v1817
          %v1819 = vlaneseq
          %v1820 = vshrl.u32 %v1819, 7
          %v1821 = vsub.s32 %v1818, %v1820
          %v1822 = vrot.slane %v1361, %v1821
          %v1824 = vunpack.c.l.s4 1985246804
          %v1825 = vunpack.c.0.s8 %v1824
          %v1826 = vlaneseq
          %v1827 = vshrl.u32 %v1826, 7
          %v1828 = vsub.s32 %v1825, %v1827
          %v1829 = vrot.slane %v1361, %v1828
          %v1831 = vunpack.c.l.s4 839922192
          %v1832 = vunpack.c.0.s8 %v1831
          %v1833 = vlaneseq
          %v1834 = vshrl.u32 %v1833, 7
          %v1835 = vsub.s32 %v1832, %v1834
          %v1836 = vrot.slane %v1363, %v1835
          %v1838 = vunpack.c.l.s4 1985246804
          %v1839 = vunpack.c.0.s8 %v1838
          %v1840 = vlaneseq
          %v1841 = vshrl.u32 %v1840, 7
          %v1842 = vsub.s32 %v1839, %v1841
          %v1843 = vrot.slane %v1363, %v1842
          %v1845 = vunpack.c.l.s4 839922192
          %v1846 = vunpack.c.0.s8 %v1845
          %v1847 = vlaneseq
          %v1848 = vshrl.u32 %v1847, 7
          %v1849 = vsub.s32 %v1846, %v1848
          %v1850 = vrot.slane %v1365, %v1849
          %v1852 = vunpack.c.l.s4 1985246804
          %v1853 = vunpack.c.0.s8 %v1852
          %v1854 = vlaneseq
          %v1855 = vshrl.u32 %v1854, 7
          %v1856 = vsub.s32 %v1853, %v1855
          %v1857 = vrot.slane %v1365, %v1856
          %v1859 = vunpack.c.l.s4 839922192
          %v1860 = vunpack.c.0.s8 %v1859
          %v1861 = vlaneseq
          %v1862 = vshrl.u32 %v1861, 7
          %v1863 = vsub.s32 %v1860, %v1862
          %v1864 = vrot.slane %v1367, %v1863
          %v1866 = vunpack.c.l.s4 1985246804
          %v1867 = vunpack.c.0.s8 %v1866
          %v1868 = vlaneseq
          %v1869 = vshrl.u32 %v1868, 7
          %v1870 = vsub.s32 %v1867, %v1869
          %v1871 = vrot.slane %v1367, %v1870
          %v1873 = vunpack.c.l.s4 839922192
          %v1874 = vunpack.c.0.s8 %v1873
          %v1875 = vlaneseq
          %v1876 = vshrl.u32 %v1875, 7
          %v1877 = vsub.s32 %v1874, %v1876
          %v1878 = vrot.slane %v1369, %v1877
          %v1880 = vunpack.c.l.s4 1985246804
          %v1881 = vunpack.c.0.s8 %v1880
          %v1882 = vlaneseq
          %v1883 = vshrl.u32 %v1882, 7
          %v1884 = vsub.s32 %v1881, %v1883
          %v1885 = vrot.slane %v1369, %v1884
          %v1887 = vunpack.c.l.s4 839922192
          %v1888 = vunpack.c.0.s8 %v1887
          %v1889 = vlaneseq
          %v1890 = vshrl.u32 %v1889, 7
          %v1891 = vsub.s32 %v1888, %v1890
          %v1892 = vrot.slane %v1371, %v1891
          %v1894 = vunpack.c.l.s4 1985246804
          %v1895 = vunpack.c.0.s8 %v1894
          %v1896 = vlaneseq
          %v1897 = vshrl.u32 %v1896, 7
          %v1898 = vsub.s32 %v1895, %v1897
          %v1899 = vrot.slane %v1371, %v1898
          %v1901 = vunpack.c.l.s4 839922192
          %v1902 = vunpack.c.0.s8 %v1901
          %v1903 = vlaneseq
          %v1904 = vshrl.u32 %v1903, 7
          %v1905 = vsub.s32 %v1902, %v1904
          %v1906 = vrot.slane %v1373, %v1905
          %v1908 = vunpack.c.l.s4 1985246804
          %v1909 = vunpack.c.0.s8 %v1908
          %v1910 = vlaneseq
          %v1911 = vshrl.u32 %v1910, 7
          %v1912 = vsub.s32 %v1909, %v1911
          %v1913 = vrot.slane %v1373, %v1912
          %v1915 = vunpack.c.l.s4 839922192
          %v1916 = vunpack.c.0.s8 %v1915
          %v1917 = vlaneseq
          %v1918 = vshrl.u32 %v1917, 7
          %v1919 = vsub.s32 %v1916, %v1918
          %v1920 = vrot.slane %v1375, %v1919
          %v1922 = vunpack.c.l.s4 1985246804
          %v1923 = vunpack.c.0.s8 %v1922
          %v1924 = vlaneseq
          %v1925 = vshrl.u32 %v1924, 7
          %v1926 = vsub.s32 %v1923, %v1925
          %v1927 = vrot.slane %v1375, %v1926
          %v1929 = vunpack.c.l.s4 839922192
          %v1930 = vunpack.c.0.s8 %v1929
          %v1931 = vlaneseq
          %v1932 = vshrl.u32 %v1931, 7
          %v1933 = vsub.s32 %v1930, %v1932
          %v1934 = vrot.slane %v1377, %v1933
          %v1936 = vunpack.c.l.s4 1985246804
          %v1937 = vunpack.c.0.s8 %v1936
          %v1938 = vlaneseq
          %v1939 = vshrl.u32 %v1938, 7
          %v1940 = vsub.s32 %v1937, %v1939
          %v1941 = vrot.slane %v1377, %v1940
          %v1943 = vunpack.c.l.s4 839922192
          %v1944 = vunpack.c.0.s8 %v1943
          %v1945 = vlaneseq
          %v1946 = vshrl.u32 %v1945, 7
          %v1947 = vsub.s32 %v1944, %v1946
          %v1948 = vrot.slane %v1379, %v1947
          %v1950 = vunpack.c.l.s4 1985246804
          %v1951 = vunpack.c.0.s8 %v1950
          %v1952 = vlaneseq
          %v1953 = vshrl.u32 %v1952, 7
          %v1954 = vsub.s32 %v1951, %v1953
          %v1955 = vrot.slane %v1379, %v1954
          %v1957 = vunpack.c.l.s4 839922192
          %v1958 = vunpack.c.0.s8 %v1957
          %v1959 = vlaneseq
          %v1960 = vshrl.u32 %v1959, 7
          %v1961 = vsub.s32 %v1958, %v1960
          %v1962 = vrot.slane %v1381, %v1961
          %v1964 = vunpack.c.l.s4 1985246804
          %v1965 = vunpack.c.0.s8 %v1964
          %v1966 = vlaneseq
          %v1967 = vshrl.u32 %v1966, 7
          %v1968 = vsub.s32 %v1965, %v1967
          %v1969 = vrot.slane %v1381, %v1968
          %v1971 = vunpack.c.l.s4 839922192
          %v1972 = vunpack.c.0.s8 %v1971
          %v1973 = vlaneseq
          %v1974 = vshrl.u32 %v1973, 7
          %v1975 = vsub.s32 %v1972, %v1974
          %v1976 = vrot.slane %v1383, %v1975
          %v1978 = vunpack.c.l.s4 1985246804
          %v1979 = vunpack.c.0.s8 %v1978
          %v1980 = vlaneseq
          %v1981 = vshrl.u32 %v1980, 7
          %v1982 = vsub.s32 %v1979, %v1981
          %v1983 = vrot.slane %v1383, %v1982
          %v1985 = vunpack.c.l.s4 839922192
          %v1986 = vunpack.c.0.s8 %v1985
          %v1987 = vlaneseq
          %v1988 = vshrl.u32 %v1987, 7
          %v1989 = vsub.s32 %v1986, %v1988
          %v1990 = vrot.slane %v1385, %v1989
          %v1992 = vunpack.c.l.s4 1985246804
          %v1993 = vunpack.c.0.s8 %v1992
          %v1994 = vlaneseq
          %v1995 = vshrl.u32 %v1994, 7
          %v1996 = vsub.s32 %v1993, %v1995
          %v1997 = vrot.slane %v1385, %v1996
          %v1999 = vunpack.c.l.s4 839922192
          %v2000 = vunpack.c.0.s8 %v1999
          %v2001 = vlaneseq
          %v2002 = vshrl.u32 %v2001, 7
          %v2003 = vsub.s32 %v2000, %v2002
          %v2004 = vrot.slane %v1387, %v2003
          %v2006 = vunpack.c.l.s4 1985246804
          %v2007 = vunpack.c.0.s8 %v2006
          %v2008 = vlaneseq
          %v2009 = vshrl.u32 %v2008, 7
          %v2010 = vsub.s32 %v2007, %v2009
          %v2011 = vrot.slane %v1387, %v2010
          %v2013 = vunpack.c.l.s4 839922192
          %v2014 = vunpack.c.0.s8 %v2013
          %v2015 = vlaneseq
          %v2016 = vshrl.u32 %v2015, 7
          %v2017 = vsub.s32 %v2014, %v2016
          %v2018 = vrot.slane %v1389, %v2017
          %v2020 = vunpack.c.l.s4 1985246804
          %v2021 = vunpack.c.0.s8 %v2020
          %v2022 = vlaneseq
          %v2023 = vshrl.u32 %v2022, 7
          %v2024 = vsub.s32 %v2021, %v2023
          %v2025 = vrot.slane %v1389, %v2024
          %v2027 = vunpack.c.l.s4 839922192
          %v2028 = vunpack.c.0.s8 %v2027
          %v2029 = vlaneseq
          %v2030 = vshrl.u32 %v2029, 7
          %v2031 = vsub.s32 %v2028, %v2030
          %v2032 = vrot.slane %v1391, %v2031
          %v2034 = vunpack.c.l.s4 1985246804
          %v2035 = vunpack.c.0.s8 %v2034
          %v2036 = vlaneseq
          %v2037 = vshrl.u32 %v2036, 7
          %v2038 = vsub.s32 %v2035, %v2037
          %v2039 = vrot.slane %v1391, %v2038
          %v2041 = vunpack.c.l.s4 839922192
          %v2042 = vunpack.c.0.s8 %v2041
          %v2043 = vlaneseq
          %v2044 = vshrl.u32 %v2043, 7
          %v2045 = vsub.s32 %v2042, %v2044
          %v2046 = vrot.slane %v1393, %v2045
          %v2048 = vunpack.c.l.s4 1985246804
          %v2049 = vunpack.c.0.s8 %v2048
          %v2050 = vlaneseq
          %v2051 = vshrl.u32 %v2050, 7
          %v2052 = vsub.s32 %v2049, %v2051
          %v2053 = vrot.slane %v1393, %v2052
          %v2055 = vunpack.c.l.s4 839922192
          %v2056 = vunpack.c.0.s8 %v2055
          %v2057 = vlaneseq
          %v2058 = vshrl.u32 %v2057, 7
          %v2059 = vsub.s32 %v2056, %v2058
          %v2060 = vrot.slane %v1395, %v2059
          %v2062 = vunpack.c.l.s4 1985246804
          %v2063 = vunpack.c.0.s8 %v2062
          %v2064 = vlaneseq
          %v2065 = vshrl.u32 %v2064, 7
          %v2066 = vsub.s32 %v2063, %v2065
          %v2067 = vrot.slane %v1395, %v2066
          %v2069 = vunpack.c.l.s4 839922192
          %v2070 = vunpack.c.0.s8 %v2069
          %v2071 = vlaneseq
          %v2072 = vshrl.u32 %v2071, 7
          %v2073 = vsub.s32 %v2070, %v2072
          %v2074 = vrot.slane %v1397, %v2073
          %v2076 = vunpack.c.l.s4 1985246804
          %v2077 = vunpack.c.0.s8 %v2076
          %v2078 = vlaneseq
          %v2079 = vshrl.u32 %v2078, 7
          %v2080 = vsub.s32 %v2077, %v2079
          %v2081 = vrot.slane %v1397, %v2080
          %v2083 = vunpack.c.l.s4 839922192
          %v2084 = vunpack.c.0.s8 %v2083
          %v2085 = vlaneseq
          %v2086 = vshrl.u32 %v2085, 7
          %v2087 = vsub.s32 %v2084, %v2086
          %v2088 = vrot.slane %v1399, %v2087
          %v2090 = vunpack.c.l.s4 1985246804
          %v2091 = vunpack.c.0.s8 %v2090
          %v2092 = vlaneseq
          %v2093 = vshrl.u32 %v2092, 7
          %v2094 = vsub.s32 %v2091, %v2093
          %v2095 = vrot.slane %v1399, %v2094
          %v2097 = vunpack.c.l.s4 839922192
          %v2098 = vunpack.c.0.s8 %v2097
          %v2099 = vlaneseq
          %v2100 = vshrl.u32 %v2099, 7
          %v2101 = vsub.s32 %v2098, %v2100
          %v2102 = vrot.slane %v1401, %v2101
          %v2104 = vunpack.c.l.s4 1985246804
          %v2105 = vunpack.c.0.s8 %v2104
          %v2106 = vlaneseq
          %v2107 = vshrl.u32 %v2106, 7
          %v2108 = vsub.s32 %v2105, %v2107
          %v2109 = vrot.slane %v1401, %v2108
          %v2111 = vunpack.c.l.s4 839922192
          %v2112 = vunpack.c.0.s8 %v2111
          %v2113 = vlaneseq
          %v2114 = vshrl.u32 %v2113, 7
          %v2115 = vsub.s32 %v2112, %v2114
          %v2116 = vrot.slane %v1403, %v2115
          %v2118 = vunpack.c.l.s4 1985246804
          %v2119 = vunpack.c.0.s8 %v2118
          %v2120 = vlaneseq
          %v2121 = vshrl.u32 %v2120, 7
          %v2122 = vsub.s32 %v2119, %v2121
          %v2123 = vrot.slane %v1403, %v2122
          %v2125 = vunpack.c.l.s4 839922192
          %v2126 = vunpack.c.0.s8 %v2125
          %v2127 = vlaneseq
          %v2128 = vshrl.u32 %v2127, 7
          %v2129 = vsub.s32 %v2126, %v2128
          %v2130 = vrot.slane %v1405, %v2129
          %v2132 = vunpack.c.l.s4 1985246804
          %v2133 = vunpack.c.0.s8 %v2132
          %v2134 = vlaneseq
          %v2135 = vshrl.u32 %v2134, 7
          %v2136 = vsub.s32 %v2133, %v2135
          %v2137 = vrot.slane %v1405, %v2136
          %v2139 = vunpack.c.l.s4 839922192
          %v2140 = vunpack.c.0.s8 %v2139
          %v2141 = vlaneseq
          %v2142 = vshrl.u32 %v2141, 7
          %v2143 = vsub.s32 %v2140, %v2142
          %v2144 = vrot.slane %v1407, %v2143
          %v2146 = vunpack.c.l.s4 1985246804
          %v2147 = vunpack.c.0.s8 %v2146
          %v2148 = vlaneseq
          %v2149 = vshrl.u32 %v2148, 7
          %v2150 = vsub.s32 %v2147, %v2149
          %v2151 = vrot.slane %v1407, %v2150
          %v2153 = vunpack.c.l.s4 839922192
          %v2154 = vunpack.c.0.s8 %v2153
          %v2155 = vlaneseq
          %v2156 = vshrl.u32 %v2155, 7
          %v2157 = vsub.s32 %v2154, %v2156
          %v2158 = vrot.slane %v1409, %v2157
          %v2160 = vunpack.c.l.s4 1985246804
          %v2161 = vunpack.c.0.s8 %v2160
          %v2162 = vlaneseq
          %v2163 = vshrl.u32 %v2162, 7
          %v2164 = vsub.s32 %v2161, %v2163
          %v2165 = vrot.slane %v1409, %v2164
          %v2167 = vunpack.c.l.s4 839922192
          %v2168 = vunpack.c.0.s8 %v2167
          %v2169 = vlaneseq
          %v2170 = vshrl.u32 %v2169, 7
          %v2171 = vsub.s32 %v2168, %v2170
          %v2172 = vrot.slane %v1411, %v2171
          %v2174 = vunpack.c.l.s4 1985246804
          %v2175 = vunpack.c.0.s8 %v2174
          %v2176 = vlaneseq
          %v2177 = vshrl.u32 %v2176, 7
          %v2178 = vsub.s32 %v2175, %v2177
          %v2179 = vrot.slane %v1411, %v2178
          %v2181 = vunpack.c.l.s4 839922192
          %v2182 = vunpack.c.0.s8 %v2181
          %v2183 = vlaneseq
          %v2184 = vshrl.u32 %v2183, 7
          %v2185 = vsub.s32 %v2182, %v2184
          %v2186 = vrot.slane %v1413, %v2185
          %v2188 = vunpack.c.l.s4 1985246804
          %v2189 = vunpack.c.0.s8 %v2188
          %v2190 = vlaneseq
          %v2191 = vshrl.u32 %v2190, 7
          %v2192 = vsub.s32 %v2189, %v2191
          %v2193 = vrot.slane %v1413, %v2192
          %v2195 = vunpack.c.l.s4 839922192
          %v2196 = vunpack.c.0.s8 %v2195
          %v2197 = vlaneseq
          %v2198 = vshrl.u32 %v2197, 7
          %v2199 = vsub.s32 %v2196, %v2198
          %v2200 = vrot.slane %v1415, %v2199
          %v2202 = vunpack.c.l.s4 1985246804
          %v2203 = vunpack.c.0.s8 %v2202
          %v2204 = vlaneseq
          %v2205 = vshrl.u32 %v2204, 7
          %v2206 = vsub.s32 %v2203, %v2205
          %v2207 = vrot.slane %v1415, %v2206
          %v2209 = vunpack.c.l.s4 839922192
          %v2210 = vunpack.c.0.s8 %v2209
          %v2211 = vlaneseq
          %v2212 = vshrl.u32 %v2211, 7
          %v2213 = vsub.s32 %v2210, %v2212
          %v2214 = vrot.slane %v1417, %v2213
          %v2216 = vunpack.c.l.s4 1985246804
          %v2217 = vunpack.c.0.s8 %v2216
          %v2218 = vlaneseq
          %v2219 = vshrl.u32 %v2218, 7
          %v2220 = vsub.s32 %v2217, %v2219
          %v2221 = vrot.slane %v1417, %v2220
          %v2223 = vunpack.c.l.s4 839922192
          %v2224 = vunpack.c.0.s8 %v2223
          %v2225 = vlaneseq
          %v2226 = vshrl.u32 %v2225, 7
          %v2227 = vsub.s32 %v2224, %v2226
          %v2228 = vrot.slane %v1419, %v2227
          %v2230 = vunpack.c.l.s4 1985246804
          %v2231 = vunpack.c.0.s8 %v2230
          %v2232 = vlaneseq
          %v2233 = vshrl.u32 %v2232, 7
          %v2234 = vsub.s32 %v2231, %v2233
          %v2235 = vrot.slane %v1419, %v2234
          %v2237 = vunpack.c.l.s4 839922192
          %v2238 = vunpack.c.0.s8 %v2237
          %v2239 = vlaneseq
          %v2240 = vshrl.u32 %v2239, 7
          %v2241 = vsub.s32 %v2238, %v2240
          %v2242 = vrot.slane %v1421, %v2241
          %v2244 = vunpack.c.l.s4 1985246804
          %v2245 = vunpack.c.0.s8 %v2244
          %v2246 = vlaneseq
          %v2247 = vshrl.u32 %v2246, 7
          %v2248 = vsub.s32 %v2245, %v2247
          %v2249 = vrot.slane %v1421, %v2248
          %v2251 = vunpack.c.l.s4 839922192
          %v2252 = vunpack.c.0.s8 %v2251
          %v2253 = vlaneseq
          %v2254 = vshrl.u32 %v2253, 7
          %v2255 = vsub.s32 %v2252, %v2254
          %v2256 = vrot.slane %v1423, %v2255
          %v2258 = vunpack.c.l.s4 1985246804
          %v2259 = vunpack.c.0.s8 %v2258
          %v2260 = vlaneseq
          %v2261 = vshrl.u32 %v2260, 7
          %v2262 = vsub.s32 %v2259, %v2261
          %v2263 = vrot.slane %v1423, %v2262
          %v2265 = vunpack.c.l.s4 839922192
          %v2266 = vunpack.c.0.s8 %v2265
          %v2267 = vlaneseq
          %v2268 = vshrl.u32 %v2267, 7
          %v2269 = vsub.s32 %v2266, %v2268
          %v2270 = vrot.slane %v1425, %v2269
          %v2272 = vunpack.c.l.s4 1985246804
          %v2273 = vunpack.c.0.s8 %v2272
          %v2274 = vlaneseq
          %v2275 = vshrl.u32 %v2274, 7
          %v2276 = vsub.s32 %v2273, %v2275
          %v2277 = vrot.slane %v1425, %v2276
          %v2279 = vunpack.c.l.s4 839922192
          %v2280 = vunpack.c.0.s8 %v2279
          %v2281 = vlaneseq
          %v2282 = vshrl.u32 %v2281, 7
          %v2283 = vsub.s32 %v2280, %v2282
          %v2284 = vrot.slane %v1427, %v2283
          %v2286 = vunpack.c.l.s4 1985246804
          %v2287 = vunpack.c.0.s8 %v2286
          %v2288 = vlaneseq
          %v2289 = vshrl.u32 %v2288, 7
          %v2290 = vsub.s32 %v2287, %v2289
          %v2291 = vrot.slane %v1427, %v2290
          %v2293 = vunpack.c.l.s4 839922192
          %v2294 = vunpack.c.0.s8 %v2293
          %v2295 = vlaneseq
          %v2296 = vshrl.u32 %v2295, 7
          %v2297 = vsub.s32 %v2294, %v2296
          %v2298 = vrot.slane %v1429, %v2297
          %v2300 = vunpack.c.l.s4 1985246804
          %v2301 = vunpack.c.0.s8 %v2300
          %v2302 = vlaneseq
          %v2303 = vshrl.u32 %v2302, 7
          %v2304 = vsub.s32 %v2301, %v2303
          %v2305 = vrot.slane %v1429, %v2304
          %v2307 = vunpack.c.l.s4 839922192
          %v2308 = vunpack.c.0.s8 %v2307
          %v2309 = vlaneseq
          %v2310 = vshrl.u32 %v2309, 7
          %v2311 = vsub.s32 %v2308, %v2310
          %v2312 = vrot.slane %v1431, %v2311
          %v2314 = vunpack.c.l.s4 1985246804
          %v2315 = vunpack.c.0.s8 %v2314
          %v2316 = vlaneseq
          %v2317 = vshrl.u32 %v2316, 7
          %v2318 = vsub.s32 %v2315, %v2317
          %v2319 = vrot.slane %v1431, %v2318
          %v2321 = vunpack.c.l.s4 839922192
          %v2322 = vunpack.c.0.s8 %v2321
          %v2323 = vlaneseq
          %v2324 = vshrl.u32 %v2323, 7
          %v2325 = vsub.s32 %v2322, %v2324
          %v2326 = vrot.slane %v1433, %v2325
          %v2328 = vunpack.c.l.s4 1985246804
          %v2329 = vunpack.c.0.s8 %v2328
          %v2330 = vlaneseq
          %v2331 = vshrl.u32 %v2330, 7
          %v2332 = vsub.s32 %v2329, %v2331
          %v2333 = vrot.slane %v1433, %v2332
          %v2335 = vunpack.c.l.s4 839922192
          %v2336 = vunpack.c.0.s8 %v2335
          %v2337 = vlaneseq
          %v2338 = vshrl.u32 %v2337, 7
          %v2339 = vsub.s32 %v2336, %v2338
          %v2340 = vrot.slane %v1435, %v2339
          %v2342 = vunpack.c.l.s4 1985246804
          %v2343 = vunpack.c.0.s8 %v2342
          %v2344 = vlaneseq
          %v2345 = vshrl.u32 %v2344, 7
          %v2346 = vsub.s32 %v2343, %v2345
          %v2347 = vrot.slane %v1435, %v2346
          %v2349 = vunpack.c.l.s4 839922192
          %v2350 = vunpack.c.0.s8 %v2349
          %v2351 = vlaneseq
          %v2352 = vshrl.u32 %v2351, 7
          %v2353 = vsub.s32 %v2350, %v2352
          %v2354 = vrot.slane %v1437, %v2353
          %v2356 = vunpack.c.l.s4 1985246804
          %v2357 = vunpack.c.0.s8 %v2356
          %v2358 = vlaneseq
          %v2359 = vshrl.u32 %v2358, 7
          %v2360 = vsub.s32 %v2357, %v2359
          %v2361 = vrot.slane %v1437, %v2360
          %v2363 = vunpack.c.l.s4 839922192
          %v2364 = vunpack.c.0.s8 %v2363
          %v2365 = vlaneseq
          %v2366 = vshrl.u32 %v2365, 7
          %v2367 = vsub.s32 %v2364, %v2366
          %v2368 = vrot.slane %v1439, %v2367
          %v2370 = vunpack.c.l.s4 1985246804
          %v2371 = vunpack.c.0.s8 %v2370
          %v2372 = vlaneseq
          %v2373 = vshrl.u32 %v2372, 7
          %v2374 = vsub.s32 %v2371, %v2373
          %v2375 = vrot.slane %v1439, %v2374
          %v2377 = vunpack.c.l.s4 839922192
          %v2378 = vunpack.c.0.s8 %v2377
          %v2379 = vlaneseq
          %v2380 = vshrl.u32 %v2379, 7
          %v2381 = vsub.s32 %v2378, %v2380
          %v2382 = vrot.slane %v1441, %v2381
          %v2384 = vunpack.c.l.s4 1985246804
          %v2385 = vunpack.c.0.s8 %v2384
          %v2386 = vlaneseq
          %v2387 = vshrl.u32 %v2386, 7
          %v2388 = vsub.s32 %v2385, %v2387
          %v2389 = vrot.slane %v1441, %v2388
          %v2391 = vunpack.c.l.s4 839922192
          %v2392 = vunpack.c.0.s8 %v2391
          %v2393 = vlaneseq
          %v2394 = vshrl.u32 %v2393, 7
          %v2395 = vsub.s32 %v2392, %v2394
          %v2396 = vrot.slane %v1443, %v2395
          %v2398 = vunpack.c.l.s4 1985246804
          %v2399 = vunpack.c.0.s8 %v2398
          %v2400 = vlaneseq
          %v2401 = vshrl.u32 %v2400, 7
          %v2402 = vsub.s32 %v2399, %v2401
          %v2403 = vrot.slane %v1443, %v2402
          %v2405 = vunpack.c.l.s4 839922192
          %v2406 = vunpack.c.0.s8 %v2405
          %v2407 = vlaneseq
          %v2408 = vshrl.u32 %v2407, 7
          %v2409 = vsub.s32 %v2406, %v2408
          %v2410 = vrot.slane %v1445, %v2409
          %v2412 = vunpack.c.l.s4 1985246804
          %v2413 = vunpack.c.0.s8 %v2412
          %v2414 = vlaneseq
          %v2415 = vshrl.u32 %v2414, 7
          %v2416 = vsub.s32 %v2413, %v2415
          %v2417 = vrot.slane %v1445, %v2416
          %v2419 = vunpack.c.l.s4 839922192
          %v2420 = vunpack.c.0.s8 %v2419
          %v2421 = vlaneseq
          %v2422 = vshrl.u32 %v2421, 7
          %v2423 = vsub.s32 %v2420, %v2422
          %v2424 = vrot.slane %v1447, %v2423
          %v2426 = vunpack.c.l.s4 1985246804
          %v2427 = vunpack.c.0.s8 %v2426
          %v2428 = vlaneseq
          %v2429 = vshrl.u32 %v2428, 7
          %v2430 = vsub.s32 %v2427, %v2429
          %v2431 = vrot.slane %v1447, %v2430
          %v2433 = vunpack.c.l.s4 839922192
          %v2434 = vunpack.c.0.s8 %v2433
          %v2435 = vlaneseq
          %v2436 = vshrl.u32 %v2435, 7
          %v2437 = vsub.s32 %v2434, %v2436
          %v2438 = vrot.slane %v1449, %v2437
          %v2440 = vunpack.c.l.s4 1985246804
          %v2441 = vunpack.c.0.s8 %v2440
          %v2442 = vlaneseq
          %v2443 = vshrl.u32 %v2442, 7
          %v2444 = vsub.s32 %v2441, %v2443
          %v2445 = vrot.slane %v1449, %v2444
          %v2447 = vunpack.c.l.s4 839922192
          %v2448 = vunpack.c.0.s8 %v2447
          %v2449 = vlaneseq
          %v2450 = vshrl.u32 %v2449, 7
          %v2451 = vsub.s32 %v2448, %v2450
          %v2452 = vrot.slane %v1451, %v2451
          %v2454 = vunpack.c.l.s4 1985246804
          %v2455 = vunpack.c.0.s8 %v2454
          %v2456 = vlaneseq
          %v2457 = vshrl.u32 %v2456, 7
          %v2458 = vsub.s32 %v2455, %v2457
          %v2459 = vrot.slane %v1451, %v2458
          %v2461 = vunpack.c.l.s4 839922192
          %v2462 = vunpack.c.0.s8 %v2461
          %v2463 = vlaneseq
          %v2464 = vshrl.u32 %v2463, 7
          %v2465 = vsub.s32 %v2462, %v2464
          %v2466 = vrot.slane %v1453, %v2465
          %v2468 = vunpack.c.l.s4 1985246804
          %v2469 = vunpack.c.0.s8 %v2468
          %v2470 = vlaneseq
          %v2471 = vshrl.u32 %v2470, 7
          %v2472 = vsub.s32 %v2469, %v2471
          %v2473 = vrot.slane %v1453, %v2472
          %v2475 = vunpack.c.l.s4 839922192
          %v2476 = vunpack.c.0.s8 %v2475
          %v2477 = vlaneseq
          %v2478 = vshrl.u32 %v2477, 7
          %v2479 = vsub.s32 %v2476, %v2478
          %v2480 = vrot.slane %v1455, %v2479
          %v2482 = vunpack.c.l.s4 1985246804
          %v2483 = vunpack.c.0.s8 %v2482
          %v2484 = vlaneseq
          %v2485 = vshrl.u32 %v2484, 7
          %v2486 = vsub.s32 %v2483, %v2485
          %v2487 = vrot.slane %v1455, %v2486
          %v2489 = vunpack.c.l.s4 839922192
          %v2490 = vunpack.c.0.s8 %v2489
          %v2491 = vlaneseq
          %v2492 = vshrl.u32 %v2491, 7
          %v2493 = vsub.s32 %v2490, %v2492
          %v2494 = vrot.slane %v1457, %v2493
          %v2496 = vunpack.c.l.s4 1985246804
          %v2497 = vunpack.c.0.s8 %v2496
          %v2498 = vlaneseq
          %v2499 = vshrl.u32 %v2498, 7
          %v2500 = vsub.s32 %v2497, %v2499
          %v2501 = vrot.slane %v1457, %v2500
          %v2503 = vunpack.c.l.s4 839922192
          %v2504 = vunpack.c.0.s8 %v2503
          %v2505 = vlaneseq
          %v2506 = vshrl.u32 %v2505, 7
          %v2507 = vsub.s32 %v2504, %v2506
          %v2508 = vrot.slane %v1459, %v2507
          %v2510 = vunpack.c.l.s4 1985246804
          %v2511 = vunpack.c.0.s8 %v2510
          %v2512 = vlaneseq
          %v2513 = vshrl.u32 %v2512, 7
          %v2514 = vsub.s32 %v2511, %v2513
          %v2515 = vrot.slane %v1459, %v2514
          %v2517 = vunpack.c.l.s4 839922192
          %v2518 = vunpack.c.0.s8 %v2517
          %v2519 = vlaneseq
          %v2520 = vshrl.u32 %v2519, 7
          %v2521 = vsub.s32 %v2518, %v2520
          %v2522 = vrot.slane %v1461, %v2521
          %v2524 = vunpack.c.l.s4 1985246804
          %v2525 = vunpack.c.0.s8 %v2524
          %v2526 = vlaneseq
          %v2527 = vshrl.u32 %v2526, 7
          %v2528 = vsub.s32 %v2525, %v2527
          %v2529 = vrot.slane %v1461, %v2528
          %v2531 = vunpack.c.l.s4 839922192
          %v2532 = vunpack.c.0.s8 %v2531
          %v2533 = vlaneseq
          %v2534 = vshrl.u32 %v2533, 7
          %v2535 = vsub.s32 %v2532, %v2534
          %v2536 = vrot.slane %v1463, %v2535
          %v2538 = vunpack.c.l.s4 1985246804
          %v2539 = vunpack.c.0.s8 %v2538
          %v2540 = vlaneseq
          %v2541 = vshrl.u32 %v2540, 7
          %v2542 = vsub.s32 %v2539, %v2541
          %v2543 = vrot.slane %v1463, %v2542
          %v2545 = vunpack.c.l.s4 839922192
          %v2546 = vunpack.c.0.s8 %v2545
          %v2547 = vlaneseq
          %v2548 = vshrl.u32 %v2547, 7
          %v2549 = vsub.s32 %v2546, %v2548
          %v2550 = vrot.slane %v1465, %v2549
          %v2552 = vunpack.c.l.s4 1985246804
          %v2553 = vunpack.c.0.s8 %v2552
          %v2554 = vlaneseq
          %v2555 = vshrl.u32 %v2554, 7
          %v2556 = vsub.s32 %v2553, %v2555
          %v2557 = vrot.slane %v1465, %v2556
          %v2559 = vunpack.c.l.s4 839922192
          %v2560 = vunpack.c.0.s8 %v2559
          %v2561 = vlaneseq
          %v2562 = vshrl.u32 %v2561, 7
          %v2563 = vsub.s32 %v2560, %v2562
          %v2564 = vrot.slane %v1467, %v2563
          %v2566 = vunpack.c.l.s4 1985246804
          %v2567 = vunpack.c.0.s8 %v2566
          %v2568 = vlaneseq
          %v2569 = vshrl.u32 %v2568, 7
          %v2570 = vsub.s32 %v2567, %v2569
          %v2571 = vrot.slane %v1467, %v2570
          %v2573 = vunpack.c.l.s4 839922192
          %v2574 = vunpack.c.0.s8 %v2573
          %v2575 = vlaneseq
          %v2576 = vshrl.u32 %v2575, 7
          %v2577 = vsub.s32 %v2574, %v2576
          %v2578 = vrot.slane %v1469, %v2577
          %v2580 = vunpack.c.l.s4 1985246804
          %v2581 = vunpack.c.0.s8 %v2580
          %v2582 = vlaneseq
          %v2583 = vshrl.u32 %v2582, 7
          %v2584 = vsub.s32 %v2581, %v2583
          %v2585 = vrot.slane %v1469, %v2584
          %v2587 = vunpack.c.l.s4 839922192
          %v2588 = vunpack.c.0.s8 %v2587
          %v2589 = vlaneseq
          %v2590 = vshrl.u32 %v2589, 7
          %v2591 = vsub.s32 %v2588, %v2590
          %v2592 = vrot.slane %v1471, %v2591
          %v2594 = vunpack.c.l.s4 1985246804
          %v2595 = vunpack.c.0.s8 %v2594
          %v2596 = vlaneseq
          %v2597 = vshrl.u32 %v2596, 7
          %v2598 = vsub.s32 %v2595, %v2597
          %v2599 = vrot.slane %v1471, %v2598
          %v2601 = vunpack.c.l.s4 839922192
          %v2602 = vunpack.c.0.s8 %v2601
          %v2603 = vlaneseq
          %v2604 = vshrl.u32 %v2603, 7
          %v2605 = vsub.s32 %v2602, %v2604
          %v2606 = vrot.slane %v1473, %v2605
          %v2608 = vunpack.c.l.s4 1985246804
          %v2609 = vunpack.c.0.s8 %v2608
          %v2610 = vlaneseq
          %v2611 = vshrl.u32 %v2610, 7
          %v2612 = vsub.s32 %v2609, %v2611
          %v2613 = vrot.slane %v1473, %v2612
          %v2615 = vunpack.c.l.s4 839922192
          %v2616 = vunpack.c.0.s8 %v2615
          %v2617 = vlaneseq
          %v2618 = vshrl.u32 %v2617, 7
          %v2619 = vsub.s32 %v2616, %v2618
          %v2620 = vrot.slane %v1475, %v2619
          %v2622 = vunpack.c.l.s4 1985246804
          %v2623 = vunpack.c.0.s8 %v2622
          %v2624 = vlaneseq
          %v2625 = vshrl.u32 %v2624, 7
          %v2626 = vsub.s32 %v2623, %v2625
          %v2627 = vrot.slane %v1475, %v2626
          %v2629 = vunpack.c.l.s4 839922192
          %v2630 = vunpack.c.0.s8 %v2629
          %v2631 = vlaneseq
          %v2632 = vshrl.u32 %v2631, 7
          %v2633 = vsub.s32 %v2630, %v2632
          %v2634 = vrot.slane %v1477, %v2633
          %v2636 = vunpack.c.l.s4 1985246804
          %v2637 = vunpack.c.0.s8 %v2636
          %v2638 = vlaneseq
          %v2639 = vshrl.u32 %v2638, 7
          %v2640 = vsub.s32 %v2637, %v2639
          %v2641 = vrot.slane %v1477, %v2640
          %v2643 = vunpack.c.l.s4 839922192
          %v2644 = vunpack.c.0.s8 %v2643
          %v2645 = vlaneseq
          %v2646 = vshrl.u32 %v2645, 7
          %v2647 = vsub.s32 %v2644, %v2646
          %v2648 = vrot.slane %v1479, %v2647
          %v2650 = vunpack.c.l.s4 1985246804
          %v2651 = vunpack.c.0.s8 %v2650
          %v2652 = vlaneseq
          %v2653 = vshrl.u32 %v2652, 7
          %v2654 = vsub.s32 %v2651, %v2653
          %v2655 = vrot.slane %v1479, %v2654
          %v2657 = vunpack.c.l.s4 839922192
          %v2658 = vunpack.c.0.s8 %v2657
          %v2659 = vlaneseq
          %v2660 = vshrl.u32 %v2659, 7
          %v2661 = vsub.s32 %v2658, %v2660
          %v2662 = vrot.slane %v1481, %v2661
          %v2664 = vunpack.c.l.s4 1985246804
          %v2665 = vunpack.c.0.s8 %v2664
          %v2666 = vlaneseq
          %v2667 = vshrl.u32 %v2666, 7
          %v2668 = vsub.s32 %v2665, %v2667
          %v2669 = vrot.slane %v1481, %v2668
          %v2671 = vunpack.c.l.s4 839922192
          %v2672 = vunpack.c.0.s8 %v2671
          %v2673 = vlaneseq
          %v2674 = vshrl.u32 %v2673, 7
          %v2675 = vsub.s32 %v2672, %v2674
          %v2676 = vrot.slane %v1483, %v2675
          %v2678 = vunpack.c.l.s4 1985246804
          %v2679 = vunpack.c.0.s8 %v2678
          %v2680 = vlaneseq
          %v2681 = vshrl.u32 %v2680, 7
          %v2682 = vsub.s32 %v2679, %v2681
          %v2683 = vrot.slane %v1483, %v2682
          %v2685 = vunpack.c.l.s4 839922192
          %v2686 = vunpack.c.0.s8 %v2685
          %v2687 = vlaneseq
          %v2688 = vshrl.u32 %v2687, 7
          %v2689 = vsub.s32 %v2686, %v2688
          %v2690 = vrot.slane %v1485, %v2689
          %v2692 = vunpack.c.l.s4 1985246804
          %v2693 = vunpack.c.0.s8 %v2692
          %v2694 = vlaneseq
          %v2695 = vshrl.u32 %v2694, 7
          %v2696 = vsub.s32 %v2693, %v2695
          %v2697 = vrot.slane %v1485, %v2696
          %v2699 = vunpack.c.l.s4 839922192
          %v2700 = vunpack.c.0.s8 %v2699
          %v2701 = vlaneseq
          %v2702 = vshrl.u32 %v2701, 7
          %v2703 = vsub.s32 %v2700, %v2702
          %v2704 = vrot.slane %v1487, %v2703
          %v2706 = vunpack.c.l.s4 1985246804
          %v2707 = vunpack.c.0.s8 %v2706
          %v2708 = vlaneseq
          %v2709 = vshrl.u32 %v2708, 7
          %v2710 = vsub.s32 %v2707, %v2709
          %v2711 = vrot.slane %v1487, %v2710
          %v2713 = vunpack.c.l.s4 839922192
          %v2714 = vunpack.c.0.s8 %v2713
          %v2715 = vlaneseq
          %v2716 = vshrl.u32 %v2715, 7
          %v2717 = vsub.s32 %v2714, %v2716
          %v2718 = vrot.slane %v1489, %v2717
          %v2720 = vunpack.c.l.s4 1985246804
          %v2721 = vunpack.c.0.s8 %v2720
          %v2722 = vlaneseq
          %v2723 = vshrl.u32 %v2722, 7
          %v2724 = vsub.s32 %v2721, %v2723
          %v2725 = vrot.slane %v1489, %v2724
          %v2727 = vunpack.c.l.s4 839922192
          %v2728 = vunpack.c.0.s8 %v2727
          %v2729 = vlaneseq
          %v2730 = vshrl.u32 %v2729, 7
          %v2731 = vsub.s32 %v2728, %v2730
          %v2732 = vrot.slane %v1491, %v2731
          %v2734 = vunpack.c.l.s4 1985246804
          %v2735 = vunpack.c.0.s8 %v2734
          %v2736 = vlaneseq
          %v2737 = vshrl.u32 %v2736, 7
          %v2738 = vsub.s32 %v2735, %v2737
          %v2739 = vrot.slane %v1491, %v2738
          %v2741 = vunpack.c.l.s4 839922192
          %v2742 = vunpack.c.0.s8 %v2741
          %v2743 = vlaneseq
          %v2744 = vshrl.u32 %v2743, 7
          %v2745 = vsub.s32 %v2742, %v2744
          %v2746 = vrot.slane %v1493, %v2745
          %v2748 = vunpack.c.l.s4 1985246804
          %v2749 = vunpack.c.0.s8 %v2748
          %v2750 = vlaneseq
          %v2751 = vshrl.u32 %v2750, 7
          %v2752 = vsub.s32 %v2749, %v2751
          %v2753 = vrot.slane %v1493, %v2752
          %v2755 = vunpack.c.l.s4 839922192
          %v2756 = vunpack.c.0.s8 %v2755
          %v2757 = vlaneseq
          %v2758 = vshrl.u32 %v2757, 7
          %v2759 = vsub.s32 %v2756, %v2758
          %v2760 = vrot.slane %v1495, %v2759
          %v2762 = vunpack.c.l.s4 1985246804
          %v2763 = vunpack.c.0.s8 %v2762
          %v2764 = vlaneseq
          %v2765 = vshrl.u32 %v2764, 7
          %v2766 = vsub.s32 %v2763, %v2765
          %v2767 = vrot.slane %v1495, %v2766
          %v2769 = vunpack.c.l.s4 839922192
          %v2770 = vunpack.c.0.s8 %v2769
          %v2771 = vlaneseq
          %v2772 = vshrl.u32 %v2771, 7
          %v2773 = vsub.s32 %v2770, %v2772
          %v2774 = vrot.slane %v1497, %v2773
          %v2776 = vunpack.c.l.s4 1985246804
          %v2777 = vunpack.c.0.s8 %v2776
          %v2778 = vlaneseq
          %v2779 = vshrl.u32 %v2778, 7
          %v2780 = vsub.s32 %v2777, %v2779
          %v2781 = vrot.slane %v1497, %v2780
          %v2783 = vunpack.c.l.s4 839922192
          %v2784 = vunpack.c.0.s8 %v2783
          %v2785 = vlaneseq
          %v2786 = vshrl.u32 %v2785, 7
          %v2787 = vsub.s32 %v2784, %v2786
          %v2788 = vrot.slane %v1499, %v2787
          %v2790 = vunpack.c.l.s4 1985246804
          %v2791 = vunpack.c.0.s8 %v2790
          %v2792 = vlaneseq
          %v2793 = vshrl.u32 %v2792, 7
          %v2794 = vsub.s32 %v2791, %v2793
          %v2795 = vrot.slane %v1499, %v2794
          %v2797 = vunpack.c.l.s4 839922192
          %v2798 = vunpack.c.0.s8 %v2797
          %v2799 = vlaneseq
          %v2800 = vshrl.u32 %v2799, 7
          %v2801 = vsub.s32 %v2798, %v2800
          %v2802 = vrot.slane %v1501, %v2801
          %v2804 = vunpack.c.l.s4 1985246804
          %v2805 = vunpack.c.0.s8 %v2804
          %v2806 = vlaneseq
          %v2807 = vshrl.u32 %v2806, 7
          %v2808 = vsub.s32 %v2805, %v2807
          %v2809 = vrot.slane %v1501, %v2808
          %v2811 = vunpack.c.l.s4 839922192
          %v2812 = vunpack.c.0.s8 %v2811
          %v2813 = vlaneseq
          %v2814 = vshrl.u32 %v2813, 7
          %v2815 = vsub.s32 %v2812, %v2814
          %v2816 = vrot.slane %v1503, %v2815
          %v2818 = vunpack.c.l.s4 1985246804
          %v2819 = vunpack.c.0.s8 %v2818
          %v2820 = vlaneseq
          %v2821 = vshrl.u32 %v2820, 7
          %v2822 = vsub.s32 %v2819, %v2821
          %v2823 = vrot.slane %v1503, %v2822
          %v2825 = vunpack.c.l.s4 839922192
          %v2826 = vunpack.c.0.s8 %v2825
          %v2827 = vlaneseq
          %v2828 = vshrl.u32 %v2827, 7
          %v2829 = vsub.s32 %v2826, %v2828
          %v2830 = vrot.slane %v1505, %v2829
          %v2832 = vunpack.c.l.s4 1985246804
          %v2833 = vunpack.c.0.s8 %v2832
          %v2834 = vlaneseq
          %v2835 = vshrl.u32 %v2834, 7
          %v2836 = vsub.s32 %v2833, %v2835
          %v2837 = vrot.slane %v1505, %v2836
          %v2839 = vunpack.c.l.s4 839922192
          %v2840 = vunpack.c.0.s8 %v2839
          %v2841 = vlaneseq
          %v2842 = vshrl.u32 %v2841, 7
          %v2843 = vsub.s32 %v2840, %v2842
          %v2844 = vrot.slane %v1507, %v2843
          %v2846 = vunpack.c.l.s4 1985246804
          %v2847 = vunpack.c.0.s8 %v2846
          %v2848 = vlaneseq
          %v2849 = vshrl.u32 %v2848, 7
          %v2850 = vsub.s32 %v2847, %v2849
          %v2851 = vrot.slane %v1507, %v2850
          %v2853 = vunpack.c.l.s4 839922192
          %v2854 = vunpack.c.0.s8 %v2853
          %v2855 = vlaneseq
          %v2856 = vshrl.u32 %v2855, 7
          %v2857 = vsub.s32 %v2854, %v2856
          %v2858 = vrot.slane %v1509, %v2857
          %v2860 = vunpack.c.l.s4 1985246804
          %v2861 = vunpack.c.0.s8 %v2860
          %v2862 = vlaneseq
          %v2863 = vshrl.u32 %v2862, 7
          %v2864 = vsub.s32 %v2861, %v2863
          %v2865 = vrot.slane %v1509, %v2864
          %v2867 = vunpack.c.l.s4 839922192
          %v2868 = vunpack.c.0.s8 %v2867
          %v2869 = vlaneseq
          %v2870 = vshrl.u32 %v2869, 7
          %v2871 = vsub.s32 %v2868, %v2870
          %v2872 = vrot.slane %v1511, %v2871
          %v2874 = vunpack.c.l.s4 1985246804
          %v2875 = vunpack.c.0.s8 %v2874
          %v2876 = vlaneseq
          %v2877 = vshrl.u32 %v2876, 7
          %v2878 = vsub.s32 %v2875, %v2877
          %v2879 = vrot.slane %v1511, %v2878
          %v2881 = vunpack.c.l.s4 839922192
          %v2882 = vunpack.c.0.s8 %v2881
          %v2883 = vlaneseq
          %v2884 = vshrl.u32 %v2883, 7
          %v2885 = vsub.s32 %v2882, %v2884
          %v2886 = vrot.slane %v1513, %v2885
          %v2888 = vunpack.c.l.s4 1985246804
          %v2889 = vunpack.c.0.s8 %v2888
          %v2890 = vlaneseq
          %v2891 = vshrl.u32 %v2890, 7
          %v2892 = vsub.s32 %v2889, %v2891
          %v2893 = vrot.slane %v1513, %v2892
          %v2895 = vunpack.c.l.s4 839922192
          %v2896 = vunpack.c.0.s8 %v2895
          %v2897 = vlaneseq
          %v2898 = vshrl.u32 %v2897, 7
          %v2899 = vsub.s32 %v2896, %v2898
          %v2900 = vrot.slane %v1515, %v2899
          %v2902 = vunpack.c.l.s4 1985246804
          %v2903 = vunpack.c.0.s8 %v2902
          %v2904 = vlaneseq
          %v2905 = vshrl.u32 %v2904, 7
          %v2906 = vsub.s32 %v2903, %v2905
          %v2907 = vrot.slane %v1515, %v2906
          %v2909 = vunpack.c.l.s4 839922192
          %v2910 = vunpack.c.0.s8 %v2909
          %v2911 = vlaneseq
          %v2912 = vshrl.u32 %v2911, 7
          %v2913 = vsub.s32 %v2910, %v2912
          %v2914 = vrot.slane %v1517, %v2913
          %v2916 = vunpack.c.l.s4 1985246804
          %v2917 = vunpack.c.0.s8 %v2916
          %v2918 = vlaneseq
          %v2919 = vshrl.u32 %v2918, 7
          %v2920 = vsub.s32 %v2917, %v2919
          %v2921 = vrot.slane %v1517, %v2920
          %v2923 = vunpack.c.l.s4 839922192
          %v2924 = vunpack.c.0.s8 %v2923
          %v2925 = vlaneseq
          %v2926 = vshrl.u32 %v2925, 7
          %v2927 = vsub.s32 %v2924, %v2926
          %v2928 = vrot.slane %v1519, %v2927
          %v2930 = vunpack.c.l.s4 1985246804
          %v2931 = vunpack.c.0.s8 %v2930
          %v2932 = vlaneseq
          %v2933 = vshrl.u32 %v2932, 7
          %v2934 = vsub.s32 %v2931, %v2933
          %v2935 = vrot.slane %v1519, %v2934
          %v2937 = vunpack.c.l.s4 839922192
          %v2938 = vunpack.c.0.s8 %v2937
          %v2939 = vlaneseq
          %v2940 = vshrl.u32 %v2939, 7
          %v2941 = vsub.s32 %v2938, %v2940
          %v2942 = vrot.slane %v1521, %v2941
          %v2944 = vunpack.c.l.s4 1985246804
          %v2945 = vunpack.c.0.s8 %v2944
          %v2946 = vlaneseq
          %v2947 = vshrl.u32 %v2946, 7
          %v2948 = vsub.s32 %v2945, %v2947
          %v2949 = vrot.slane %v1521, %v2948
          %v2951 = vunpack.c.l.s4 839922192
          %v2952 = vunpack.c.0.s8 %v2951
          %v2953 = vlaneseq
          %v2954 = vshrl.u32 %v2953, 7
          %v2955 = vsub.s32 %v2952, %v2954
          %v2956 = vrot.slane %v1523, %v2955
          %v2958 = vunpack.c.l.s4 1985246804
          %v2959 = vunpack.c.0.s8 %v2958
          %v2960 = vlaneseq
          %v2961 = vshrl.u32 %v2960, 7
          %v2962 = vsub.s32 %v2959, %v2961
          %v2963 = vrot.slane %v1523, %v2962
          %v2965 = vunpack.c.l.s4 839922192
          %v2966 = vunpack.c.0.s8 %v2965
          %v2967 = vlaneseq
          %v2968 = vshrl.u32 %v2967, 7
          %v2969 = vsub.s32 %v2966, %v2968
          %v2970 = vrot.slane %v1525, %v2969
          %v2972 = vunpack.c.l.s4 1985246804
          %v2973 = vunpack.c.0.s8 %v2972
          %v2974 = vlaneseq
          %v2975 = vshrl.u32 %v2974, 7
          %v2976 = vsub.s32 %v2973, %v2975
          %v2977 = vrot.slane %v1525, %v2976
          %v2979 = vunpack.c.l.s4 839922192
          %v2980 = vunpack.c.0.s8 %v2979
          %v2981 = vlaneseq
          %v2982 = vshrl.u32 %v2981, 7
          %v2983 = vsub.s32 %v2980, %v2982
          %v2984 = vrot.slane %v1527, %v2983
          %v2986 = vunpack.c.l.s4 1985246804
          %v2987 = vunpack.c.0.s8 %v2986
          %v2988 = vlaneseq
          %v2989 = vshrl.u32 %v2988, 7
          %v2990 = vsub.s32 %v2987, %v2989
          %v2991 = vrot.slane %v1527, %v2990
          %v2993 = vunpack.c.l.s4 839922192
          %v2994 = vunpack.c.0.s8 %v2993
          %v2995 = vlaneseq
          %v2996 = vshrl.u32 %v2995, 7
          %v2997 = vsub.s32 %v2994, %v2996
          %v2998 = vrot.slane %v1529, %v2997
          %v3000 = vunpack.c.l.s4 1985246804
          %v3001 = vunpack.c.0.s8 %v3000
          %v3002 = vlaneseq
          %v3003 = vshrl.u32 %v3002, 7
          %v3004 = vsub.s32 %v3001, %v3003
          %v3005 = vrot.slane %v1529, %v3004
          %v3007 = vunpack.c.l.s4 839922192
          %v3008 = vunpack.c.0.s8 %v3007
          %v3009 = vlaneseq
          %v3010 = vshrl.u32 %v3009, 7
          %v3011 = vsub.s32 %v3008, %v3010
          %v3012 = vrot.slane %v1531, %v3011
          %v3014 = vunpack.c.l.s4 1985246804
          %v3015 = vunpack.c.0.s8 %v3014
          %v3016 = vlaneseq
          %v3017 = vshrl.u32 %v3016, 7
          %v3018 = vsub.s32 %v3015, %v3017
          %v3019 = vrot.slane %v1531, %v3018
          %v3021 = vunpack.c.l.s4 839922192
          %v3022 = vunpack.c.0.s8 %v3021
          %v3023 = vlaneseq
          %v3024 = vshrl.u32 %v3023, 7
          %v3025 = vsub.s32 %v3022, %v3024
          %v3026 = vrot.slane %v1533, %v3025
          %v3028 = vunpack.c.l.s4 1985246804
          %v3029 = vunpack.c.0.s8 %v3028
          %v3030 = vlaneseq
          %v3031 = vshrl.u32 %v3030, 7
          %v3032 = vsub.s32 %v3029, %v3031
          %v3033 = vrot.slane %v1533, %v3032
          %v3035 = vunpack.c.l.s4 839922192
          %v3036 = vunpack.c.0.s8 %v3035
          %v3037 = vlaneseq
          %v3038 = vshrl.u32 %v3037, 7
          %v3039 = vsub.s32 %v3036, %v3038
          %v3040 = vrot.slane %v1535, %v3039
          %v3042 = vunpack.c.l.s4 1985246804
          %v3043 = vunpack.c.0.s8 %v3042
          %v3044 = vlaneseq
          %v3045 = vshrl.u32 %v3044, 7
          %v3046 = vsub.s32 %v3043, %v3045
          %v3047 = vrot.slane %v1535, %v3046
          %v3049 = vunpack.c.l.s4 839922192
          %v3050 = vunpack.c.0.s8 %v3049
          %v3051 = vlaneseq
          %v3052 = vshrl.u32 %v3051, 7
          %v3053 = vsub.s32 %v3050, %v3052
          %v3054 = vrot.slane %v1537, %v3053
          %v3056 = vunpack.c.l.s4 1985246804
          %v3057 = vunpack.c.0.s8 %v3056
          %v3058 = vlaneseq
          %v3059 = vshrl.u32 %v3058, 7
          %v3060 = vsub.s32 %v3057, %v3059
          %v3061 = vrot.slane %v1537, %v3060
          %v3063 = vunpack.c.l.s4 839922192
          %v3064 = vunpack.c.0.s8 %v3063
          %v3065 = vlaneseq
          %v3066 = vshrl.u32 %v3065, 7
          %v3067 = vsub.s32 %v3064, %v3066
          %v3068 = vrot.slane %v1539, %v3067
          %v3070 = vunpack.c.l.s4 1985246804
          %v3071 = vunpack.c.0.s8 %v3070
          %v3072 = vlaneseq
          %v3073 = vshrl.u32 %v3072, 7
          %v3074 = vsub.s32 %v3071, %v3073
          %v3075 = vrot.slane %v1539, %v3074
          %v3077 = vunpack.c.l.s4 839922192
          %v3078 = vunpack.c.0.s8 %v3077
          %v3079 = vlaneseq
          %v3080 = vshrl.u32 %v3079, 7
          %v3081 = vsub.s32 %v3078, %v3080
          %v3082 = vrot.slane %v1541, %v3081
          %v3084 = vunpack.c.l.s4 1985246804
          %v3085 = vunpack.c.0.s8 %v3084
          %v3086 = vlaneseq
          %v3087 = vshrl.u32 %v3086, 7
          %v3088 = vsub.s32 %v3085, %v3087
          %v3089 = vrot.slane %v1541, %v3088
          %v3091 = vunpack.c.l.s4 839922192
          %v3092 = vunpack.c.0.s8 %v3091
          %v3093 = vlaneseq
          %v3094 = vshrl.u32 %v3093, 7
          %v3095 = vsub.s32 %v3092, %v3094
          %v3096 = vrot.slane %v1543, %v3095
          %v3098 = vunpack.c.l.s4 1985246804
          %v3099 = vunpack.c.0.s8 %v3098
          %v3100 = vlaneseq
          %v3101 = vshrl.u32 %v3100, 7
          %v3102 = vsub.s32 %v3099, %v3101
          %v3103 = vrot.slane %v1543, %v3102
          %v3105 = vunpack.c.l.s4 839922192
          %v3106 = vunpack.c.0.s8 %v3105
          %v3107 = vlaneseq
          %v3108 = vshrl.u32 %v3107, 7
          %v3109 = vsub.s32 %v3106, %v3108
          %v3110 = vrot.slane %v1545, %v3109
          %v3112 = vunpack.c.l.s4 1985246804
          %v3113 = vunpack.c.0.s8 %v3112
          %v3114 = vlaneseq
          %v3115 = vshrl.u32 %v3114, 7
          %v3116 = vsub.s32 %v3113, %v3115
          %v3117 = vrot.slane %v1545, %v3116
          %v3119 = vunpack.c.l.s4 839922192
          %v3120 = vunpack.c.0.s8 %v3119
          %v3121 = vlaneseq
          %v3122 = vshrl.u32 %v3121, 7
          %v3123 = vsub.s32 %v3120, %v3122
          %v3124 = vrot.slane %v1547, %v3123
          %v3126 = vunpack.c.l.s4 1985246804
          %v3127 = vunpack.c.0.s8 %v3126
          %v3128 = vlaneseq
          %v3129 = vshrl.u32 %v3128, 7
          %v3130 = vsub.s32 %v3127, %v3129
          %v3131 = vrot.slane %v1547, %v3130
          %v3133 = vunpack.c.l.s4 839922192
          %v3134 = vunpack.c.0.s8 %v3133
          %v3135 = vlaneseq
          %v3136 = vshrl.u32 %v3135, 7
          %v3137 = vsub.s32 %v3134, %v3136
          %v3138 = vrot.slane %v1549, %v3137
          %v3140 = vunpack.c.l.s4 1985246804
          %v3141 = vunpack.c.0.s8 %v3140
          %v3142 = vlaneseq
          %v3143 = vshrl.u32 %v3142, 7
          %v3144 = vsub.s32 %v3141, %v3143
          %v3145 = vrot.slane %v1549, %v3144
          %v3147 = vunpack.c.l.s4 839922192
          %v3148 = vunpack.c.0.s8 %v3147
          %v3149 = vlaneseq
          %v3150 = vshrl.u32 %v3149, 7
          %v3151 = vsub.s32 %v3148, %v3150
          %v3152 = vrot.slane %v1551, %v3151
          %v3154 = vunpack.c.l.s4 1985246804
          %v3155 = vunpack.c.0.s8 %v3154
          %v3156 = vlaneseq
          %v3157 = vshrl.u32 %v3156, 7
          %v3158 = vsub.s32 %v3155, %v3157
          %v3159 = vrot.slane %v1551, %v3158
          %v3161 = vunpack.c.l.s4 839922192
          %v3162 = vunpack.c.0.s8 %v3161
          %v3163 = vlaneseq
          %v3164 = vshrl.u32 %v3163, 7
          %v3165 = vsub.s32 %v3162, %v3164
          %v3166 = vrot.slane %v1553, %v3165
          %v3168 = vunpack.c.l.s4 1985246804
          %v3169 = vunpack.c.0.s8 %v3168
          %v3170 = vlaneseq
          %v3171 = vshrl.u32 %v3170, 7
          %v3172 = vsub.s32 %v3169, %v3171
          %v3173 = vrot.slane %v1553, %v3172
          %v3175 = vunpack.c.l.s4 839922192
          %v3176 = vunpack.c.0.s8 %v3175
          %v3177 = vlaneseq
          %v3178 = vshrl.u32 %v3177, 7
          %v3179 = vsub.s32 %v3176, %v3178
          %v3180 = vrot.slane %v1555, %v3179
          %v3182 = vunpack.c.l.s4 1985246804
          %v3183 = vunpack.c.0.s8 %v3182
          %v3184 = vlaneseq
          %v3185 = vshrl.u32 %v3184, 7
          %v3186 = vsub.s32 %v3183, %v3185
          %v3187 = vrot.slane %v1555, %v3186
          %v3189 = vunpack.c.l.s4 839922192
          %v3190 = vunpack.c.0.s8 %v3189
          %v3191 = vlaneseq
          %v3192 = vshrl.u32 %v3191, 7
          %v3193 = vsub.s32 %v3190, %v3192
          %v3194 = vrot.slane %v1557, %v3193
          %v3196 = vunpack.c.l.s4 1985246804
          %v3197 = vunpack.c.0.s8 %v3196
          %v3198 = vlaneseq
          %v3199 = vshrl.u32 %v3198, 7
          %v3200 = vsub.s32 %v3197, %v3199
          %v3201 = vrot.slane %v1557, %v3200
          %v3203 = vunpack.c.l.s4 839922192
          %v3204 = vunpack.c.0.s8 %v3203
          %v3205 = vlaneseq
          %v3206 = vshrl.u32 %v3205, 7
          %v3207 = vsub.s32 %v3204, %v3206
          %v3208 = vrot.slane %v1559, %v3207
          %v3210 = vunpack.c.l.s4 1985246804
          %v3211 = vunpack.c.0.s8 %v3210
          %v3212 = vlaneseq
          %v3213 = vshrl.u32 %v3212, 7
          %v3214 = vsub.s32 %v3211, %v3213
          %v3215 = vrot.slane %v1559, %v3214
          %v3217 = vunpack.c.l.s4 839922192
          %v3218 = vunpack.c.0.s8 %v3217
          %v3219 = vlaneseq
          %v3220 = vshrl.u32 %v3219, 7
          %v3221 = vsub.s32 %v3218, %v3220
          %v3222 = vrot.slane %v1561, %v3221
          %v3224 = vunpack.c.l.s4 1985246804
          %v3225 = vunpack.c.0.s8 %v3224
          %v3226 = vlaneseq
          %v3227 = vshrl.u32 %v3226, 7
          %v3228 = vsub.s32 %v3225, %v3227
          %v3229 = vrot.slane %v1561, %v3228
          %v3231 = vunpack.c.l.s4 839922192
          %v3232 = vunpack.c.0.s8 %v3231
          %v3233 = vlaneseq
          %v3234 = vshrl.u32 %v3233, 7
          %v3235 = vsub.s32 %v3232, %v3234
          %v3236 = vrot.slane %v1563, %v3235
          %v3238 = vunpack.c.l.s4 1985246804
          %v3239 = vunpack.c.0.s8 %v3238
          %v3240 = vlaneseq
          %v3241 = vshrl.u32 %v3240, 7
          %v3242 = vsub.s32 %v3239, %v3241
          %v3243 = vrot.slane %v1563, %v3242
          %v3245 = vunpack.c.l.s4 839922192
          %v3246 = vunpack.c.0.s8 %v3245
          %v3247 = vlaneseq
          %v3248 = vshrl.u32 %v3247, 7
          %v3249 = vsub.s32 %v3246, %v3248
          %v3250 = vrot.slane %v1565, %v3249
          %v3252 = vunpack.c.l.s4 1985246804
          %v3253 = vunpack.c.0.s8 %v3252
          %v3254 = vlaneseq
          %v3255 = vshrl.u32 %v3254, 7
          %v3256 = vsub.s32 %v3253, %v3255
          %v3257 = vrot.slane %v1565, %v3256
          %v3259 = vunpack.c.l.s4 839922192
          %v3260 = vunpack.c.0.s8 %v3259
          %v3261 = vlaneseq
          %v3262 = vshrl.u32 %v3261, 7
          %v3263 = vsub.s32 %v3260, %v3262
          %v3264 = vrot.slane %v1567, %v3263
          %v3266 = vunpack.c.l.s4 1985246804
          %v3267 = vunpack.c.0.s8 %v3266
          %v3268 = vlaneseq
          %v3269 = vshrl.u32 %v3268, 7
          %v3270 = vsub.s32 %v3267, %v3269
          %v3271 = vrot.slane %v1567, %v3270
          %v3273 = vunpack.c.l.s4 839922192
          %v3274 = vunpack.c.0.s8 %v3273
          %v3275 = vlaneseq
          %v3276 = vshrl.u32 %v3275, 7
          %v3277 = vsub.s32 %v3274, %v3276
          %v3278 = vrot.slane %v1569, %v3277
          %v3280 = vunpack.c.l.s4 1985246804
          %v3281 = vunpack.c.0.s8 %v3280
          %v3282 = vlaneseq
          %v3283 = vshrl.u32 %v3282, 7
          %v3284 = vsub.s32 %v3281, %v3283
          %v3285 = vrot.slane %v1569, %v3284
          %v3287 = vunpack.c.l.s4 839922192
          %v3288 = vunpack.c.0.s8 %v3287
          %v3289 = vlaneseq
          %v3290 = vshrl.u32 %v3289, 7
          %v3291 = vsub.s32 %v3288, %v3290
          %v3292 = vrot.slane %v1571, %v3291
          %v3294 = vunpack.c.l.s4 1985246804
          %v3295 = vunpack.c.0.s8 %v3294
          %v3296 = vlaneseq
          %v3297 = vshrl.u32 %v3296, 7
          %v3298 = vsub.s32 %v3295, %v3297
          %v3299 = vrot.slane %v1571, %v3298
          %v3301 = vunpack.c.l.s4 839922192
          %v3302 = vunpack.c.0.s8 %v3301
          %v3303 = vlaneseq
          %v3304 = vshrl.u32 %v3303, 7
          %v3305 = vsub.s32 %v3302, %v3304
          %v3306 = vrot.slane %v1573, %v3305
          %v3308 = vunpack.c.l.s4 1985246804
          %v3309 = vunpack.c.0.s8 %v3308
          %v3310 = vlaneseq
          %v3311 = vshrl.u32 %v3310, 7
          %v3312 = vsub.s32 %v3309, %v3311
          %v3313 = vrot.slane %v1573, %v3312
          %v3315 = vunpack.c.l.s4 839922192
          %v3316 = vunpack.c.0.s8 %v3315
          %v3317 = vlaneseq
          %v3318 = vshrl.u32 %v3317, 7
          %v3319 = vsub.s32 %v3316, %v3318
          %v3320 = vrot.slane %v1575, %v3319
          %v3322 = vunpack.c.l.s4 1985246804
          %v3323 = vunpack.c.0.s8 %v3322
          %v3324 = vlaneseq
          %v3325 = vshrl.u32 %v3324, 7
          %v3326 = vsub.s32 %v3323, %v3325
          %v3327 = vrot.slane %v1575, %v3326
          %v3329 = vunpack.c.l.s4 839922192
          %v3330 = vunpack.c.0.s8 %v3329
          %v3331 = vlaneseq
          %v3332 = vshrl.u32 %v3331, 7
          %v3333 = vsub.s32 %v3330, %v3332
          %v3334 = vrot.slane %v1577, %v3333
          %v3336 = vunpack.c.l.s4 1985246804
          %v3337 = vunpack.c.0.s8 %v3336
          %v3338 = vlaneseq
          %v3339 = vshrl.u32 %v3338, 7
          %v3340 = vsub.s32 %v3337, %v3339
          %v3341 = vrot.slane %v1577, %v3340
          %v3343 = vunpack.c.l.s4 839922192
          %v3344 = vunpack.c.0.s8 %v3343
          %v3345 = vlaneseq
          %v3346 = vshrl.u32 %v3345, 7
          %v3347 = vsub.s32 %v3344, %v3346
          %v3348 = vrot.slane %v1579, %v3347
          %v3350 = vunpack.c.l.s4 1985246804
          %v3351 = vunpack.c.0.s8 %v3350
          %v3352 = vlaneseq
          %v3353 = vshrl.u32 %v3352, 7
          %v3354 = vsub.s32 %v3351, %v3353
          %v3355 = vrot.slane %v1579, %v3354
          %v3357 = vunpack.c.l.s4 839922192
          %v3358 = vunpack.c.0.s8 %v3357
          %v3359 = vlaneseq
          %v3360 = vshrl.u32 %v3359, 7
          %v3361 = vsub.s32 %v3358, %v3360
          %v3362 = vrot.slane %v1581, %v3361
          %v3364 = vunpack.c.l.s4 1985246804
          %v3365 = vunpack.c.0.s8 %v3364
          %v3366 = vlaneseq
          %v3367 = vshrl.u32 %v3366, 7
          %v3368 = vsub.s32 %v3365, %v3367
          %v3369 = vrot.slane %v1581, %v3368
          %v3371 = vunpack.c.l.s4 839922192
          %v3372 = vunpack.c.0.s8 %v3371
          %v3373 = vlaneseq
          %v3374 = vshrl.u32 %v3373, 7
          %v3375 = vsub.s32 %v3372, %v3374
          %v3376 = vrot.slane %v1583, %v3375
          %v3378 = vunpack.c.l.s4 1985246804
          %v3379 = vunpack.c.0.s8 %v3378
          %v3380 = vlaneseq
          %v3381 = vshrl.u32 %v3380, 7
          %v3382 = vsub.s32 %v3379, %v3381
          %v3383 = vrot.slane %v1583, %v3382
          %v3385 = vunpack.c.l.s4 839922192
          %v3386 = vunpack.c.0.s8 %v3385
          %v3387 = vlaneseq
          %v3388 = vshrl.u32 %v3387, 7
          %v3389 = vsub.s32 %v3386, %v3388
          %v3390 = vrot.slane %v1585, %v3389
          %v3392 = vunpack.c.l.s4 1985246804
          %v3393 = vunpack.c.0.s8 %v3392
          %v3394 = vlaneseq
          %v3395 = vshrl.u32 %v3394, 7
          %v3396 = vsub.s32 %v3393, %v3395
          %v3397 = vrot.slane %v1585, %v3396
          %v3399 = vunpack.c.l.s4 839922192
          %v3400 = vunpack.c.0.s8 %v3399
          %v3401 = vlaneseq
          %v3402 = vshrl.u32 %v3401, 7
          %v3403 = vsub.s32 %v3400, %v3402
          %v3404 = vrot.slane %v1587, %v3403
          %v3406 = vunpack.c.l.s4 1985246804
          %v3407 = vunpack.c.0.s8 %v3406
          %v3408 = vlaneseq
          %v3409 = vshrl.u32 %v3408, 7
          %v3410 = vsub.s32 %v3407, %v3409
          %v3411 = vrot.slane %v1587, %v3410
          %v3413 = vunpack.c.l.s4 839922192
          %v3414 = vunpack.c.0.s8 %v3413
          %v3415 = vlaneseq
          %v3416 = vshrl.u32 %v3415, 7
          %v3417 = vsub.s32 %v3414, %v3416
          %v3418 = vrot.slane %v1589, %v3417
          %v3420 = vunpack.c.l.s4 1985246804
          %v3421 = vunpack.c.0.s8 %v3420
          %v3422 = vlaneseq
          %v3423 = vshrl.u32 %v3422, 7
          %v3424 = vsub.s32 %v3421, %v3423
          %v3425 = vrot.slane %v1589, %v3424
          %v3427 = vunpack.c.l.s4 839922192
          %v3428 = vunpack.c.0.s8 %v3427
          %v3429 = vlaneseq
          %v3430 = vshrl.u32 %v3429, 7
          %v3431 = vsub.s32 %v3428, %v3430
          %v3432 = vrot.slane %v1591, %v3431
          %v3434 = vunpack.c.l.s4 1985246804
          %v3435 = vunpack.c.0.s8 %v3434
          %v3436 = vlaneseq
          %v3437 = vshrl.u32 %v3436, 7
          %v3438 = vsub.s32 %v3435, %v3437
          %v3439 = vrot.slane %v1591, %v3438
          %v3441 = vunpack.c.l.s4 839922192
          %v3442 = vunpack.c.0.s8 %v3441
          %v3443 = vlaneseq
          %v3444 = vshrl.u32 %v3443, 7
          %v3445 = vsub.s32 %v3442, %v3444
          %v3446 = vrot.slane %v1593, %v3445
          %v3448 = vunpack.c.l.s4 1985246804
          %v3449 = vunpack.c.0.s8 %v3448
          %v3450 = vlaneseq
          %v3451 = vshrl.u32 %v3450, 7
          %v3452 = vsub.s32 %v3449, %v3451
          %v3453 = vrot.slane %v1593, %v3452
          %v3455 = vunpack.c.l.s4 839922192
          %v3456 = vunpack.c.0.s8 %v3455
          %v3457 = vlaneseq
          %v3458 = vshrl.u32 %v3457, 7
          %v3459 = vsub.s32 %v3456, %v3458
          %v3460 = vrot.slane %v1595, %v3459
          %v3462 = vunpack.c.l.s4 1985246804
          %v3463 = vunpack.c.0.s8 %v3462
          %v3464 = vlaneseq
          %v3465 = vshrl.u32 %v3464, 7
          %v3466 = vsub.s32 %v3463, %v3465
          %v3467 = vrot.slane %v1595, %v3466
          %v3469 = vunpack.c.l.s4 839922192
          %v3470 = vunpack.c.0.s8 %v3469
          %v3471 = vlaneseq
          %v3472 = vshrl.u32 %v3471, 7
          %v3473 = vsub.s32 %v3470, %v3472
          %v3474 = vrot.slane %v1597, %v3473
          %v3476 = vunpack.c.l.s4 1985246804
          %v3477 = vunpack.c.0.s8 %v3476
          %v3478 = vlaneseq
          %v3479 = vshrl.u32 %v3478, 7
          %v3480 = vsub.s32 %v3477, %v3479
          %v3481 = vrot.slane %v1597, %v3480
          %v3483 = vunpack.c.l.s4 839922192
          %v3484 = vunpack.c.0.s8 %v3483
          %v3485 = vlaneseq
          %v3486 = vshrl.u32 %v3485, 7
          %v3487 = vsub.s32 %v3484, %v3486
          %v3488 = vrot.slane %v1599, %v3487
          %v3490 = vunpack.c.l.s4 1985246804
          %v3491 = vunpack.c.0.s8 %v3490
          %v3492 = vlaneseq
          %v3493 = vshrl.u32 %v3492, 7
          %v3494 = vsub.s32 %v3491, %v3493
          %v3495 = vrot.slane %v1599, %v3494
          %v3497 = vunpack.c.l.s4 839922192
          %v3498 = vunpack.c.0.s8 %v3497
          %v3499 = vlaneseq
          %v3500 = vshrl.u32 %v3499, 7
          %v3501 = vsub.s32 %v3498, %v3500
          %v3502 = vrot.slane %v1601, %v3501
          %v3504 = vunpack.c.l.s4 1985246804
          %v3505 = vunpack.c.0.s8 %v3504
          %v3506 = vlaneseq
          %v3507 = vshrl.u32 %v3506, 7
          %v3508 = vsub.s32 %v3505, %v3507
          %v3509 = vrot.slane %v1601, %v3508
          %v3511 = vunpack.c.l.s4 839922192
          %v3512 = vunpack.c.0.s8 %v3511
          %v3513 = vlaneseq
          %v3514 = vshrl.u32 %v3513, 7
          %v3515 = vsub.s32 %v3512, %v3514
          %v3516 = vrot.slane %v1603, %v3515
          %v3518 = vunpack.c.l.s4 1985246804
          %v3519 = vunpack.c.0.s8 %v3518
          %v3520 = vlaneseq
          %v3521 = vshrl.u32 %v3520, 7
          %v3522 = vsub.s32 %v3519, %v3521
          %v3523 = vrot.slane %v1603, %v3522
          %v3524 = vcombine.low %v1738, %v1745
          %v3525 = vcombine.low %v1752, %v1759
          %v3526 = vcombine.low %v1766, %v1773
          %v3527 = vcombine.low %v1780, %v1787
          %v3528 = vcombine.low %v1794, %v1801
          %v3529 = vcombine.low %v1808, %v1815
          %v3530 = vcombine.low %v1822, %v1829
          %v3531 = vcombine.low %v1836, %v1843
          %v3532 = vcombine.low %v1850, %v1857
          %v3533 = vcombine.low %v1864, %v1871
          %v3534 = vcombine.low %v1878, %v1885
          %v3535 = vcombine.low %v1892, %v1899
          %v3536 = vcombine.low %v1906, %v1913
          %v3537 = vcombine.low %v1920, %v1927
          %v3538 = vcombine.low %v1934, %v1941
          %v3539 = vcombine.low %v1948, %v1955
          %v3540 = vcombine.low %v1962, %v1969
          %v3541 = vcombine.low %v1976, %v1983
          %v3542 = vcombine.low %v1990, %v1997
          %v3543 = vcombine.low %v2004, %v2011
          %v3544 = vcombine.low %v2018, %v2025
          %v3545 = vcombine.low %v2032, %v2039
          %v3546 = vcombine.low %v2046, %v2053
          %v3547 = vcombine.low %v2060, %v2067
          %v3548 = vcombine.low %v2074, %v2081
          %v3549 = vcombine.low %v2088, %v2095
          %v3550 = vcombine.low %v2102, %v2109
          %v3551 = vcombine.low %v2116, %v2123
          %v3552 = vcombine.low %v2130, %v2137
          %v3553 = vcombine.low %v2144, %v2151
          %v3554 = vcombine.low %v2158, %v2165
          %v3555 = vcombine.low %v2172, %v2179
          %v3556 = vcombine.low %v2186, %v2193
          %v3557 = vcombine.low %v2200, %v2207
          %v3558 = vcombine.low %v2214, %v2221
          %v3559 = vcombine.low %v2228, %v2235
          %v3560 = vcombine.low %v2242, %v2249
          %v3561 = vcombine.low %v2256, %v2263
          %v3562 = vcombine.low %v2270, %v2277
          %v3563 = vcombine.low %v2284, %v2291
          %v3564 = vcombine.low %v2298, %v2305
          %v3565 = vcombine.low %v2312, %v2319
          %v3566 = vcombine.low %v2326, %v2333
          %v3567 = vcombine.low %v2340, %v2347
          %v3568 = vcombine.low %v2354, %v2361
          %v3569 = vcombine.low %v2368, %v2375
          %v3570 = vcombine.low %v2382, %v2389
          %v3571 = vcombine.low %v2396, %v2403
          %v3572 = vcombine.low %v2410, %v2417
          %v3573 = vcombine.low %v2424, %v2431
          %v3574 = vcombine.low %v2438, %v2445
          %v3575 = vcombine.low %v2452, %v2459
          %v3576 = vcombine.low %v2466, %v2473
          %v3577 = vcombine.low %v2480, %v2487
          %v3578 = vcombine.low %v2494, %v2501
          %v3579 = vcombine.low %v2508, %v2515
          %v3580 = vcombine.low %v2522, %v2529
          %v3581 = vcombine.low %v2536, %v2543
          %v3582 = vcombine.low %v2550, %v2557
          %v3583 = vcombine.low %v2564, %v2571
          %v3584 = vcombine.low %v2578, %v2585
          %v3585 = vcombine.low %v2592, %v2599
          %v3586 = vcombine.low %v2606, %v2613
          %v3587 = vcombine.low %v2620, %v2627
          %v3588 = vcombine.low %v2634, %v2641
          %v3589 = vcombine.low %v2648, %v2655
          %v3590 = vcombine.low %v2662, %v2669
          %v3591 = vcombine.low %v2676, %v2683
          %v3592 = vcombine.low %v2690, %v2697
          %v3593 = vcombine.low %v2704, %v2711
          %v3594 = vcombine.low %v2718, %v2725
          %v3595 = vcombine.low %v2732, %v2739
          %v3596 = vcombine.low %v2746, %v2753
          %v3597 = vcombine.low %v2760, %v2767
          %v3598 = vcombine.low %v2774, %v2781
          %v3599 = vcombine.low %v2788, %v2795
          %v3600 = vcombine.low %v2802, %v2809
          %v3601 = vcombine.low %v2816, %v2823
          %v3602 = vcombine.low %v2830, %v2837
          %v3603 = vcombine.low %v2844, %v2851
          %v3604 = vcombine.low %v2858, %v2865
          %v3605 = vcombine.low %v2872, %v2879
          %v3606 = vcombine.low %v2886, %v2893
          %v3607 = vcombine.low %v2900, %v2907
          %v3608 = vcombine.low %v2914, %v2921
          %v3609 = vcombine.low %v2928, %v2935
          %v3610 = vcombine.low %v2942, %v2949
          %v3611 = vcombine.low %v2956, %v2963
          %v3612 = vcombine.low %v2970, %v2977
          %v3613 = vcombine.low %v2984, %v2991
          %v3614 = vcombine.low %v2998, %v3005
          %v3615 = vcombine.low %v3012, %v3019
          %v3616 = vcombine.low %v3026, %v3033
          %v3617 = vcombine.low %v3040, %v3047
          %v3618 = vcombine.low %v3054, %v3061
          %v3619 = vcombine.low %v3068, %v3075
          %v3620 = vcombine.low %v3082, %v3089
          %v3621 = vcombine.low %v3096, %v3103
          %v3622 = vcombine.low %v3110, %v3117
          %v3623 = vcombine.low %v3124, %v3131
          %v3624 = vcombine.low %v3138, %v3145
          %v3625 = vcombine.low %v3152, %v3159
          %v3626 = vcombine.low %v3166, %v3173
          %v3627 = vcombine.low %v3180, %v3187
          %v3628 = vcombine.low %v3194, %v3201
          %v3629 = vcombine.low %v3208, %v3215
          %v3630 = vcombine.low %v3222, %v3229
          %v3631 = vcombine.low %v3236, %v3243
          %v3632 = vcombine.low %v3250, %v3257
          %v3633 = vcombine.low %v3264, %v3271
          %v3634 = vcombine.low %v3278, %v3285
          %v3635 = vcombine.low %v3292, %v3299
          %v3636 = vcombine.low %v3306, %v3313
          %v3637 = vcombine.low %v3320, %v3327
          %v3638 = vcombine.low %v3334, %v3341
          %v3639 = vcombine.low %v3348, %v3355
          %v3640 = vcombine.low %v3362, %v3369
          %v3641 = vcombine.low %v3376, %v3383
          %v3642 = vcombine.low %v3390, %v3397
          %v3643 = vcombine.low %v3404, %v3411
          %v3644 = vcombine.low %v3418, %v3425
          %v3645 = vcombine.low %v3432, %v3439
          %v3646 = vcombine.low %v3446, %v3453
          %v3647 = vcombine.low %v3460, %v3467
          %v3648 = vcombine.low %v3474, %v3481
          %v3649 = vcombine.low %v3488, %v3495
          %v3650 = vcombine.low %v3502, %v3509
          %v3651 = vcombine.low %v3516, %v3523
          %3652 = vset.pattern.permute.xlu0 0
          %3653 = vperm.xlu0 %3652, %v3524
          %v3654 = vpop.permute.xlu0 %3653
          %3655 = vset.pattern.permute.xlu0 0
          %3656 = vperm.xlu0 %3655, %v3525
          %v3657 = vpop.permute.xlu0 %3656
          %3658 = vset.pattern.permute.xlu0 0
          %3659 = vperm.xlu0 %3658, %v3526
          %v3660 = vpop.permute.xlu0 %3659
          %3661 = vset.pattern.permute.xlu0 0
          %3662 = vperm.xlu0 %3661, %v3527
          %v3663 = vpop.permute.xlu0 %3662
          %3664 = vset.pattern.permute.xlu0 0
          %3665 = vperm.xlu0 %3664, %v3528
          %v3666 = vpop.permute.xlu0 %3665
          %3667 = vset.pattern.permute.xlu0 0
          %3668 = vperm.xlu0 %3667, %v3529
          %v3669 = vpop.permute.xlu0 %3668
          %3670 = vset.pattern.permute.xlu0 0
          %3671 = vperm.xlu0 %3670, %v3530
          %v3672 = vpop.permute.xlu0 %3671
          %3673 = vset.pattern.permute.xlu0 0
          %3674 = vperm.xlu0 %3673, %v3531
          %v3675 = vpop.permute.xlu0 %3674
          %3676 = vset.pattern.permute.xlu0 0
          %3677 = vperm.xlu0 %3676, %v3532
          %v3678 = vpop.permute.xlu0 %3677
          %3679 = vset.pattern.permute.xlu0 0
          %3680 = vperm.xlu0 %3679, %v3533
          %v3681 = vpop.permute.xlu0 %3680
          %3682 = vset.pattern.permute.xlu0 0
          %3683 = vperm.xlu0 %3682, %v3534
          %v3684 = vpop.permute.xlu0 %3683
          %3685 = vset.pattern.permute.xlu0 0
          %3686 = vperm.xlu0 %3685, %v3535
          %v3687 = vpop.permute.xlu0 %3686
          %3688 = vset.pattern.permute.xlu0 0
          %3689 = vperm.xlu0 %3688, %v3536
          %v3690 = vpop.permute.xlu0 %3689
          %3691 = vset.pattern.permute.xlu0 0
          %3692 = vperm.xlu0 %3691, %v3537
          %v3693 = vpop.permute.xlu0 %3692
          %3694 = vset.pattern.permute.xlu0 0
          %3695 = vperm.xlu0 %3694, %v3538
          %v3696 = vpop.permute.xlu0 %3695
          %3697 = vset.pattern.permute.xlu0 0
          %3698 = vperm.xlu0 %3697, %v3539
          %v3699 = vpop.permute.xlu0 %3698
          %3700 = vset.pattern.permute.xlu0 0
          %3701 = vperm.xlu0 %3700, %v3540
          %v3702 = vpop.permute.xlu0 %3701
          %3703 = vset.pattern.permute.xlu0 0
          %3704 = vperm.xlu0 %3703, %v3541
          %v3705 = vpop.permute.xlu0 %3704
          %3706 = vset.pattern.permute.xlu0 0
          %3707 = vperm.xlu0 %3706, %v3542
          %v3708 = vpop.permute.xlu0 %3707
          %3709 = vset.pattern.permute.xlu0 0
          %3710 = vperm.xlu0 %3709, %v3543
          %v3711 = vpop.permute.xlu0 %3710
          %3712 = vset.pattern.permute.xlu0 0
          %3713 = vperm.xlu0 %3712, %v3544
          %v3714 = vpop.permute.xlu0 %3713
          %3715 = vset.pattern.permute.xlu0 0
          %3716 = vperm.xlu0 %3715, %v3545
          %v3717 = vpop.permute.xlu0 %3716
          %3718 = vset.pattern.permute.xlu0 0
          %3719 = vperm.xlu0 %3718, %v3546
          %v3720 = vpop.permute.xlu0 %3719
          %3721 = vset.pattern.permute.xlu0 0
          %3722 = vperm.xlu0 %3721, %v3547
          %v3723 = vpop.permute.xlu0 %3722
          %3724 = vset.pattern.permute.xlu0 0
          %3725 = vperm.xlu0 %3724, %v3548
          %v3726 = vpop.permute.xlu0 %3725
          %3727 = vset.pattern.permute.xlu0 0
          %3728 = vperm.xlu0 %3727, %v3549
          %v3729 = vpop.permute.xlu0 %3728
          %3730 = vset.pattern.permute.xlu0 0
          %3731 = vperm.xlu0 %3730, %v3550
          %v3732 = vpop.permute.xlu0 %3731
          %3733 = vset.pattern.permute.xlu0 0
          %3734 = vperm.xlu0 %3733, %v3551
          %v3735 = vpop.permute.xlu0 %3734
          %3736 = vset.pattern.permute.xlu0 0
          %3737 = vperm.xlu0 %3736, %v3552
          %v3738 = vpop.permute.xlu0 %3737
          %3739 = vset.pattern.permute.xlu0 0
          %3740 = vperm.xlu0 %3739, %v3553
          %v3741 = vpop.permute.xlu0 %3740
          %3742 = vset.pattern.permute.xlu0 0
          %3743 = vperm.xlu0 %3742, %v3554
          %v3744 = vpop.permute.xlu0 %3743
          %3745 = vset.pattern.permute.xlu0 0
          %3746 = vperm.xlu0 %3745, %v3555
          %v3747 = vpop.permute.xlu0 %3746
          %3748 = vset.pattern.permute.xlu0 0
          %3749 = vperm.xlu0 %3748, %v3556
          %v3750 = vpop.permute.xlu0 %3749
          %3751 = vset.pattern.permute.xlu0 0
          %3752 = vperm.xlu0 %3751, %v3557
          %v3753 = vpop.permute.xlu0 %3752
          %3754 = vset.pattern.permute.xlu0 0
          %3755 = vperm.xlu0 %3754, %v3558
          %v3756 = vpop.permute.xlu0 %3755
          %3757 = vset.pattern.permute.xlu0 0
          %3758 = vperm.xlu0 %3757, %v3559
          %v3759 = vpop.permute.xlu0 %3758
          %3760 = vset.pattern.permute.xlu0 0
          %3761 = vperm.xlu0 %3760, %v3560
          %v3762 = vpop.permute.xlu0 %3761
          %3763 = vset.pattern.permute.xlu0 0
          %3764 = vperm.xlu0 %3763, %v3561
          %v3765 = vpop.permute.xlu0 %3764
          %3766 = vset.pattern.permute.xlu0 0
          %3767 = vperm.xlu0 %3766, %v3562
          %v3768 = vpop.permute.xlu0 %3767
          %3769 = vset.pattern.permute.xlu0 0
          %3770 = vperm.xlu0 %3769, %v3563
          %v3771 = vpop.permute.xlu0 %3770
          %3772 = vset.pattern.permute.xlu0 0
          %3773 = vperm.xlu0 %3772, %v3564
          %v3774 = vpop.permute.xlu0 %3773
          %3775 = vset.pattern.permute.xlu0 0
          %3776 = vperm.xlu0 %3775, %v3565
          %v3777 = vpop.permute.xlu0 %3776
          %3778 = vset.pattern.permute.xlu0 0
          %3779 = vperm.xlu0 %3778, %v3566
          %v3780 = vpop.permute.xlu0 %3779
          %3781 = vset.pattern.permute.xlu0 0
          %3782 = vperm.xlu0 %3781, %v3567
          %v3783 = vpop.permute.xlu0 %3782
          %3784 = vset.pattern.permute.xlu0 0
          %3785 = vperm.xlu0 %3784, %v3568
          %v3786 = vpop.permute.xlu0 %3785
          %3787 = vset.pattern.permute.xlu0 0
          %3788 = vperm.xlu0 %3787, %v3569
          %v3789 = vpop.permute.xlu0 %3788
          %3790 = vset.pattern.permute.xlu0 0
          %3791 = vperm.xlu0 %3790, %v3570
          %v3792 = vpop.permute.xlu0 %3791
          %3793 = vset.pattern.permute.xlu0 0
          %3794 = vperm.xlu0 %3793, %v3571
          %v3795 = vpop.permute.xlu0 %3794
          %3796 = vset.pattern.permute.xlu0 0
          %3797 = vperm.xlu0 %3796, %v3572
          %v3798 = vpop.permute.xlu0 %3797
          %3799 = vset.pattern.permute.xlu0 0
          %3800 = vperm.xlu0 %3799, %v3573
          %v3801 = vpop.permute.xlu0 %3800
          %3802 = vset.pattern.permute.xlu0 0
          %3803 = vperm.xlu0 %3802, %v3574
          %v3804 = vpop.permute.xlu0 %3803
          %3805 = vset.pattern.permute.xlu0 0
          %3806 = vperm.xlu0 %3805, %v3575
          %v3807 = vpop.permute.xlu0 %3806
          %3808 = vset.pattern.permute.xlu0 0
          %3809 = vperm.xlu0 %3808, %v3576
          %v3810 = vpop.permute.xlu0 %3809
          %3811 = vset.pattern.permute.xlu0 0
          %3812 = vperm.xlu0 %3811, %v3577
          %v3813 = vpop.permute.xlu0 %3812
          %3814 = vset.pattern.permute.xlu0 0
          %3815 = vperm.xlu0 %3814, %v3578
          %v3816 = vpop.permute.xlu0 %3815
          %3817 = vset.pattern.permute.xlu0 0
          %3818 = vperm.xlu0 %3817, %v3579
          %v3819 = vpop.permute.xlu0 %3818
          %3820 = vset.pattern.permute.xlu0 0
          %3821 = vperm.xlu0 %3820, %v3580
          %v3822 = vpop.permute.xlu0 %3821
          %3823 = vset.pattern.permute.xlu0 0
          %3824 = vperm.xlu0 %3823, %v3581
          %v3825 = vpop.permute.xlu0 %3824
          %3826 = vset.pattern.permute.xlu0 0
          %3827 = vperm.xlu0 %3826, %v3582
          %v3828 = vpop.permute.xlu0 %3827
          %3829 = vset.pattern.permute.xlu0 0
          %3830 = vperm.xlu0 %3829, %v3583
          %v3831 = vpop.permute.xlu0 %3830
          %3832 = vset.pattern.permute.xlu0 0
          %3833 = vperm.xlu0 %3832, %v3584
          %v3834 = vpop.permute.xlu0 %3833
          %3835 = vset.pattern.permute.xlu0 0
          %3836 = vperm.xlu0 %3835, %v3585
          %v3837 = vpop.permute.xlu0 %3836
          %3838 = vset.pattern.permute.xlu0 0
          %3839 = vperm.xlu0 %3838, %v3586
          %v3840 = vpop.permute.xlu0 %3839
          %3841 = vset.pattern.permute.xlu0 0
          %3842 = vperm.xlu0 %3841, %v3587
          %v3843 = vpop.permute.xlu0 %3842
          %3844 = vset.pattern.permute.xlu0 0
          %3845 = vperm.xlu0 %3844, %v3588
          %v3846 = vpop.permute.xlu0 %3845
          %3847 = vset.pattern.permute.xlu0 0
          %3848 = vperm.xlu0 %3847, %v3589
          %v3849 = vpop.permute.xlu0 %3848
          %3850 = vset.pattern.permute.xlu0 0
          %3851 = vperm.xlu0 %3850, %v3590
          %v3852 = vpop.permute.xlu0 %3851
          %3853 = vset.pattern.permute.xlu0 0
          %3854 = vperm.xlu0 %3853, %v3591
          %v3855 = vpop.permute.xlu0 %3854
          %3856 = vset.pattern.permute.xlu0 0
          %3857 = vperm.xlu0 %3856, %v3592
          %v3858 = vpop.permute.xlu0 %3857
          %3859 = vset.pattern.permute.xlu0 0
          %3860 = vperm.xlu0 %3859, %v3593
          %v3861 = vpop.permute.xlu0 %3860
          %3862 = vset.pattern.permute.xlu0 0
          %3863 = vperm.xlu0 %3862, %v3594
          %v3864 = vpop.permute.xlu0 %3863
          %3865 = vset.pattern.permute.xlu0 0
          %3866 = vperm.xlu0 %3865, %v3595
          %v3867 = vpop.permute.xlu0 %3866
          %3868 = vset.pattern.permute.xlu0 0
          %3869 = vperm.xlu0 %3868, %v3596
          %v3870 = vpop.permute.xlu0 %3869
          %3871 = vset.pattern.permute.xlu0 0
          %3872 = vperm.xlu0 %3871, %v3597
          %v3873 = vpop.permute.xlu0 %3872
          %3874 = vset.pattern.permute.xlu0 0
          %3875 = vperm.xlu0 %3874, %v3598
          %v3876 = vpop.permute.xlu0 %3875
          %3877 = vset.pattern.permute.xlu0 0
          %3878 = vperm.xlu0 %3877, %v3599
          %v3879 = vpop.permute.xlu0 %3878
          %3880 = vset.pattern.permute.xlu0 0
          %3881 = vperm.xlu0 %3880, %v3600
          %v3882 = vpop.permute.xlu0 %3881
          %3883 = vset.pattern.permute.xlu0 0
          %3884 = vperm.xlu0 %3883, %v3601
          %v3885 = vpop.permute.xlu0 %3884
          %3886 = vset.pattern.permute.xlu0 0
          %3887 = vperm.xlu0 %3886, %v3602
          %v3888 = vpop.permute.xlu0 %3887
          %3889 = vset.pattern.permute.xlu0 0
          %3890 = vperm.xlu0 %3889, %v3603
          %v3891 = vpop.permute.xlu0 %3890
          %3892 = vset.pattern.permute.xlu0 0
          %3893 = vperm.xlu0 %3892, %v3604
          %v3894 = vpop.permute.xlu0 %3893
          %3895 = vset.pattern.permute.xlu0 0
          %3896 = vperm.xlu0 %3895, %v3605
          %v3897 = vpop.permute.xlu0 %3896
          %3898 = vset.pattern.permute.xlu0 0
          %3899 = vperm.xlu0 %3898, %v3606
          %v3900 = vpop.permute.xlu0 %3899
          %3901 = vset.pattern.permute.xlu0 0
          %3902 = vperm.xlu0 %3901, %v3607
          %v3903 = vpop.permute.xlu0 %3902
          %3904 = vset.pattern.permute.xlu0 0
          %3905 = vperm.xlu0 %3904, %v3608
          %v3906 = vpop.permute.xlu0 %3905
          %3907 = vset.pattern.permute.xlu0 0
          %3908 = vperm.xlu0 %3907, %v3609
          %v3909 = vpop.permute.xlu0 %3908
          %3910 = vset.pattern.permute.xlu0 0
          %3911 = vperm.xlu0 %3910, %v3610
          %v3912 = vpop.permute.xlu0 %3911
          %3913 = vset.pattern.permute.xlu0 0
          %3914 = vperm.xlu0 %3913, %v3611
          %v3915 = vpop.permute.xlu0 %3914
          %3916 = vset.pattern.permute.xlu0 0
          %3917 = vperm.xlu0 %3916, %v3612
          %v3918 = vpop.permute.xlu0 %3917
          %3919 = vset.pattern.permute.xlu0 0
          %3920 = vperm.xlu0 %3919, %v3613
          %v3921 = vpop.permute.xlu0 %3920
          %3922 = vset.pattern.permute.xlu0 0
          %3923 = vperm.xlu0 %3922, %v3614
          %v3924 = vpop.permute.xlu0 %3923
          %3925 = vset.pattern.permute.xlu0 0
          %3926 = vperm.xlu0 %3925, %v3615
          %v3927 = vpop.permute.xlu0 %3926
          %3928 = vset.pattern.permute.xlu0 0
          %3929 = vperm.xlu0 %3928, %v3616
          %v3930 = vpop.permute.xlu0 %3929
          %3931 = vset.pattern.permute.xlu0 0
          %3932 = vperm.xlu0 %3931, %v3617
          %v3933 = vpop.permute.xlu0 %3932
          %3934 = vset.pattern.permute.xlu0 0
          %3935 = vperm.xlu0 %3934, %v3618
          %v3936 = vpop.permute.xlu0 %3935
          %3937 = vset.pattern.permute.xlu0 0
          %3938 = vperm.xlu0 %3937, %v3619
          %v3939 = vpop.permute.xlu0 %3938
          %3940 = vset.pattern.permute.xlu0 0
          %3941 = vperm.xlu0 %3940, %v3620
          %v3942 = vpop.permute.xlu0 %3941
          %3943 = vset.pattern.permute.xlu0 0
          %3944 = vperm.xlu0 %3943, %v3621
          %v3945 = vpop.permute.xlu0 %3944
          %3946 = vset.pattern.permute.xlu0 0
          %3947 = vperm.xlu0 %3946, %v3622
          %v3948 = vpop.permute.xlu0 %3947
          %3949 = vset.pattern.permute.xlu0 0
          %3950 = vperm.xlu0 %3949, %v3623
          %v3951 = vpop.permute.xlu0 %3950
          %3952 = vset.pattern.permute.xlu0 0
          %3953 = vperm.xlu0 %3952, %v3624
          %v3954 = vpop.permute.xlu0 %3953
          %3955 = vset.pattern.permute.xlu0 0
          %3956 = vperm.xlu0 %3955, %v3625
          %v3957 = vpop.permute.xlu0 %3956
          %3958 = vset.pattern.permute.xlu0 0
          %3959 = vperm.xlu0 %3958, %v3626
          %v3960 = vpop.permute.xlu0 %3959
          %3961 = vset.pattern.permute.xlu0 0
          %3962 = vperm.xlu0 %3961, %v3627
          %v3963 = vpop.permute.xlu0 %3962
          %3964 = vset.pattern.permute.xlu0 0
          %3965 = vperm.xlu0 %3964, %v3628
          %v3966 = vpop.permute.xlu0 %3965
          %3967 = vset.pattern.permute.xlu0 0
          %3968 = vperm.xlu0 %3967, %v3629
          %v3969 = vpop.permute.xlu0 %3968
          %3970 = vset.pattern.permute.xlu0 0
          %3971 = vperm.xlu0 %3970, %v3630
          %v3972 = vpop.permute.xlu0 %3971
          %3973 = vset.pattern.permute.xlu0 0
          %3974 = vperm.xlu0 %3973, %v3631
          %v3975 = vpop.permute.xlu0 %3974
          %3976 = vset.pattern.permute.xlu0 0
          %3977 = vperm.xlu0 %3976, %v3632
          %v3978 = vpop.permute.xlu0 %3977
          %3979 = vset.pattern.permute.xlu0 0
          %3980 = vperm.xlu0 %3979, %v3633
          %v3981 = vpop.permute.xlu0 %3980
          %3982 = vset.pattern.permute.xlu0 0
          %3983 = vperm.xlu0 %3982, %v3634
          %v3984 = vpop.permute.xlu0 %3983
          %3985 = vset.pattern.permute.xlu0 0
          %3986 = vperm.xlu0 %3985, %v3635
          %v3987 = vpop.permute.xlu0 %3986
          %3988 = vset.pattern.permute.xlu0 0
          %3989 = vperm.xlu0 %3988, %v3636
          %v3990 = vpop.permute.xlu0 %3989
          %3991 = vset.pattern.permute.xlu0 0
          %3992 = vperm.xlu0 %3991, %v3637
          %v3993 = vpop.permute.xlu0 %3992
          %3994 = vset.pattern.permute.xlu0 0
          %3995 = vperm.xlu0 %3994, %v3638
          %v3996 = vpop.permute.xlu0 %3995
          %3997 = vset.pattern.permute.xlu0 0
          %3998 = vperm.xlu0 %3997, %v3639
          %v3999 = vpop.permute.xlu0 %3998
          %4000 = vset.pattern.permute.xlu0 0
          %4001 = vperm.xlu0 %4000, %v3640
          %v4002 = vpop.permute.xlu0 %4001
          %4003 = vset.pattern.permute.xlu0 0
          %4004 = vperm.xlu0 %4003, %v3641
          %v4005 = vpop.permute.xlu0 %4004
          %4006 = vset.pattern.permute.xlu0 0
          %4007 = vperm.xlu0 %4006, %v3642
          %v4008 = vpop.permute.xlu0 %4007
          %4009 = vset.pattern.permute.xlu0 0
          %4010 = vperm.xlu0 %4009, %v3643
          %v4011 = vpop.permute.xlu0 %4010
          %4012 = vset.pattern.permute.xlu0 0
          %4013 = vperm.xlu0 %4012, %v3644
          %v4014 = vpop.permute.xlu0 %4013
          %4015 = vset.pattern.permute.xlu0 0
          %4016 = vperm.xlu0 %4015, %v3645
          %v4017 = vpop.permute.xlu0 %4016
          %4018 = vset.pattern.permute.xlu0 0
          %4019 = vperm.xlu0 %4018, %v3646
          %v4020 = vpop.permute.xlu0 %4019
          %4021 = vset.pattern.permute.xlu0 0
          %4022 = vperm.xlu0 %4021, %v3647
          %v4023 = vpop.permute.xlu0 %4022
          %4024 = vset.pattern.permute.xlu0 0
          %4025 = vperm.xlu0 %4024, %v3648
          %v4026 = vpop.permute.xlu0 %4025
          %4027 = vset.pattern.permute.xlu0 0
          %4028 = vperm.xlu0 %4027, %v3649
          %v4029 = vpop.permute.xlu0 %4028
          %4030 = vset.pattern.permute.xlu0 0
          %4031 = vperm.xlu0 %4030, %v3650
          %v4032 = vpop.permute.xlu0 %4031
          %4033 = vset.pattern.permute.xlu0 0
          %4034 = vperm.xlu0 %4033, %v3651
          %v4035 = vpop.permute.xlu0 %4034
          %v4036 = vlaneseq
          %v4037 = vand.u32 %v4036, 127
          %v4038 = vlaneseq
          %v4039 = vshrl.u32 %v4038, 7
          %v4040 = vsub.s32 %v4037, %v4039
          %v4041 = vrot.slane %v3654, %v4040
          %v4042 = vadd.s32 %v4037, 4294967288
          %v4043 = vlaneseq
          %v4044 = vshrl.u32 %v4043, 7
          %v4045 = vsub.s32 %v4042, %v4044
          %v4046 = vrot.slane %v3657, %v4045
          %vm4047 = vcmask 130112
          %v4048 = vsel %vm4047, %v4046, %v4041
          %v4049 = vadd.s32 %v4037, 4294967280
          %v4050 = vlaneseq
          %v4051 = vshrl.u32 %v4050, 7
          %v4052 = vsub.s32 %v4049, %v4051
          %v4053 = vrot.slane %v3660, %v4052
          %vm4054 = vcmask 195712
          %v4055 = vsel %vm4054, %v4053, %v4048
          %v4056 = vadd.s32 %v4037, 4294967272
          %v4057 = vlaneseq
          %v4058 = vshrl.u32 %v4057, 7
          %v4059 = vsub.s32 %v4056, %v4058
          %v4060 = vrot.slane %v3663, %v4059
          %vm4061 = vcmask 261312
          %v4062 = vsel %vm4061, %v4060, %v4055
          %v4063 = vadd.s32 %v4037, 4294967264
          %v4064 = vlaneseq
          %v4065 = vshrl.u32 %v4064, 7
          %v4066 = vsub.s32 %v4063, %v4065
          %v4067 = vrot.slane %v3666, %v4066
          %vm4068 = vcmask 326912
          %v4069 = vsel %vm4068, %v4067, %v4062
          %v4070 = vadd.s32 %v4037, 4294967256
          %v4071 = vlaneseq
          %v4072 = vshrl.u32 %v4071, 7
          %v4073 = vsub.s32 %v4070, %v4072
          %v4074 = vrot.slane %v3669, %v4073
          %vm4075 = vcmask 392512
          %v4076 = vsel %vm4075, %v4074, %v4069
          %v4077 = vadd.s32 %v4037, 4294967248
          %v4078 = vlaneseq
          %v4079 = vshrl.u32 %v4078, 7
          %v4080 = vsub.s32 %v4077, %v4079
          %v4081 = vrot.slane %v3672, %v4080
          %vm4082 = vcmask 458112
          %v4083 = vsel %vm4082, %v4081, %v4076
          %v4084 = vadd.s32 %v4037, 4294967240
          %v4085 = vlaneseq
          %v4086 = vshrl.u32 %v4085, 7
          %v4087 = vsub.s32 %v4084, %v4086
          %v4088 = vrot.slane %v3675, %v4087
          %vm4089 = vcmask 523712
          %v4090 = vsel %vm4089, %v4088, %v4083
          %v4091 = vadd.s32 %v4037, 4294967232
          %v4092 = vlaneseq
          %v4093 = vshrl.u32 %v4092, 7
          %v4094 = vsub.s32 %v4091, %v4093
          %v4095 = vrot.slane %v3678, %v4094
          %vm4096 = vcmask 589312
          %v4097 = vsel %vm4096, %v4095, %v4090
          %v4098 = vadd.s32 %v4037, 4294967224
          %v4099 = vlaneseq
          %v4100 = vshrl.u32 %v4099, 7
          %v4101 = vsub.s32 %v4098, %v4100
          %v4102 = vrot.slane %v3681, %v4101
          %vm4103 = vcmask 654912
          %v4104 = vsel %vm4103, %v4102, %v4097
          %v4105 = vadd.s32 %v4037, 4294967216
          %v4106 = vlaneseq
          %v4107 = vshrl.u32 %v4106, 7
          %v4108 = vsub.s32 %v4105, %v4107
          %v4109 = vrot.slane %v3684, %v4108
          %vm4110 = vcmask 720512
          %v4111 = vsel %vm4110, %v4109, %v4104
          %v4112 = vadd.s32 %v4037, 4294967208
          %v4113 = vlaneseq
          %v4114 = vshrl.u32 %v4113, 7
          %v4115 = vsub.s32 %v4112, %v4114
          %v4116 = vrot.slane %v3687, %v4115
          %vm4117 = vcmask 786112
          %v4118 = vsel %vm4117, %v4116, %v4111
          %v4119 = vadd.s32 %v4037, 4294967200
          %v4120 = vlaneseq
          %v4121 = vshrl.u32 %v4120, 7
          %v4122 = vsub.s32 %v4119, %v4121
          %v4123 = vrot.slane %v3690, %v4122
          %vm4124 = vcmask 851712
          %v4125 = vsel %vm4124, %v4123, %v4118
          %v4126 = vadd.s32 %v4037, 4294967192
          %v4127 = vlaneseq
          %v4128 = vshrl.u32 %v4127, 7
          %v4129 = vsub.s32 %v4126, %v4128
          %v4130 = vrot.slane %v3693, %v4129
          %vm4131 = vcmask 917312
          %v4132 = vsel %vm4131, %v4130, %v4125
          %v4133 = vadd.s32 %v4037, 4294967184
          %v4134 = vlaneseq
          %v4135 = vshrl.u32 %v4134, 7
          %v4136 = vsub.s32 %v4133, %v4135
          %v4137 = vrot.slane %v3696, %v4136
          %vm4138 = vcmask 982912
          %v4139 = vsel %vm4138, %v4137, %v4132
          %v4140 = vadd.s32 %v4037, 4294967176
          %v4141 = vlaneseq
          %v4142 = vshrl.u32 %v4141, 7
          %v4143 = vsub.s32 %v4140, %v4142
          %v4144 = vrot.slane %v3699, %v4143
          %vm4145 = vcmask 1048512
          %v4146 = vsel %vm4145, %v4144, %v4139
          %v4147 = vlaneseq
          %v4148 = vshrl.u32 %v4147, 7
          %v4149 = vsub.s32 %v4037, %v4148
          %v4150 = vrot.slane %v3702, %v4149
          %v4151 = vlaneseq
          %v4152 = vshrl.u32 %v4151, 7
          %v4153 = vsub.s32 %v4042, %v4152
          %v4154 = vrot.slane %v3705, %v4153
          %v4155 = vsel %vm4047, %v4154, %v4150
          %v4156 = vlaneseq
          %v4157 = vshrl.u32 %v4156, 7
          %v4158 = vsub.s32 %v4049, %v4157
          %v4159 = vrot.slane %v3708, %v4158
          %v4160 = vsel %vm4054, %v4159, %v4155
          %v4161 = vlaneseq
          %v4162 = vshrl.u32 %v4161, 7
          %v4163 = vsub.s32 %v4056, %v4162
          %v4164 = vrot.slane %v3711, %v4163
          %v4165 = vsel %vm4061, %v4164, %v4160
          %v4166 = vlaneseq
          %v4167 = vshrl.u32 %v4166, 7
          %v4168 = vsub.s32 %v4063, %v4167
          %v4169 = vrot.slane %v3714, %v4168
          %v4170 = vsel %vm4068, %v4169, %v4165
          %v4171 = vlaneseq
          %v4172 = vshrl.u32 %v4171, 7
          %v4173 = vsub.s32 %v4070, %v4172
          %v4174 = vrot.slane %v3717, %v4173
          %v4175 = vsel %vm4075, %v4174, %v4170
          %v4176 = vlaneseq
          %v4177 = vshrl.u32 %v4176, 7
          %v4178 = vsub.s32 %v4077, %v4177
          %v4179 = vrot.slane %v3720, %v4178
          %v4180 = vsel %vm4082, %v4179, %v4175
          %v4181 = vlaneseq
          %v4182 = vshrl.u32 %v4181, 7
          %v4183 = vsub.s32 %v4084, %v4182
          %v4184 = vrot.slane %v3723, %v4183
          %v4185 = vsel %vm4089, %v4184, %v4180
          %v4186 = vlaneseq
          %v4187 = vshrl.u32 %v4186, 7
          %v4188 = vsub.s32 %v4091, %v4187
          %v4189 = vrot.slane %v3726, %v4188
          %v4190 = vsel %vm4096, %v4189, %v4185
          %v4191 = vlaneseq
          %v4192 = vshrl.u32 %v4191, 7
          %v4193 = vsub.s32 %v4098, %v4192
          %v4194 = vrot.slane %v3729, %v4193
          %v4195 = vsel %vm4103, %v4194, %v4190
          %v4196 = vlaneseq
          %v4197 = vshrl.u32 %v4196, 7
          %v4198 = vsub.s32 %v4105, %v4197
          %v4199 = vrot.slane %v3732, %v4198
          %v4200 = vsel %vm4110, %v4199, %v4195
          %v4201 = vlaneseq
          %v4202 = vshrl.u32 %v4201, 7
          %v4203 = vsub.s32 %v4112, %v4202
          %v4204 = vrot.slane %v3735, %v4203
          %v4205 = vsel %vm4117, %v4204, %v4200
          %v4206 = vlaneseq
          %v4207 = vshrl.u32 %v4206, 7
          %v4208 = vsub.s32 %v4119, %v4207
          %v4209 = vrot.slane %v3738, %v4208
          %v4210 = vsel %vm4124, %v4209, %v4205
          %v4211 = vlaneseq
          %v4212 = vshrl.u32 %v4211, 7
          %v4213 = vsub.s32 %v4126, %v4212
          %v4214 = vrot.slane %v3741, %v4213
          %v4215 = vsel %vm4131, %v4214, %v4210
          %v4216 = vlaneseq
          %v4217 = vshrl.u32 %v4216, 7
          %v4218 = vsub.s32 %v4133, %v4217
          %v4219 = vrot.slane %v3744, %v4218
          %v4220 = vsel %vm4138, %v4219, %v4215
          %v4221 = vlaneseq
          %v4222 = vshrl.u32 %v4221, 7
          %v4223 = vsub.s32 %v4140, %v4222
          %v4224 = vrot.slane %v3747, %v4223
          %v4225 = vsel %vm4145, %v4224, %v4220
          %v4226 = vlaneseq
          %v4227 = vshrl.u32 %v4226, 7
          %v4228 = vsub.s32 %v4037, %v4227
          %v4229 = vrot.slane %v3750, %v4228
          %v4230 = vlaneseq
          %v4231 = vshrl.u32 %v4230, 7
          %v4232 = vsub.s32 %v4042, %v4231
          %v4233 = vrot.slane %v3753, %v4232
          %v4234 = vsel %vm4047, %v4233, %v4229
          %v4235 = vlaneseq
          %v4236 = vshrl.u32 %v4235, 7
          %v4237 = vsub.s32 %v4049, %v4236
          %v4238 = vrot.slane %v3756, %v4237
          %v4239 = vsel %vm4054, %v4238, %v4234
          %v4240 = vlaneseq
          %v4241 = vshrl.u32 %v4240, 7
          %v4242 = vsub.s32 %v4056, %v4241
          %v4243 = vrot.slane %v3759, %v4242
          %v4244 = vsel %vm4061, %v4243, %v4239
          %v4245 = vlaneseq
          %v4246 = vshrl.u32 %v4245, 7
          %v4247 = vsub.s32 %v4063, %v4246
          %v4248 = vrot.slane %v3762, %v4247
          %v4249 = vsel %vm4068, %v4248, %v4244
          %v4250 = vlaneseq
          %v4251 = vshrl.u32 %v4250, 7
          %v4252 = vsub.s32 %v4070, %v4251
          %v4253 = vrot.slane %v3765, %v4252
          %v4254 = vsel %vm4075, %v4253, %v4249
          %v4255 = vlaneseq
          %v4256 = vshrl.u32 %v4255, 7
          %v4257 = vsub.s32 %v4077, %v4256
          %v4258 = vrot.slane %v3768, %v4257
          %v4259 = vsel %vm4082, %v4258, %v4254
          %v4260 = vlaneseq
          %v4261 = vshrl.u32 %v4260, 7
          %v4262 = vsub.s32 %v4084, %v4261
          %v4263 = vrot.slane %v3771, %v4262
          %v4264 = vsel %vm4089, %v4263, %v4259
          %v4265 = vlaneseq
          %v4266 = vshrl.u32 %v4265, 7
          %v4267 = vsub.s32 %v4091, %v4266
          %v4268 = vrot.slane %v3774, %v4267
          %v4269 = vsel %vm4096, %v4268, %v4264
          %v4270 = vlaneseq
          %v4271 = vshrl.u32 %v4270, 7
          %v4272 = vsub.s32 %v4098, %v4271
          %v4273 = vrot.slane %v3777, %v4272
          %v4274 = vsel %vm4103, %v4273, %v4269
          %v4275 = vlaneseq
          %v4276 = vshrl.u32 %v4275, 7
          %v4277 = vsub.s32 %v4105, %v4276
          %v4278 = vrot.slane %v3780, %v4277
          %v4279 = vsel %vm4110, %v4278, %v4274
          %v4280 = vlaneseq
          %v4281 = vshrl.u32 %v4280, 7
          %v4282 = vsub.s32 %v4112, %v4281
          %v4283 = vrot.slane %v3783, %v4282
          %v4284 = vsel %vm4117, %v4283, %v4279
          %v4285 = vlaneseq
          %v4286 = vshrl.u32 %v4285, 7
          %v4287 = vsub.s32 %v4119, %v4286
          %v4288 = vrot.slane %v3786, %v4287
          %v4289 = vsel %vm4124, %v4288, %v4284
          %v4290 = vlaneseq
          %v4291 = vshrl.u32 %v4290, 7
          %v4292 = vsub.s32 %v4126, %v4291
          %v4293 = vrot.slane %v3789, %v4292
          %v4294 = vsel %vm4131, %v4293, %v4289
          %v4295 = vlaneseq
          %v4296 = vshrl.u32 %v4295, 7
          %v4297 = vsub.s32 %v4133, %v4296
          %v4298 = vrot.slane %v3792, %v4297
          %v4299 = vsel %vm4138, %v4298, %v4294
          %v4300 = vlaneseq
          %v4301 = vshrl.u32 %v4300, 7
          %v4302 = vsub.s32 %v4140, %v4301
          %v4303 = vrot.slane %v3795, %v4302
          %v4304 = vsel %vm4145, %v4303, %v4299
          %v4305 = vlaneseq
          %v4306 = vshrl.u32 %v4305, 7
          %v4307 = vsub.s32 %v4037, %v4306
          %v4308 = vrot.slane %v3798, %v4307
          %v4309 = vlaneseq
          %v4310 = vshrl.u32 %v4309, 7
          %v4311 = vsub.s32 %v4042, %v4310
          %v4312 = vrot.slane %v3801, %v4311
          %v4313 = vsel %vm4047, %v4312, %v4308
          %v4314 = vlaneseq
          %v4315 = vshrl.u32 %v4314, 7
          %v4316 = vsub.s32 %v4049, %v4315
          %v4317 = vrot.slane %v3804, %v4316
          %v4318 = vsel %vm4054, %v4317, %v4313
          %v4319 = vlaneseq
          %v4320 = vshrl.u32 %v4319, 7
          %v4321 = vsub.s32 %v4056, %v4320
          %v4322 = vrot.slane %v3807, %v4321
          %v4323 = vsel %vm4061, %v4322, %v4318
          %v4324 = vlaneseq
          %v4325 = vshrl.u32 %v4324, 7
          %v4326 = vsub.s32 %v4063, %v4325
          %v4327 = vrot.slane %v3810, %v4326
          %v4328 = vsel %vm4068, %v4327, %v4323
          %v4329 = vlaneseq
          %v4330 = vshrl.u32 %v4329, 7
          %v4331 = vsub.s32 %v4070, %v4330
          %v4332 = vrot.slane %v3813, %v4331
          %v4333 = vsel %vm4075, %v4332, %v4328
          %v4334 = vlaneseq
          %v4335 = vshrl.u32 %v4334, 7
          %v4336 = vsub.s32 %v4077, %v4335
          %v4337 = vrot.slane %v3816, %v4336
          %v4338 = vsel %vm4082, %v4337, %v4333
          %v4339 = vlaneseq
          %v4340 = vshrl.u32 %v4339, 7
          %v4341 = vsub.s32 %v4084, %v4340
          %v4342 = vrot.slane %v3819, %v4341
          %v4343 = vsel %vm4089, %v4342, %v4338
          %v4344 = vlaneseq
          %v4345 = vshrl.u32 %v4344, 7
          %v4346 = vsub.s32 %v4091, %v4345
          %v4347 = vrot.slane %v3822, %v4346
          %v4348 = vsel %vm4096, %v4347, %v4343
          %v4349 = vlaneseq
          %v4350 = vshrl.u32 %v4349, 7
          %v4351 = vsub.s32 %v4098, %v4350
          %v4352 = vrot.slane %v3825, %v4351
          %v4353 = vsel %vm4103, %v4352, %v4348
          %v4354 = vlaneseq
          %v4355 = vshrl.u32 %v4354, 7
          %v4356 = vsub.s32 %v4105, %v4355
          %v4357 = vrot.slane %v3828, %v4356
          %v4358 = vsel %vm4110, %v4357, %v4353
          %v4359 = vlaneseq
          %v4360 = vshrl.u32 %v4359, 7
          %v4361 = vsub.s32 %v4112, %v4360
          %v4362 = vrot.slane %v3831, %v4361
          %v4363 = vsel %vm4117, %v4362, %v4358
          %v4364 = vlaneseq
          %v4365 = vshrl.u32 %v4364, 7
          %v4366 = vsub.s32 %v4119, %v4365
          %v4367 = vrot.slane %v3834, %v4366
          %v4368 = vsel %vm4124, %v4367, %v4363
          %v4369 = vlaneseq
          %v4370 = vshrl.u32 %v4369, 7
          %v4371 = vsub.s32 %v4126, %v4370
          %v4372 = vrot.slane %v3837, %v4371
          %v4373 = vsel %vm4131, %v4372, %v4368
          %v4374 = vlaneseq
          %v4375 = vshrl.u32 %v4374, 7
          %v4376 = vsub.s32 %v4133, %v4375
          %v4377 = vrot.slane %v3840, %v4376
          %v4378 = vsel %vm4138, %v4377, %v4373
          %v4379 = vlaneseq
          %v4380 = vshrl.u32 %v4379, 7
          %v4381 = vsub.s32 %v4140, %v4380
          %v4382 = vrot.slane %v3843, %v4381
          %v4383 = vsel %vm4145, %v4382, %v4378
          %v4384 = vlaneseq
          %v4385 = vshrl.u32 %v4384, 7
          %v4386 = vsub.s32 %v4037, %v4385
          %v4387 = vrot.slane %v3846, %v4386
          %v4388 = vlaneseq
          %v4389 = vshrl.u32 %v4388, 7
          %v4390 = vsub.s32 %v4042, %v4389
          %v4391 = vrot.slane %v3849, %v4390
          %v4392 = vsel %vm4047, %v4391, %v4387
          %v4393 = vlaneseq
          %v4394 = vshrl.u32 %v4393, 7
          %v4395 = vsub.s32 %v4049, %v4394
          %v4396 = vrot.slane %v3852, %v4395
          %v4397 = vsel %vm4054, %v4396, %v4392
          %v4398 = vlaneseq
          %v4399 = vshrl.u32 %v4398, 7
          %v4400 = vsub.s32 %v4056, %v4399
          %v4401 = vrot.slane %v3855, %v4400
          %v4402 = vsel %vm4061, %v4401, %v4397
          %v4403 = vlaneseq
          %v4404 = vshrl.u32 %v4403, 7
          %v4405 = vsub.s32 %v4063, %v4404
          %v4406 = vrot.slane %v3858, %v4405
          %v4407 = vsel %vm4068, %v4406, %v4402
          %v4408 = vlaneseq
          %v4409 = vshrl.u32 %v4408, 7
          %v4410 = vsub.s32 %v4070, %v4409
          %v4411 = vrot.slane %v3861, %v4410
          %v4412 = vsel %vm4075, %v4411, %v4407
          %v4413 = vlaneseq
          %v4414 = vshrl.u32 %v4413, 7
          %v4415 = vsub.s32 %v4077, %v4414
          %v4416 = vrot.slane %v3864, %v4415
          %v4417 = vsel %vm4082, %v4416, %v4412
          %v4418 = vlaneseq
          %v4419 = vshrl.u32 %v4418, 7
          %v4420 = vsub.s32 %v4084, %v4419
          %v4421 = vrot.slane %v3867, %v4420
          %v4422 = vsel %vm4089, %v4421, %v4417
          %v4423 = vlaneseq
          %v4424 = vshrl.u32 %v4423, 7
          %v4425 = vsub.s32 %v4091, %v4424
          %v4426 = vrot.slane %v3870, %v4425
          %v4427 = vsel %vm4096, %v4426, %v4422
          %v4428 = vlaneseq
          %v4429 = vshrl.u32 %v4428, 7
          %v4430 = vsub.s32 %v4098, %v4429
          %v4431 = vrot.slane %v3873, %v4430
          %v4432 = vsel %vm4103, %v4431, %v4427
          %v4433 = vlaneseq
          %v4434 = vshrl.u32 %v4433, 7
          %v4435 = vsub.s32 %v4105, %v4434
          %v4436 = vrot.slane %v3876, %v4435
          %v4437 = vsel %vm4110, %v4436, %v4432
          %v4438 = vlaneseq
          %v4439 = vshrl.u32 %v4438, 7
          %v4440 = vsub.s32 %v4112, %v4439
          %v4441 = vrot.slane %v3879, %v4440
          %v4442 = vsel %vm4117, %v4441, %v4437
          %v4443 = vlaneseq
          %v4444 = vshrl.u32 %v4443, 7
          %v4445 = vsub.s32 %v4119, %v4444
          %v4446 = vrot.slane %v3882, %v4445
          %v4447 = vsel %vm4124, %v4446, %v4442
          %v4448 = vlaneseq
          %v4449 = vshrl.u32 %v4448, 7
          %v4450 = vsub.s32 %v4126, %v4449
          %v4451 = vrot.slane %v3885, %v4450
          %v4452 = vsel %vm4131, %v4451, %v4447
          %v4453 = vlaneseq
          %v4454 = vshrl.u32 %v4453, 7
          %v4455 = vsub.s32 %v4133, %v4454
          %v4456 = vrot.slane %v3888, %v4455
          %v4457 = vsel %vm4138, %v4456, %v4452
          %v4458 = vlaneseq
          %v4459 = vshrl.u32 %v4458, 7
          %v4460 = vsub.s32 %v4140, %v4459
          %v4461 = vrot.slane %v3891, %v4460
          %v4462 = vsel %vm4145, %v4461, %v4457
          %v4463 = vlaneseq
          %v4464 = vshrl.u32 %v4463, 7
          %v4465 = vsub.s32 %v4037, %v4464
          %v4466 = vrot.slane %v3894, %v4465
          %v4467 = vlaneseq
          %v4468 = vshrl.u32 %v4467, 7
          %v4469 = vsub.s32 %v4042, %v4468
          %v4470 = vrot.slane %v3897, %v4469
          %v4471 = vsel %vm4047, %v4470, %v4466
          %v4472 = vlaneseq
          %v4473 = vshrl.u32 %v4472, 7
          %v4474 = vsub.s32 %v4049, %v4473
          %v4475 = vrot.slane %v3900, %v4474
          %v4476 = vsel %vm4054, %v4475, %v4471
          %v4477 = vlaneseq
          %v4478 = vshrl.u32 %v4477, 7
          %v4479 = vsub.s32 %v4056, %v4478
          %v4480 = vrot.slane %v3903, %v4479
          %v4481 = vsel %vm4061, %v4480, %v4476
          %v4482 = vlaneseq
          %v4483 = vshrl.u32 %v4482, 7
          %v4484 = vsub.s32 %v4063, %v4483
          %v4485 = vrot.slane %v3906, %v4484
          %v4486 = vsel %vm4068, %v4485, %v4481
          %v4487 = vlaneseq
          %v4488 = vshrl.u32 %v4487, 7
          %v4489 = vsub.s32 %v4070, %v4488
          %v4490 = vrot.slane %v3909, %v4489
          %v4491 = vsel %vm4075, %v4490, %v4486
          %v4492 = vlaneseq
          %v4493 = vshrl.u32 %v4492, 7
          %v4494 = vsub.s32 %v4077, %v4493
          %v4495 = vrot.slane %v3912, %v4494
          %v4496 = vsel %vm4082, %v4495, %v4491
          %v4497 = vlaneseq
          %v4498 = vshrl.u32 %v4497, 7
          %v4499 = vsub.s32 %v4084, %v4498
          %v4500 = vrot.slane %v3915, %v4499
          %v4501 = vsel %vm4089, %v4500, %v4496
          %v4502 = vlaneseq
          %v4503 = vshrl.u32 %v4502, 7
          %v4504 = vsub.s32 %v4091, %v4503
          %v4505 = vrot.slane %v3918, %v4504
          %v4506 = vsel %vm4096, %v4505, %v4501
          %v4507 = vlaneseq
          %v4508 = vshrl.u32 %v4507, 7
          %v4509 = vsub.s32 %v4098, %v4508
          %v4510 = vrot.slane %v3921, %v4509
          %v4511 = vsel %vm4103, %v4510, %v4506
          %v4512 = vlaneseq
          %v4513 = vshrl.u32 %v4512, 7
          %v4514 = vsub.s32 %v4105, %v4513
          %v4515 = vrot.slane %v3924, %v4514
          %v4516 = vsel %vm4110, %v4515, %v4511
          %v4517 = vlaneseq
          %v4518 = vshrl.u32 %v4517, 7
          %v4519 = vsub.s32 %v4112, %v4518
          %v4520 = vrot.slane %v3927, %v4519
          %v4521 = vsel %vm4117, %v4520, %v4516
          %v4522 = vlaneseq
          %v4523 = vshrl.u32 %v4522, 7
          %v4524 = vsub.s32 %v4119, %v4523
          %v4525 = vrot.slane %v3930, %v4524
          %v4526 = vsel %vm4124, %v4525, %v4521
          %v4527 = vlaneseq
          %v4528 = vshrl.u32 %v4527, 7
          %v4529 = vsub.s32 %v4126, %v4528
          %v4530 = vrot.slane %v3933, %v4529
          %v4531 = vsel %vm4131, %v4530, %v4526
          %v4532 = vlaneseq
          %v4533 = vshrl.u32 %v4532, 7
          %v4534 = vsub.s32 %v4133, %v4533
          %v4535 = vrot.slane %v3936, %v4534
          %v4536 = vsel %vm4138, %v4535, %v4531
          %v4537 = vlaneseq
          %v4538 = vshrl.u32 %v4537, 7
          %v4539 = vsub.s32 %v4140, %v4538
          %v4540 = vrot.slane %v3939, %v4539
          %v4541 = vsel %vm4145, %v4540, %v4536
          %v4542 = vlaneseq
          %v4543 = vshrl.u32 %v4542, 7
          %v4544 = vsub.s32 %v4037, %v4543
          %v4545 = vrot.slane %v3942, %v4544
          %v4546 = vlaneseq
          %v4547 = vshrl.u32 %v4546, 7
          %v4548 = vsub.s32 %v4042, %v4547
          %v4549 = vrot.slane %v3945, %v4548
          %v4550 = vsel %vm4047, %v4549, %v4545
          %v4551 = vlaneseq
          %v4552 = vshrl.u32 %v4551, 7
          %v4553 = vsub.s32 %v4049, %v4552
          %v4554 = vrot.slane %v3948, %v4553
          %v4555 = vsel %vm4054, %v4554, %v4550
          %v4556 = vlaneseq
          %v4557 = vshrl.u32 %v4556, 7
          %v4558 = vsub.s32 %v4056, %v4557
          %v4559 = vrot.slane %v3951, %v4558
          %v4560 = vsel %vm4061, %v4559, %v4555
          %v4561 = vlaneseq
          %v4562 = vshrl.u32 %v4561, 7
          %v4563 = vsub.s32 %v4063, %v4562
          %v4564 = vrot.slane %v3954, %v4563
          %v4565 = vsel %vm4068, %v4564, %v4560
          %v4566 = vlaneseq
          %v4567 = vshrl.u32 %v4566, 7
          %v4568 = vsub.s32 %v4070, %v4567
          %v4569 = vrot.slane %v3957, %v4568
          %v4570 = vsel %vm4075, %v4569, %v4565
          %v4571 = vlaneseq
          %v4572 = vshrl.u32 %v4571, 7
          %v4573 = vsub.s32 %v4077, %v4572
          %v4574 = vrot.slane %v3960, %v4573
          %v4575 = vsel %vm4082, %v4574, %v4570
          %v4576 = vlaneseq
          %v4577 = vshrl.u32 %v4576, 7
          %v4578 = vsub.s32 %v4084, %v4577
          %v4579 = vrot.slane %v3963, %v4578
          %v4580 = vsel %vm4089, %v4579, %v4575
          %v4581 = vlaneseq
          %v4582 = vshrl.u32 %v4581, 7
          %v4583 = vsub.s32 %v4091, %v4582
          %v4584 = vrot.slane %v3966, %v4583
          %v4585 = vsel %vm4096, %v4584, %v4580
          %v4586 = vlaneseq
          %v4587 = vshrl.u32 %v4586, 7
          %v4588 = vsub.s32 %v4098, %v4587
          %v4589 = vrot.slane %v3969, %v4588
          %v4590 = vsel %vm4103, %v4589, %v4585
          %v4591 = vlaneseq
          %v4592 = vshrl.u32 %v4591, 7
          %v4593 = vsub.s32 %v4105, %v4592
          %v4594 = vrot.slane %v3972, %v4593
          %v4595 = vsel %vm4110, %v4594, %v4590
          %v4596 = vlaneseq
          %v4597 = vshrl.u32 %v4596, 7
          %v4598 = vsub.s32 %v4112, %v4597
          %v4599 = vrot.slane %v3975, %v4598
          %v4600 = vsel %vm4117, %v4599, %v4595
          %v4601 = vlaneseq
          %v4602 = vshrl.u32 %v4601, 7
          %v4603 = vsub.s32 %v4119, %v4602
          %v4604 = vrot.slane %v3978, %v4603
          %v4605 = vsel %vm4124, %v4604, %v4600
          %v4606 = vlaneseq
          %v4607 = vshrl.u32 %v4606, 7
          %v4608 = vsub.s32 %v4126, %v4607
          %v4609 = vrot.slane %v3981, %v4608
          %v4610 = vsel %vm4131, %v4609, %v4605
          %v4611 = vlaneseq
          %v4612 = vshrl.u32 %v4611, 7
          %v4613 = vsub.s32 %v4133, %v4612
          %v4614 = vrot.slane %v3984, %v4613
          %v4615 = vsel %vm4138, %v4614, %v4610
          %v4616 = vlaneseq
          %v4617 = vshrl.u32 %v4616, 7
          %v4618 = vsub.s32 %v4140, %v4617
          %v4619 = vrot.slane %v3987, %v4618
          %v4620 = vsel %vm4145, %v4619, %v4615
          %v4621 = vlaneseq
          %v4622 = vshrl.u32 %v4621, 7
          %v4623 = vsub.s32 %v4037, %v4622
          %v4624 = vrot.slane %v3990, %v4623
          %v4625 = vlaneseq
          %v4626 = vshrl.u32 %v4625, 7
          %v4627 = vsub.s32 %v4042, %v4626
          %v4628 = vrot.slane %v3993, %v4627
          %v4629 = vsel %vm4047, %v4628, %v4624
          %v4630 = vlaneseq
          %v4631 = vshrl.u32 %v4630, 7
          %v4632 = vsub.s32 %v4049, %v4631
          %v4633 = vrot.slane %v3996, %v4632
          %v4634 = vsel %vm4054, %v4633, %v4629
          %v4635 = vlaneseq
          %v4636 = vshrl.u32 %v4635, 7
          %v4637 = vsub.s32 %v4056, %v4636
          %v4638 = vrot.slane %v3999, %v4637
          %v4639 = vsel %vm4061, %v4638, %v4634
          %v4640 = vlaneseq
          %v4641 = vshrl.u32 %v4640, 7
          %v4642 = vsub.s32 %v4063, %v4641
          %v4643 = vrot.slane %v4002, %v4642
          %v4644 = vsel %vm4068, %v4643, %v4639
          %v4645 = vlaneseq
          %v4646 = vshrl.u32 %v4645, 7
          %v4647 = vsub.s32 %v4070, %v4646
          %v4648 = vrot.slane %v4005, %v4647
          %v4649 = vsel %vm4075, %v4648, %v4644
          %v4650 = vlaneseq
          %v4651 = vshrl.u32 %v4650, 7
          %v4652 = vsub.s32 %v4077, %v4651
          %v4653 = vrot.slane %v4008, %v4652
          %v4654 = vsel %vm4082, %v4653, %v4649
          %v4655 = vlaneseq
          %v4656 = vshrl.u32 %v4655, 7
          %v4657 = vsub.s32 %v4084, %v4656
          %v4658 = vrot.slane %v4011, %v4657
          %v4659 = vsel %vm4089, %v4658, %v4654
          %v4660 = vlaneseq
          %v4661 = vshrl.u32 %v4660, 7
          %v4662 = vsub.s32 %v4091, %v4661
          %v4663 = vrot.slane %v4014, %v4662
          %v4664 = vsel %vm4096, %v4663, %v4659
          %v4665 = vlaneseq
          %v4666 = vshrl.u32 %v4665, 7
          %v4667 = vsub.s32 %v4098, %v4666
          %v4668 = vrot.slane %v4017, %v4667
          %v4669 = vsel %vm4103, %v4668, %v4664
          %v4670 = vlaneseq
          %v4671 = vshrl.u32 %v4670, 7
          %v4672 = vsub.s32 %v4105, %v4671
          %v4673 = vrot.slane %v4020, %v4672
          %v4674 = vsel %vm4110, %v4673, %v4669
          %v4675 = vlaneseq
          %v4676 = vshrl.u32 %v4675, 7
          %v4677 = vsub.s32 %v4112, %v4676
          %v4678 = vrot.slane %v4023, %v4677
          %v4679 = vsel %vm4117, %v4678, %v4674
          %v4680 = vlaneseq
          %v4681 = vshrl.u32 %v4680, 7
          %v4682 = vsub.s32 %v4119, %v4681
          %v4683 = vrot.slane %v4026, %v4682
          %v4684 = vsel %vm4124, %v4683, %v4679
          %v4685 = vlaneseq
          %v4686 = vshrl.u32 %v4685, 7
          %v4687 = vsub.s32 %v4126, %v4686
          %v4688 = vrot.slane %v4029, %v4687
          %v4689 = vsel %vm4131, %v4688, %v4684
          %v4690 = vlaneseq
          %v4691 = vshrl.u32 %v4690, 7
          %v4692 = vsub.s32 %v4133, %v4691
          %v4693 = vrot.slane %v4032, %v4692
          %v4694 = vsel %vm4138, %v4693, %v4689
          %v4695 = vlaneseq
          %v4696 = vshrl.u32 %v4695, 7
          %v4697 = vsub.s32 %v4140, %v4696
          %v4698 = vrot.slane %v4035, %v4697
          %v4699 = vsel %vm4145, %v4698, %v4694
          %vm4700 = vcmask 1041409
          %v4701 = vsel %vm4700, %v4304, %v4146
          %vm4702 = vcmask 1042434
          %v4703 = vsel %vm4702, %v4462, %v4701
          %vm4704 = vcmask 1043459
          %v4705 = vsel %vm4704, %v4620, %v4703
          %v4706 = vsel %vm4700, %v4383, %v4225
          %v4707 = vsel %vm4702, %v4541, %v4706
          %v4708 = vsel %vm4704, %v4699, %v4707
          %v4709 = vcombine.low %v4705, %v4708
          %4711 = vst [vmem:[%s284] sm:$0xff] %v4709
        $region40: #{tpu_custom_call.1} parent=27 // pred_fallthru
          _
        %s4712 = sand.u32 %s155, 1
        %s4713 = scalar_lea.sflag [#allocation8], %s4712
        %s4714 = sand.u32 %s155, 1
        %s4715 = smul.addr %s4714, 8
        %s4716 = scalar_lea.vmem [#allocation9], %s4715
        // Predicated region
        $region41: #{tpu_custom_call.1} parent=27 // pred_check
          %p4717 = pneg %p165
        $region42: #{tpu_custom_call.1} parent=27 // pred_check_branch
          %4719 = sbr.rel (%p4717) target = $region44
        $region43: #{tpu_custom_call.1} parent=27 // pred_region
          %s4720 = sshra.s32 %s34, 7
          %s4721 = sand.u32 %s34, 127
          %s4722 = sadd.s32 %s4720, %s33
          %s4723 = smul.u32 %s4722, 128
          %s4724 = sshra.s32 %s34, 7
          %s4725 = sand.u32 %s34, 127
          %s4726 = sadd.s32 %s4723, %s4725
          %s4727 = sld [smem:[#allocation4 + %s4726]]
          %s4728 = smul.u32 2, %s4727
          %s4730 = ssub.s32 128, 128
          %4731 = vsyncadd %s4713, %s4730
          %s4732 = smul.addr %s33, 2
          %s4733 = sadd.s32 %s4728, %s4732
          %s4734 = smul.addr %s4733, 64
          %s4735 = scalar_lea.hbm %s4, %s4734
          %s4737 = sshll.u32 %s4716, 4
          %s4738 = int_to_ptr.vmem [resolvable:$true] %s4737
          %4740 = dma.vmem_to_hbm [thread:$0]  %s4738, 128, %s4735, %s4713
        $region44: #{tpu_custom_call.1} parent=27 // pred_fallthru
          _
      $region28: #{tpu_custom_call.1} parent=5 // pred_fallthru
        _
      %p4741 = scmp.le.s32.totalorder 2, %s24
      // Predicated region
      $region45: #{tpu_custom_call.1} parent=5 // pred_check
        %p4742 = pneg %p4741
      $region46: #{tpu_custom_call.1} parent=5 // pred_check_branch
        %4744 = sbr.rel (%p4742) target = $region48
      $region47: #{tpu_custom_call.1} parent=5 // pred_region
        %s4745 = ssub.s32 %s24, 2
        // Predicated region
        $region49: #{tpu_custom_call.1} parent=47 // pred_check
          %p4746 = pneg %p171
        $region50: #{tpu_custom_call.1} parent=47 // pred_check_branch
          %4748 = sbr.rel (%p4746) target = $region52
        $region51: #{tpu_custom_call.1} parent=47 // pred_region
          %s4749 = sand.u32 %s156, 1
          %s4750 = scalar_lea.sflag [#allocation8], %s4749
          %s4751 = sand.u32 %s156, 1
          %s4752 = smul.addr %s4751, 8
          %s4753 = scalar_lea.vmem [#allocation9], %s4752
          %4754 = dma.done %s4750, 128
        $region52: #{tpu_custom_call.1} parent=47 // pred_fallthru
          _
      $region48: #{tpu_custom_call.1} parent=5 // pred_fallthru
        _
    $region6: #{tpu_custom_call.1} parent=1 // loop_footer
      %s28 = sadd.s32 1, %s24
    $region7: #{tpu_custom_call.1} parent=1 // loop_footer_branch
      %23 = sbr.rel target = $region3
    $region8: #{tpu_custom_call.1} parent=1 // loop_exit
      _
    %4755 = vsyncpa [#allocation7], 1
    %s4756 = scalar_lea.sflag [#allocation7], 1
    %4757 = vsyncpa %s4756, 1
    %4758 = vsyncpa [#allocation8], 1
    %s4759 = scalar_lea.sflag [#allocation8], 1
    %4760 = vsyncpa %s4759, 1

</llo_original>
